<compile_context>
chip_gen: v6e
topology: v6e:2x2x1
jax: 0.10.0
libtpu: 0.0.40
codegen_flags: <defaults>
</compile_context>

<pallas_src>
import functools

import jax
import jax.numpy as jnp
from jax import lax
from jax.experimental import pallas as pl
from jax.experimental.pallas import tpu as pltpu

EPS = 1e-8
_N_DENSE = 19            # dense weight refs per layer
_N_SCAL = 5              # PReLU scalars per layer
_VPU_C8_LANE_LIMIT = 1024  # below this lane width, 8-wide contractions use VPU MACs


def _prelu(x, a):
    return jnp.where(x >= 0, x, a * x)


def _mm(w_ref, x, mxu_bf16):
    """Channel-major 1x1 conv.  x: (C, Lw) -> (O, Lw).

    Weight ref layout selects the path statically:
      (C, O, 1) -> VPU broadcast multiply-accumulate unroll (tiny contraction,
                   small lane width; columns read via leading-dim index).
      (O, C)    -> MXU matmul (optionally bf16 operands, f32 accumulate).
    """
    if len(w_ref.shape) == 3:
        C = w_ref.shape[0]
        acc = w_ref[0] * x[0:1, :]
        for c in range(1, C):
            acc = acc + w_ref[c] * x[c:c + 1, :]
        return acc
    w = w_ref[...]
    if mxu_bf16:
        return jnp.dot(w.astype(jnp.bfloat16), x.astype(jnp.bfloat16),
                       preferred_element_type=jnp.float32)
    return jnp.dot(w, x, preferred_element_type=jnp.float32)


def _seg_groupnorm(x, gamma, beta, G, L):
    """Per-group GroupNorm on a lane-concatenated (C, G*L) slab.

    Statistics are per lane-segment of width L (one-pass sum / sum-of-squares);
    the affine is applied once on the full batched slab.
    """
    C = x.shape[0]
    inv_n = 1.0 / float(C * L)
    segs = []
    for g in range(G):
        seg = x[:, g * L:(g + 1) * L]
        s1 = jnp.sum(seg)
        s2 = jnp.sum(seg * seg)
        mu = s1 * inv_n
        var = jnp.maximum(s2 * inv_n - mu * mu, 0.0)
        segs.append((seg - mu) * lax.rsqrt(var + EPS))
    xn = segs[0] if G == 1 else jnp.concatenate(segs, axis=1)
    return xn * gamma + beta


# --------------------------------------------------------------------------------------
# Fused whole-stack kernel: one batch element per grid step; Python loop over layers.
# Activation layout inside the kernel: channels on sublanes, group-major time on lanes,
# i.e. act[:, g*L:(g+1)*L] is group g.
# --------------------------------------------------------------------------------------
def _gc_tcn_stack_kernel(x_ref, *refs, G, Ng, Hg, H3, L, K, dilations,
                         n_dense, mxu_bf16):
    nl = len(dilations)
    dense = refs[:nl * n_dense]
    prelu_ref = refs[nl * n_dense]       # SMEM (5*nl,)
    o_ref = refs[nl * n_dense + 1]
    GL = G * L

    # Lane-concatenate the G groups ONCE for the whole stack.
    if G == 1:
        act = x_ref[0]
    else:
        act = jnp.concatenate([x_ref[g] for g in range(G)], axis=1)   # (Ng, G*L)

    # Within-segment lane index (layer-invariant) for depthwise-conv boundary masks.
    lane = lax.broadcasted_iota(jnp.int32, (Hg, GL), 1)
    lane_in_seg = lane % L

    for li in range(nl):
        d = dense[li * n_dense:(li + 1) * n_dense]
        (gnw, gnb, w1, b1, w2, b2, w3a, w3b, b3,
         tw1, tb1, g1w, g1b, dwt, db, g2w, g2b, wr, br) = d
        a1 = prelu_ref[_N_SCAL * li + 0]
        a2 = prelu_ref[_N_SCAL * li + 1]
        a3 = prelu_ref[_N_SCAL * li + 2]
        ta1 = prelu_ref[_N_SCAL * li + 3]
        ta2 = prelu_ref[_N_SCAL * li + 4]
        dil = dilations[li]
        pad = dil                      # GC_TCN_Q passes padding = dilation (kernel=3)

        # ---------------- TAC (group communication) ----------------
        xn = _seg_groupnorm(act, gnw[...], gnb[...], G, L)             # (Ng, GL)
        h = _prelu(_mm(w1, xn, mxu_bf16) + b1[...], a1)                # (H3, GL)
        m = h[:, 0:L]
        for g in range(1, G):
            m = m + h[:, g * L:(g + 1) * L]
        m = m * (1.0 / G)                                              # (H3, L)
        m2 = _prelu(_mm(w2, m, mxu_bf16) + b2[...], a2)                # (H3, L)
        shared = _mm(w3b, m2, mxu_bf16) + b3[...]                      # (Ng, L)
        if G > 1:
            shared = jnp.concatenate([shared] * G, axis=1)             # (Ng, GL)
        y = act + _prelu(_mm(w3a, h, mxu_bf16) + shared, a3)           # (Ng, GL)

        # -------- DepthConv1d_Q (skip=False, causal=False), residual fused --------
        h1 = _prelu(_mm(tw1, y, mxu_bf16) + tb1[...], ta1)             # (Hg, GL)
        h1 = _seg_groupnorm(h1, g1w[...], g1b[...], G, L)

        # Depthwise dilated conv: K lane rotations + per-segment masks
        # (no pad/concat copies; masks also stop wrap-around across groups).
        acc = None
        for j in range(K):
            off = j * dil - pad
            wj = dwt[j]                                                # (Hg, 1)
            if off == 0:
                tap = h1
            else:
                valid = jnp.logical_and(lane_in_seg + off >= 0,
                                        lane_in_seg + off < L)
                tap = jnp.where(valid, pltpu.roll(h1, (-off) % GL, axis=1), 0.0)
            t = wj * tap
            acc = t if acc is None else acc + t
        dcv = _prelu(acc + db[...], ta2)
        dcv = _seg_groupnorm(dcv, g2w[...], g2b[...], G, L)
        res = _mm(wr, dcv, mxu_bf16) + br[...]                         # (Ng, GL)
        act = y + res

    # Split the lane-concatenated activation back into the (G, Ng, L) output block.
    for g in range(G):
        o_ref[g, :, :] = act[:, g * L:(g + 1) * L]


def _prep_layer_params(tac, tcn, use_vpu_c8):
    """Pre-transpose / pre-split weights so the kernel never transposes or
    lane-slices weights.  8-wide-contraction weights go to (C, O, 1) column form
    when the VPU path is selected, else to (O, C) MXU form."""
    Ng, H3 = tac['w1'].shape
    Hg = tcn['w1'].shape[0]

    def c8(w_oc):                            # w_oc: (O, C), C small
        if use_vpu_c8:
            return jnp.transpose(w_oc)[:, :, None]      # (C, O, 1)
        return w_oc

    dense = [
        tac['gn_w'], tac['gn_b'],
        c8(jnp.transpose(tac['w1'])),                    # w1:  contraction C=Ng
        jnp.reshape(tac['b1'], (H3, 1)),
        jnp.transpose(tac['w2']),                        # w2:  C=H3 -> MXU
        jnp.reshape(tac['b2'], (H3, 1)),
        jnp.transpose(tac['w3'][:H3]),                   # w3a: C=H3 -> MXU
        jnp.transpose(tac['w3'][H3:]),                   # w3b: C=H3 -> MXU
        jnp.reshape(tac['b3'], (Ng, 1)),
        c8(tcn['w1']),                                   # conv1d: C=Ng
        tcn['b1'],
        tcn['g1w'], tcn['g1b'],
        jnp.transpose(tcn['dw'])[:, :, None],            # (K, Hg, 1)
        tcn['db'],
        tcn['g2w'], tcn['g2b'],
        c8(tcn['wr']),                                   # res_out: C=Hg
        tcn['br'],
    ]
    scalars = [tac['a1'][0], tac['a2'][0], tac['a3'][0], tcn['a1'][0], tcn['a2'][0]]
    return dense, scalars


def gc_tcn_forward(x, layers, num_group, kernel_size, mxu_bf16=False):
    """GC_TCN_Q forward (skip=False path), whole stack fused in one pallas_call."""
    B, N, L = x.shape
    G = num_group
    Ng = N // G
    nl = len(layers)
    H3 = layers[0]['tac']['w1'].shape[1]
    Hg = layers[0]['tcn']['w1'].shape[0]
    GL = G * L

    xg = x.reshape(B, G, Ng, L).astype(jnp.float32)
    use_vpu_c8 = GL < _VPU_C8_LANE_LIMIT

    dense_all, scal_flat, dilations = [], [], []
    for p in layers:
        d, s = _prep_layer_params(p['tac'], p['tcn'], use_vpu_c8)
        dense_all += d
        scal_flat += s
        dilations.append(int(p['dilation']))
    prelu_all = jnp.stack(scal_flat).astype(jnp.float32)       # (5*nl,) in SMEM

    kern = functools.partial(
        _gc_tcn_stack_kernel, G=G, Ng=Ng, Hg=Hg, H3=H3, L=L, K=kernel_size,
        dilations=tuple(dilations), n_dense=_N_DENSE, mxu_bf16=mxu_bf16)

    def full_spec(arr):
        nd = arr.ndim
        return pl.BlockSpec(arr.shape, lambda b, _nd=nd: (0,) * _nd)

    io_spec = pl.BlockSpec((None, G, Ng, L), lambda b: (b, 0, 0, 0))
    smem_spec = pl.BlockSpec(memory_space=pltpu.MemorySpace.SMEM)

    # Shape-derived VMEM budget (v5e's 16 MiB scoped default is too small at
    # realistic L); capped at 64 MiB so it is also valid on v7x.
    bytes_io = 2 * 2 * G * Ng * L * 4
    bytes_live = 4 * GL * (4 * Ng + 3 * H3 + 6 * Hg)
    bytes_w = sum(int(a.size) for a in dense_all) * 4 + 4096
    vmem_limit = int(min(64 * 2 ** 20,
                         max(32 * 2 ** 20, bytes_io + 2 * bytes_live + 2 * bytes_w)))

    out = pl.pallas_call(
        kern,
        out_shape=jax.ShapeDtypeStruct((B, G, Ng, L), jnp.float32),
        grid=(B,),
        in_specs=[io_spec] + [full_spec(a) for a in dense_all] + [smem_spec],
        out_specs=io_spec,
        compiler_params=pltpu.CompilerParams(
            dimension_semantics=("parallel",),
            vmem_limit_bytes=vmem_limit),
    )(xg, *dense_all, prelu_all)
    return out.reshape(B, N, L)


# --------------------------------------------------------------------------------------
# Pure-JAX reference (same math) for validation
# --------------------------------------------------------------------------------------
def _tac_ref(x, p):
    B, G, Ng, L = x.shape
    H3 = p['w1'].shape[1]
    mean = jnp.mean(x, axis=(2, 3), keepdims=True)
    var = jnp.mean((x - mean) ** 2, axis=(2, 3), keepdims=True)
    xn = (x - mean) / jnp.sqrt(var + EPS)
    xn = xn * p['gn_w'].reshape(1, 1, Ng, 1) + p['gn_b'].reshape(1, 1, Ng, 1)
    xt = jnp.transpose(xn, (0, 1, 3, 2))                     # (B, G, L, Ng)
    h = _prelu(xt @ p['w1'] + p['b1'], p['a1'][0])           # (B, G, L, H3)
    m = jnp.mean(h, axis=1)                                  # (B, L, H3)
    m2 = _prelu(m @ p['w2'] + p['b2'], p['a2'][0])
    o = h @ p['w3'][:H3] + (m2 @ p['w3'][H3:])[:, None] + p['b3']
    o = _prelu(o, p['a3'][0])
    return x + jnp.transpose(o, (0, 1, 3, 2))


def _tcn_ref(x, p, dilation, K):
    L = x.shape[-1]
    h = jnp.einsum('hc,bcl->bhl', p['w1'], x) + p['b1'][None]
    h = _prelu(h, p['a1'][0])
    mu = jnp.mean(h, axis=(1, 2), keepdims=True)
    var = jnp.mean((h - mu) ** 2, axis=(1, 2), keepdims=True)
    h = (h - mu) / jnp.sqrt(var + EPS) * p['g1w'][None] + p['g1b'][None]
    pad = dilation
    hp = jnp.pad(h, ((0, 0), (0, 0), (pad, pad)))
    acc = 0.0
    for j in range(K):
        acc = acc + p['dw'][None, :, j:j + 1] * hp[:, :, j * dilation: j * dilation + L]
    d = _prelu(acc + p['db'][None], p['a2'][0])
    mu2 = jnp.mean(d, axis=(1, 2), keepdims=True)
    var2 = jnp.mean((d - mu2) ** 2, axis=(1, 2), keepdims=True)
    d = (d - mu2) / jnp.sqrt(var2 + EPS) * p['g2w'][None] + p['g2b'][None]
    res = jnp.einsum('ch,bhl->bcl', p['wr'], d) + p['br'][None]
    return x + res


def gc_tcn_reference(x, layers, num_group, kernel_size):
    B, N, L = x.shape
    G = num_group
    out = x.reshape(B, G, N // G, L)
    for p in layers:
        out = _tac_ref(out, p['tac'])
        o2 = out.reshape(B * G, N // G, L)
        o2 = _tcn_ref(o2, p['tcn'], p['dilation'], kernel_size)
        out = o2.reshape(B, G, N // G, L)
    return out.reshape(B, N, L)


# --------------------------------------------------------------------------------------
# Deterministic parameter init (synthetic; mimics PyTorch uniform(-1/sqrt(fan_in), ...))
# --------------------------------------------------------------------------------------
def _u(key, shape, fan_in):
    s = 1.0 / (fan_in ** 0.5)
    return jax.random.uniform(key, shape, jnp.float32, -s, s)


def init_tac_params(key, Ng, H3):
    ks = jax.random.split(key, 6)
    return dict(
        gn_w=jnp.ones((Ng, 1), jnp.float32), gn_b=jnp.zeros((Ng, 1), jnp.float32),
        w1=_u(ks[0], (Ng, H3), Ng), b1=_u(ks[1], (1, H3), Ng),
        w2=_u(ks[2], (H3, H3), H3), b2=_u(ks[3], (1, H3), H3),
        w3=_u(ks[4], (2 * H3, Ng), 2 * H3), b3=_u(ks[5], (1, Ng), 2 * H3),
        a1=jnp.full((1,), 0.25, jnp.float32),
        a2=jnp.full((1,), 0.25, jnp.float32),
        a3=jnp.full((1,), 0.25, jnp.float32),
    )


def init_tcn_params(key, Ng, Hg, K):
    ks = jax.random.split(key, 6)
    return dict(
        w1=_u(ks[0], (Hg, Ng), Ng), b1=_u(ks[1], (Hg, 1), Ng),
        g1w=jnp.ones((Hg, 1), jnp.float32), g1b=jnp.zeros((Hg, 1), jnp.float32),
        dw=_u(ks[2], (Hg, K), K), db=_u(ks[3], (Hg, 1), K),
        g2w=jnp.ones((Hg, 1), jnp.float32), g2b=jnp.zeros((Hg, 1), jnp.float32),
        wr=_u(ks[4], (Ng, Hg), Hg), br=_u(ks[5], (Ng, 1), Hg),
        a1=jnp.full((1,), 0.25, jnp.float32),
        a2=jnp.full((1,), 0.25, jnp.float32),
    )


if __name__ == "__main__":
    # GC_TCN_Q(input_dim=16, hidden_dim=16, layer=2, stack=1, kernel=3,
    #          skip=False, causal=False, dilated=True, num_group=2, QA_flag=False)
    B, N, L = 2, 16, 16
    hidden_dim, layer, stack, G, K = 16, 2, 1, 2, 3
    Ng, Hg, H3 = N // G, hidden_dim // G, hidden_dim * 3 // G

    key = jax.random.PRNGKey(0)
    key, xk = jax.random.split(key)
    x = jax.random.normal(xk, (B, N, L), jnp.float32)

    layers = []
    for s in range(stack):
        for i in range(layer):
            key, k1, k2 = jax.random.split(key, 3)
            layers.append(dict(
                tac=init_tac_params(k1, Ng, H3),
                tcn=init_tcn_params(k2, Ng, Hg, K),
                dilation=2 ** i,      # dilated=True, padding = 2**i
            ))

    out = gc_tcn_forward(x, layers, G, K)
    out = jax.block_until_ready(out)

    ref = gc_tcn_reference(x, layers, G, K)
    assert out.shape == (B, N, L), out.shape
    assert bool(jnp.all(jnp.isfinite(out)))
    assert bool(jnp.allclose(out, ref, rtol=1e-2, atol=1e-2)), \
        float(jnp.max(jnp.abs(out - ref)))

    print("KERNEL_OK")
</pallas_src>

<mosaic_0001>
module attributes {stable_mosaic.version = 11 : i64} {
  func.func @_gc_tcn_stack_kernel(%arg0: i32, %arg1: memref<1x2x8x16xf32, #tpu.memory_space<vmem>>, %arg2: memref<8x1xf32, #tpu.memory_space<vmem>>, %arg3: memref<8x1xf32, #tpu.memory_space<vmem>>, %arg4: memref<8x24x1xf32, #tpu.memory_space<vmem>>, %arg5: memref<24x1xf32, #tpu.memory_space<vmem>>, %arg6: memref<24x24xf32, #tpu.memory_space<vmem>>, %arg7: memref<24x1xf32, #tpu.memory_space<vmem>>, %arg8: memref<8x24xf32, #tpu.memory_space<vmem>>, %arg9: memref<8x24xf32, #tpu.memory_space<vmem>>, %arg10: memref<8x1xf32, #tpu.memory_space<vmem>>, %arg11: memref<8x8x1xf32, #tpu.memory_space<vmem>>, %arg12: memref<8x1xf32, #tpu.memory_space<vmem>>, %arg13: memref<8x1xf32, #tpu.memory_space<vmem>>, %arg14: memref<8x1xf32, #tpu.memory_space<vmem>>, %arg15: memref<3x8x1xf32, #tpu.memory_space<vmem>>, %arg16: memref<8x1xf32, #tpu.memory_space<vmem>>, %arg17: memref<8x1xf32, #tpu.memory_space<vmem>>, %arg18: memref<8x1xf32, #tpu.memory_space<vmem>>, %arg19: memref<8x8x1xf32, #tpu.memory_space<vmem>>, %arg20: memref<8x1xf32, #tpu.memory_space<vmem>>, %arg21: memref<8x1xf32, #tpu.memory_space<vmem>>, %arg22: memref<8x1xf32, #tpu.memory_space<vmem>>, %arg23: memref<8x24x1xf32, #tpu.memory_space<vmem>>, %arg24: memref<24x1xf32, #tpu.memory_space<vmem>>, %arg25: memref<24x24xf32, #tpu.memory_space<vmem>>, %arg26: memref<24x1xf32, #tpu.memory_space<vmem>>, %arg27: memref<8x24xf32, #tpu.memory_space<vmem>>, %arg28: memref<8x24xf32, #tpu.memory_space<vmem>>, %arg29: memref<8x1xf32, #tpu.memory_space<vmem>>, %arg30: memref<8x8x1xf32, #tpu.memory_space<vmem>>, %arg31: memref<8x1xf32, #tpu.memory_space<vmem>>, %arg32: memref<8x1xf32, #tpu.memory_space<vmem>>, %arg33: memref<8x1xf32, #tpu.memory_space<vmem>>, %arg34: memref<3x8x1xf32, #tpu.memory_space<vmem>>, %arg35: memref<8x1xf32, #tpu.memory_space<vmem>>, %arg36: memref<8x1xf32, #tpu.memory_space<vmem>>, %arg37: memref<8x1xf32, #tpu.memory_space<vmem>>, %arg38: memref<8x8x1xf32, #tpu.memory_space<vmem>>, %arg39: memref<8x1xf32, #tpu.memory_space<vmem>>, %arg40: memref<10xf32, #tpu.memory_space<smem>>, %arg41: memref<1x2x8x16xf32, #tpu.memory_space<vmem>>) attributes {dimension_semantics = [#tpu.dimension_semantics<parallel>], iteration_bounds = array<i64: 2>, scalar_prefetch = 0 : i64, scratch_operands = 0 : i64, tpu.core_type = #tpu.core_type<tc>, window_params = [{transform_indices = @transform_0, window_bounds = array<i64: 1, 2, 8, 16>}, {pipeline_mode = #tpu.pipeline_mode<synchronous>, transform_indices = @transform_1, window_bounds = array<i64: 8, 1>}, {pipeline_mode = #tpu.pipeline_mode<synchronous>, transform_indices = @transform_2, window_bounds = array<i64: 8, 1>}, {pipeline_mode = #tpu.pipeline_mode<synchronous>, transform_indices = @transform_3, window_bounds = array<i64: 8, 24, 1>}, {pipeline_mode = #tpu.pipeline_mode<synchronous>, transform_indices = @transform_4, window_bounds = array<i64: 24, 1>}, {pipeline_mode = #tpu.pipeline_mode<synchronous>, transform_indices = @transform_5, window_bounds = array<i64: 24, 24>}, {pipeline_mode = #tpu.pipeline_mode<synchronous>, transform_indices = @transform_6, window_bounds = array<i64: 24, 1>}, {pipeline_mode = #tpu.pipeline_mode<synchronous>, transform_indices = @transform_7, window_bounds = array<i64: 8, 24>}, {pipeline_mode = #tpu.pipeline_mode<synchronous>, transform_indices = @transform_8, window_bounds = array<i64: 8, 24>}, {pipeline_mode = #tpu.pipeline_mode<synchronous>, transform_indices = @transform_9, window_bounds = array<i64: 8, 1>}, {pipeline_mode = #tpu.pipeline_mode<synchronous>, transform_indices = @transform_10, window_bounds = array<i64: 8, 8, 1>}, {pipeline_mode = #tpu.pipeline_mode<synchronous>, transform_indices = @transform_11, window_bounds = array<i64: 8, 1>}, {pipeline_mode = #tpu.pipeline_mode<synchronous>, transform_indices = @transform_12, window_bounds = array<i64: 8, 1>}, {pipeline_mode = #tpu.pipeline_mode<synchronous>, transform_indices = @transform_13, window_bounds = array<i64: 8, 1>}, {pipeline_mode = #tpu.pipeline_mode<synchronous>, transform_indices = @transform_14, window_bounds = array<i64: 3, 8, 1>}, {pipeline_mode = #tpu.pipeline_mode<synchronous>, transform_indices = @transform_15, window_bounds = array<i64: 8, 1>}, {pipeline_mode = #tpu.pipeline_mode<synchronous>, transform_indices = @transform_16, window_bounds = array<i64: 8, 1>}, {pipeline_mode = #tpu.pipeline_mode<synchronous>, transform_indices = @transform_17, window_bounds = array<i64: 8, 1>}, {pipeline_mode = #tpu.pipeline_mode<synchronous>, transform_indices = @transform_18, window_bounds = array<i64: 8, 8, 1>}, {pipeline_mode = #tpu.pipeline_mode<synchronous>, transform_indices = @transform_19, window_bounds = array<i64: 8, 1>}, {pipeline_mode = #tpu.pipeline_mode<synchronous>, transform_indices = @transform_20, window_bounds = array<i64: 8, 1>}, {pipeline_mode = #tpu.pipeline_mode<synchronous>, transform_indices = @transform_21, window_bounds = array<i64: 8, 1>}, {pipeline_mode = #tpu.pipeline_mode<synchronous>, transform_indices = @transform_22, window_bounds = array<i64: 8, 24, 1>}, {pipeline_mode = #tpu.pipeline_mode<synchronous>, transform_indices = @transform_23, window_bounds = array<i64: 24, 1>}, {pipeline_mode = #tpu.pipeline_mode<synchronous>, transform_indices = @transform_24, window_bounds = array<i64: 24, 24>}, {pipeline_mode = #tpu.pipeline_mode<synchronous>, transform_indices = @transform_25, window_bounds = array<i64: 24, 1>}, {pipeline_mode = #tpu.pipeline_mode<synchronous>, transform_indices = @transform_26, window_bounds = array<i64: 8, 24>}, {pipeline_mode = #tpu.pipeline_mode<synchronous>, transform_indices = @transform_27, window_bounds = array<i64: 8, 24>}, {pipeline_mode = #tpu.pipeline_mode<synchronous>, transform_indices = @transform_28, window_bounds = array<i64: 8, 1>}, {pipeline_mode = #tpu.pipeline_mode<synchronous>, transform_indices = @transform_29, window_bounds = array<i64: 8, 8, 1>}, {pipeline_mode = #tpu.pipeline_mode<synchronous>, transform_indices = @transform_30, window_bounds = array<i64: 8, 1>}, {pipeline_mode = #tpu.pipeline_mode<synchronous>, transform_indices = @transform_31, window_bounds = array<i64: 8, 1>}, {pipeline_mode = #tpu.pipeline_mode<synchronous>, transform_indices = @transform_32, window_bounds = array<i64: 8, 1>}, {pipeline_mode = #tpu.pipeline_mode<synchronous>, transform_indices = @transform_33, window_bounds = array<i64: 3, 8, 1>}, {pipeline_mode = #tpu.pipeline_mode<synchronous>, transform_indices = @transform_34, window_bounds = array<i64: 8, 1>}, {pipeline_mode = #tpu.pipeline_mode<synchronous>, transform_indices = @transform_35, window_bounds = array<i64: 8, 1>}, {pipeline_mode = #tpu.pipeline_mode<synchronous>, transform_indices = @transform_36, window_bounds = array<i64: 8, 1>}, {pipeline_mode = #tpu.pipeline_mode<synchronous>, transform_indices = @transform_37, window_bounds = array<i64: 8, 8, 1>}, {pipeline_mode = #tpu.pipeline_mode<synchronous>, transform_indices = @transform_38, window_bounds = array<i64: 8, 1>}, {transform_indices = @transform_39, window_bounds = array<i64: 10>}, {transform_indices = @transform_40, window_bounds = array<i64: 1, 2, 8, 16>}]} {
    %c0 = arith.constant 0 : index
    %c0_0 = arith.constant 0 : index
    %c0_1 = arith.constant 0 : index
    %c0_2 = arith.constant 0 : index
    %0 = vector.load %arg1[%c0, %c0_0, %c0_1, %c0_2] : memref<1x2x8x16xf32, #tpu.memory_space<vmem>>, vector<1x1x8x16xf32>
    %1 = vector.shape_cast %0 : vector<1x1x8x16xf32> to vector<8x16xf32>
    %c0_3 = arith.constant 0 : index
    %c1 = arith.constant 1 : index
    %c0_4 = arith.constant 0 : index
    %c0_5 = arith.constant 0 : index
    %2 = vector.load %arg1[%c0_3, %c1, %c0_4, %c0_5] : memref<1x2x8x16xf32, #tpu.memory_space<vmem>>, vector<1x1x8x16xf32>
    %3 = vector.shape_cast %2 : vector<1x1x8x16xf32> to vector<8x16xf32>
    %4 = tpu.concatenate %1, %3 in 1 : vector<8x16xf32>, vector<8x16xf32> -> vector<8x32xf32>
    %5 = tpu.iota {dimensions = array<i32: 1>} : vector<8x32xi32>
    %c16_i32 = arith.constant 16 : i32
    %c0_i32 = arith.constant 0 : i32
    %6 = arith.cmpi eq, %c16_i32, %c0_i32 : i32
    %c1_i32 = arith.constant 1 : i32
    %7 = arith.select %6, %c1_i32, %c16_i32 : i32
    %8 = vector.broadcast %7 : i32 to vector<8x32xi32>
    %9 = arith.remsi %5, %8 : vector<8x32xi32>
    %c0_i32_6 = arith.constant 0 : i32
    %10 = vector.broadcast %c0_i32_6 : i32 to vector<8x32xi32>
    %11 = arith.cmpi ne, %9, %10 : vector<8x32xi32>
    %c0_i32_7 = arith.constant 0 : i32
    %12 = vector.broadcast %c0_i32_7 : i32 to vector<8x32xi32>
    %13 = arith.cmpi slt, %9, %12 : vector<8x32xi32>
    %c0_i32_8 = arith.constant 0 : i32
    %14 = arith.cmpi slt, %7, %c0_i32_8 : i32
    %15 = vector.broadcast %14 : i1 to vector<8x32xi1>
    %16 = vector.broadcast %15 : vector<8x32xi1> to vector<8x32xi1>
    %17 = arith.xori %13, %16 : vector<8x32xi1>
    %18 = arith.andi %17, %11 : vector<8x32xi1>
    %19 = vector.broadcast %7 : i32 to vector<8x32xi32>
    %20 = arith.addi %9, %19 : vector<8x32xi32>
    %21 = arith.select %18, %20, %9 : vector<8x32xi1>, vector<8x32xi32>
    %c0_9 = arith.constant 0 : index
    %22 = memref.load %arg40[%c0_9] : memref<10xf32, #tpu.memory_space<smem>>
    %c1_10 = arith.constant 1 : index
    %23 = memref.load %arg40[%c1_10] : memref<10xf32, #tpu.memory_space<smem>>
    %c2 = arith.constant 2 : index
    %24 = memref.load %arg40[%c2] : memref<10xf32, #tpu.memory_space<smem>>
    %c3 = arith.constant 3 : index
    %25 = memref.load %arg40[%c3] : memref<10xf32, #tpu.memory_space<smem>>
    %c4 = arith.constant 4 : index
    %26 = memref.load %arg40[%c4] : memref<10xf32, #tpu.memory_space<smem>>
    %c0_11 = arith.constant 0 : index
    %c0_12 = arith.constant 0 : index
    %27 = vector.load %arg2[%c0_11, %c0_12] : memref<8x1xf32, #tpu.memory_space<vmem>>, vector<8x1xf32>
    %c0_13 = arith.constant 0 : index
    %c0_14 = arith.constant 0 : index
    %28 = vector.load %arg3[%c0_13, %c0_14] : memref<8x1xf32, #tpu.memory_space<vmem>>, vector<8x1xf32>
    %29 = vector.extract_strided_slice %4 {offsets = [0, 0], sizes = [8, 16], strides = [1, 1]} : vector<8x32xf32> to vector<8x16xf32>
    %30 = vector.shape_cast %29 : vector<8x16xf32> to vector<1x8x16xf32>
    %cst = arith.constant dense<0.000000e+00> : vector<1xf32>
    %31 = vector.multi_reduction <add>, %30, %cst [1, 2] : vector<1x8x16xf32> to vector<1xf32>
    %32 = vector.shape_cast %31 : vector<1xf32> to vector<1x1x1xf32>
    %33 = vector.extract %32[0, 0, 0] : f32 from vector<1x1x1xf32>
    %34 = arith.mulf %29, %29 : vector<8x16xf32>
    %35 = vector.shape_cast %34 : vector<8x16xf32> to vector<1x8x16xf32>
    %cst_15 = arith.constant dense<0.000000e+00> : vector<1xf32>
    %36 = vector.multi_reduction <add>, %35, %cst_15 [1, 2] : vector<1x8x16xf32> to vector<1xf32>
    %37 = vector.shape_cast %36 : vector<1xf32> to vector<1x1x1xf32>
    %38 = vector.extract %37[0, 0, 0] : f32 from vector<1x1x1xf32>
    %cst_16 = arith.constant 7.812500e-03 : f32
    %39 = arith.mulf %33, %cst_16 : f32
    %cst_17 = arith.constant 7.812500e-03 : f32
    %40 = arith.mulf %38, %cst_17 : f32
    %41 = arith.mulf %39, %39 : f32
    %42 = arith.subf %40, %41 : f32
    %cst_18 = arith.constant 0.000000e+00 : f32
    %43 = arith.maximumf %42, %cst_18 : f32
    %44 = vector.broadcast %39 : f32 to vector<8x16xf32>
    %45 = arith.subf %29, %44 : vector<8x16xf32>
    %cst_19 = arith.constant 9.99999993E-9 : f32
    %46 = arith.addf %43, %cst_19 : f32
    %47 = math.rsqrt %46 : f32
    %48 = vector.broadcast %47 : f32 to vector<8x16xf32>
    %49 = arith.mulf %45, %48 : vector<8x16xf32>
    %50 = vector.extract_strided_slice %4 {offsets = [0, 16], sizes = [8, 16], strides = [1, 1]} : vector<8x32xf32> to vector<8x16xf32>
    %51 = vector.shape_cast %50 : vector<8x16xf32> to vector<1x8x16xf32>
    %cst_20 = arith.constant dense<0.000000e+00> : vector<1xf32>
    %52 = vector.multi_reduction <add>, %51, %cst_20 [1, 2] : vector<1x8x16xf32> to vector<1xf32>
    %53 = vector.shape_cast %52 : vector<1xf32> to vector<1x1x1xf32>
    %54 = vector.extract %53[0, 0, 0] : f32 from vector<1x1x1xf32>
    %55 = arith.mulf %50, %50 : vector<8x16xf32>
    %56 = vector.shape_cast %55 : vector<8x16xf32> to vector<1x8x16xf32>
    %cst_21 = arith.constant dense<0.000000e+00> : vector<1xf32>
    %57 = vector.multi_reduction <add>, %56, %cst_21 [1, 2] : vector<1x8x16xf32> to vector<1xf32>
    %58 = vector.shape_cast %57 : vector<1xf32> to vector<1x1x1xf32>
    %59 = vector.extract %58[0, 0, 0] : f32 from vector<1x1x1xf32>
    %cst_22 = arith.constant 7.812500e-03 : f32
    %60 = arith.mulf %54, %cst_22 : f32
    %cst_23 = arith.constant 7.812500e-03 : f32
    %61 = arith.mulf %59, %cst_23 : f32
    %62 = arith.mulf %60, %60 : f32
    %63 = arith.subf %61, %62 : f32
    %cst_24 = arith.constant 0.000000e+00 : f32
    %64 = arith.maximumf %63, %cst_24 : f32
    %65 = vector.broadcast %60 : f32 to vector<8x16xf32>
    %66 = arith.subf %50, %65 : vector<8x16xf32>
    %cst_25 = arith.constant 9.99999993E-9 : f32
    %67 = arith.addf %64, %cst_25 : f32
    %68 = math.rsqrt %67 : f32
    %69 = vector.broadcast %68 : f32 to vector<8x16xf32>
    %70 = arith.mulf %66, %69 : vector<8x16xf32>
    %71 = tpu.concatenate %49, %70 in 1 : vector<8x16xf32>, vector<8x16xf32> -> vector<8x32xf32>
    %72 = vector.broadcast %27 : vector<8x1xf32> to vector<8x32xf32>
    %73 = arith.mulf %71, %72 : vector<8x32xf32>
    %74 = vector.broadcast %28 : vector<8x1xf32> to vector<8x32xf32>
    %75 = arith.addf %73, %74 : vector<8x32xf32>
    %c0_26 = arith.constant 0 : index
    %c0_27 = arith.constant 0 : index
    %c0_28 = arith.constant 0 : index
    %76 = vector.load %arg4[%c0_26, %c0_27, %c0_28] : memref<8x24x1xf32, #tpu.memory_space<vmem>>, vector<1x24x1xf32>
    %77 = vector.shape_cast %76 : vector<1x24x1xf32> to vector<24x1xf32>
    %78 = vector.extract_strided_slice %75 {offsets = [0, 0], sizes = [1, 32], strides = [1, 1]} : vector<8x32xf32> to vector<1x32xf32>
    %79 = vector.broadcast %77 : vector<24x1xf32> to vector<24x32xf32>
    %80 = vector.broadcast %78 : vector<1x32xf32> to vector<24x32xf32>
    %81 = arith.mulf %79, %80 : vector<24x32xf32>
    %c1_29 = arith.constant 1 : index
    %c0_30 = arith.constant 0 : index
    %c0_31 = arith.constant 0 : index
    %82 = vector.load %arg4[%c1_29, %c0_30, %c0_31] : memref<8x24x1xf32, #tpu.memory_space<vmem>>, vector<1x24x1xf32>
    %83 = vector.shape_cast %82 : vector<1x24x1xf32> to vector<24x1xf32>
    %84 = vector.extract_strided_slice %75 {offsets = [1, 0], sizes = [1, 32], strides = [1, 1]} : vector<8x32xf32> to vector<1x32xf32>
    %85 = vector.broadcast %83 : vector<24x1xf32> to vector<24x32xf32>
    %86 = vector.broadcast %84 : vector<1x32xf32> to vector<24x32xf32>
    %87 = arith.mulf %85, %86 : vector<24x32xf32>
    %88 = arith.addf %81, %87 : vector<24x32xf32>
    %c2_32 = arith.constant 2 : index
    %c0_33 = arith.constant 0 : index
    %c0_34 = arith.constant 0 : index
    %89 = vector.load %arg4[%c2_32, %c0_33, %c0_34] : memref<8x24x1xf32, #tpu.memory_space<vmem>>, vector<1x24x1xf32>
    %90 = vector.shape_cast %89 : vector<1x24x1xf32> to vector<24x1xf32>
    %91 = vector.extract_strided_slice %75 {offsets = [2, 0], sizes = [1, 32], strides = [1, 1]} : vector<8x32xf32> to vector<1x32xf32>
    %92 = vector.broadcast %90 : vector<24x1xf32> to vector<24x32xf32>
    %93 = vector.broadcast %91 : vector<1x32xf32> to vector<24x32xf32>
    %94 = arith.mulf %92, %93 : vector<24x32xf32>
    %95 = arith.addf %88, %94 : vector<24x32xf32>
    %c3_35 = arith.constant 3 : index
    %c0_36 = arith.constant 0 : index
    %c0_37 = arith.constant 0 : index
    %96 = vector.load %arg4[%c3_35, %c0_36, %c0_37] : memref<8x24x1xf32, #tpu.memory_space<vmem>>, vector<1x24x1xf32>
    %97 = vector.shape_cast %96 : vector<1x24x1xf32> to vector<24x1xf32>
    %98 = vector.extract_strided_slice %75 {offsets = [3, 0], sizes = [1, 32], strides = [1, 1]} : vector<8x32xf32> to vector<1x32xf32>
    %99 = vector.broadcast %97 : vector<24x1xf32> to vector<24x32xf32>
    %100 = vector.broadcast %98 : vector<1x32xf32> to vector<24x32xf32>
    %101 = arith.mulf %99, %100 : vector<24x32xf32>
    %102 = arith.addf %95, %101 : vector<24x32xf32>
    %c4_38 = arith.constant 4 : index
    %c0_39 = arith.constant 0 : index
    %c0_40 = arith.constant 0 : index
    %103 = vector.load %arg4[%c4_38, %c0_39, %c0_40] : memref<8x24x1xf32, #tpu.memory_space<vmem>>, vector<1x24x1xf32>
    %104 = vector.shape_cast %103 : vector<1x24x1xf32> to vector<24x1xf32>
    %105 = vector.extract_strided_slice %75 {offsets = [4, 0], sizes = [1, 32], strides = [1, 1]} : vector<8x32xf32> to vector<1x32xf32>
    %106 = vector.broadcast %104 : vector<24x1xf32> to vector<24x32xf32>
    %107 = vector.broadcast %105 : vector<1x32xf32> to vector<24x32xf32>
    %108 = arith.mulf %106, %107 : vector<24x32xf32>
    %109 = arith.addf %102, %108 : vector<24x32xf32>
    %c5 = arith.constant 5 : index
    %c0_41 = arith.constant 0 : index
    %c0_42 = arith.constant 0 : index
    %110 = vector.load %arg4[%c5, %c0_41, %c0_42] : memref<8x24x1xf32, #tpu.memory_space<vmem>>, vector<1x24x1xf32>
    %111 = vector.shape_cast %110 : vector<1x24x1xf32> to vector<24x1xf32>
    %112 = vector.extract_strided_slice %75 {offsets = [5, 0], sizes = [1, 32], strides = [1, 1]} : vector<8x32xf32> to vector<1x32xf32>
    %113 = vector.broadcast %111 : vector<24x1xf32> to vector<24x32xf32>
    %114 = vector.broadcast %112 : vector<1x32xf32> to vector<24x32xf32>
    %115 = arith.mulf %113, %114 : vector<24x32xf32>
    %116 = arith.addf %109, %115 : vector<24x32xf32>
    %c6 = arith.constant 6 : index
    %c0_43 = arith.constant 0 : index
    %c0_44 = arith.constant 0 : index
    %117 = vector.load %arg4[%c6, %c0_43, %c0_44] : memref<8x24x1xf32, #tpu.memory_space<vmem>>, vector<1x24x1xf32>
    %118 = vector.shape_cast %117 : vector<1x24x1xf32> to vector<24x1xf32>
    %119 = vector.extract_strided_slice %75 {offsets = [6, 0], sizes = [1, 32], strides = [1, 1]} : vector<8x32xf32> to vector<1x32xf32>
    %120 = vector.broadcast %118 : vector<24x1xf32> to vector<24x32xf32>
    %121 = vector.broadcast %119 : vector<1x32xf32> to vector<24x32xf32>
    %122 = arith.mulf %120, %121 : vector<24x32xf32>
    %123 = arith.addf %116, %122 : vector<24x32xf32>
    %c7 = arith.constant 7 : index
    %c0_45 = arith.constant 0 : index
    %c0_46 = arith.constant 0 : index
    %124 = vector.load %arg4[%c7, %c0_45, %c0_46] : memref<8x24x1xf32, #tpu.memory_space<vmem>>, vector<1x24x1xf32>
    %125 = vector.shape_cast %124 : vector<1x24x1xf32> to vector<24x1xf32>
    %126 = vector.extract_strided_slice %75 {offsets = [7, 0], sizes = [1, 32], strides = [1, 1]} : vector<8x32xf32> to vector<1x32xf32>
    %127 = vector.broadcast %125 : vector<24x1xf32> to vector<24x32xf32>
    %128 = vector.broadcast %126 : vector<1x32xf32> to vector<24x32xf32>
    %129 = arith.mulf %127, %128 : vector<24x32xf32>
    %130 = arith.addf %123, %129 : vector<24x32xf32>
    %c0_47 = arith.constant 0 : index
    %c0_48 = arith.constant 0 : index
    %131 = vector.load %arg5[%c0_47, %c0_48] : memref<24x1xf32, #tpu.memory_space<vmem>>, vector<24x1xf32>
    %132 = vector.broadcast %131 : vector<24x1xf32> to vector<24x32xf32>
    %133 = arith.addf %130, %132 : vector<24x32xf32>
    %cst_49 = arith.constant 0.000000e+00 : f32
    %134 = vector.broadcast %cst_49 : f32 to vector<24x32xf32>
    %135 = arith.cmpf oge, %133, %134 : vector<24x32xf32>
    %136 = vector.broadcast %22 : f32 to vector<24x32xf32>
    %137 = arith.mulf %136, %133 : vector<24x32xf32>
    %138 = arith.select %135, %133, %137 : vector<24x32xi1>, vector<24x32xf32>
    %139 = vector.extract_strided_slice %138 {offsets = [0, 0], sizes = [24, 16], strides = [1, 1]} : vector<24x32xf32> to vector<24x16xf32>
    %140 = vector.extract_strided_slice %138 {offsets = [0, 16], sizes = [24, 16], strides = [1, 1]} : vector<24x32xf32> to vector<24x16xf32>
    %141 = arith.addf %139, %140 : vector<24x16xf32>
    %cst_50 = arith.constant 5.000000e-01 : f32
    %142 = vector.broadcast %cst_50 : f32 to vector<24x16xf32>
    %143 = arith.mulf %141, %142 : vector<24x16xf32>
    %c0_51 = arith.constant 0 : index
    %c0_52 = arith.constant 0 : index
    %144 = vector.load %arg6[%c0_51, %c0_52] : memref<24x24xf32, #tpu.memory_space<vmem>>, vector<24x24xf32>
    %cst_53 = arith.constant dense<0.000000e+00> : vector<24x16xf32>
    %145 = tpu.matmul %144, %143, %cst_53 {dimension_numbers = #tpu.dot_dimension_numbers<[1], [0], [0], [1], [0, 0, 1, 1], [], []>} : vector<24x24xf32>, vector<24x16xf32>, vector<24x16xf32> -> vector<24x16xf32>
    %c0_54 = arith.constant 0 : index
    %c0_55 = arith.constant 0 : index
    %146 = vector.load %arg7[%c0_54, %c0_55] : memref<24x1xf32, #tpu.memory_space<vmem>>, vector<24x1xf32>
    %147 = vector.broadcast %146 : vector<24x1xf32> to vector<24x16xf32>
    %148 = arith.addf %145, %147 : vector<24x16xf32>
    %cst_56 = arith.constant 0.000000e+00 : f32
    %149 = vector.broadcast %cst_56 : f32 to vector<24x16xf32>
    %150 = arith.cmpf oge, %148, %149 : vector<24x16xf32>
    %151 = vector.broadcast %23 : f32 to vector<24x16xf32>
    %152 = arith.mulf %151, %148 : vector<24x16xf32>
    %153 = arith.select %150, %148, %152 : vector<24x16xi1>, vector<24x16xf32>
    %c0_57 = arith.constant 0 : index
    %c0_58 = arith.constant 0 : index
    %154 = vector.load %arg9[%c0_57, %c0_58] : memref<8x24xf32, #tpu.memory_space<vmem>>, vector<8x24xf32>
    %cst_59 = arith.constant dense<0.000000e+00> : vector<8x16xf32>
    %155 = tpu.matmul %154, %153, %cst_59 {dimension_numbers = #tpu.dot_dimension_numbers<[1], [0], [0], [1], [0, 0, 1, 1], [], []>} : vector<8x24xf32>, vector<24x16xf32>, vector<8x16xf32> -> vector<8x16xf32>
    %c0_60 = arith.constant 0 : index
    %c0_61 = arith.constant 0 : index
    %156 = vector.load %arg10[%c0_60, %c0_61] : memref<8x1xf32, #tpu.memory_space<vmem>>, vector<8x1xf32>
    %157 = vector.broadcast %156 : vector<8x1xf32> to vector<8x16xf32>
    %158 = arith.addf %155, %157 : vector<8x16xf32>
    %159 = tpu.concatenate %158, %158 in 1 : vector<8x16xf32>, vector<8x16xf32> -> vector<8x32xf32>
    %c0_62 = arith.constant 0 : index
    %c0_63 = arith.constant 0 : index
    %160 = vector.load %arg8[%c0_62, %c0_63] : memref<8x24xf32, #tpu.memory_space<vmem>>, vector<8x24xf32>
    %cst_64 = arith.constant dense<0.000000e+00> : vector<8x32xf32>
    %161 = tpu.matmul %160, %138, %cst_64 {dimension_numbers = #tpu.dot_dimension_numbers<[1], [0], [0], [1], [0, 0, 1, 1], [], []>} : vector<8x24xf32>, vector<24x32xf32>, vector<8x32xf32> -> vector<8x32xf32>
    %162 = arith.addf %161, %159 : vector<8x32xf32>
    %cst_65 = arith.constant 0.000000e+00 : f32
    %163 = vector.broadcast %cst_65 : f32 to vector<8x32xf32>
    %164 = arith.cmpf oge, %162, %163 : vector<8x32xf32>
    %165 = vector.broadcast %24 : f32 to vector<8x32xf32>
    %166 = arith.mulf %165, %162 : vector<8x32xf32>
    %167 = arith.select %164, %162, %166 : vector<8x32xi1>, vector<8x32xf32>
    %168 = arith.addf %4, %167 : vector<8x32xf32>
    %c0_66 = arith.constant 0 : index
    %c0_67 = arith.constant 0 : index
    %c0_68 = arith.constant 0 : index
    %169 = vector.load %arg11[%c0_66, %c0_67, %c0_68] : memref<8x8x1xf32, #tpu.memory_space<vmem>>, vector<1x8x1xf32>
    %170 = vector.shape_cast %169 : vector<1x8x1xf32> to vector<8x1xf32>
    %171 = vector.extract_strided_slice %168 {offsets = [0, 0], sizes = [1, 32], strides = [1, 1]} : vector<8x32xf32> to vector<1x32xf32>
    %172 = vector.broadcast %170 : vector<8x1xf32> to vector<8x32xf32>
    %173 = vector.broadcast %171 : vector<1x32xf32> to vector<8x32xf32>
    %174 = arith.mulf %172, %173 : vector<8x32xf32>
    %c1_69 = arith.constant 1 : index
    %c0_70 = arith.constant 0 : index
    %c0_71 = arith.constant 0 : index
    %175 = vector.load %arg11[%c1_69, %c0_70, %c0_71] : memref<8x8x1xf32, #tpu.memory_space<vmem>>, vector<1x8x1xf32>
    %176 = vector.shape_cast %175 : vector<1x8x1xf32> to vector<8x1xf32>
    %177 = vector.extract_strided_slice %168 {offsets = [1, 0], sizes = [1, 32], strides = [1, 1]} : vector<8x32xf32> to vector<1x32xf32>
    %178 = vector.broadcast %176 : vector<8x1xf32> to vector<8x32xf32>
    %179 = vector.broadcast %177 : vector<1x32xf32> to vector<8x32xf32>
    %180 = arith.mulf %178, %179 : vector<8x32xf32>
    %181 = arith.addf %174, %180 : vector<8x32xf32>
    %c2_72 = arith.constant 2 : index
    %c0_73 = arith.constant 0 : index
    %c0_74 = arith.constant 0 : index
    %182 = vector.load %arg11[%c2_72, %c0_73, %c0_74] : memref<8x8x1xf32, #tpu.memory_space<vmem>>, vector<1x8x1xf32>
    %183 = vector.shape_cast %182 : vector<1x8x1xf32> to vector<8x1xf32>
    %184 = vector.extract_strided_slice %168 {offsets = [2, 0], sizes = [1, 32], strides = [1, 1]} : vector<8x32xf32> to vector<1x32xf32>
    %185 = vector.broadcast %183 : vector<8x1xf32> to vector<8x32xf32>
    %186 = vector.broadcast %184 : vector<1x32xf32> to vector<8x32xf32>
    %187 = arith.mulf %185, %186 : vector<8x32xf32>
    %188 = arith.addf %181, %187 : vector<8x32xf32>
    %c3_75 = arith.constant 3 : index
    %c0_76 = arith.constant 0 : index
    %c0_77 = arith.constant 0 : index
    %189 = vector.load %arg11[%c3_75, %c0_76, %c0_77] : memref<8x8x1xf32, #tpu.memory_space<vmem>>, vector<1x8x1xf32>
    %190 = vector.shape_cast %189 : vector<1x8x1xf32> to vector<8x1xf32>
    %191 = vector.extract_strided_slice %168 {offsets = [3, 0], sizes = [1, 32], strides = [1, 1]} : vector<8x32xf32> to vector<1x32xf32>
    %192 = vector.broadcast %190 : vector<8x1xf32> to vector<8x32xf32>
    %193 = vector.broadcast %191 : vector<1x32xf32> to vector<8x32xf32>
    %194 = arith.mulf %192, %193 : vector<8x32xf32>
    %195 = arith.addf %188, %194 : vector<8x32xf32>
    %c4_78 = arith.constant 4 : index
    %c0_79 = arith.constant 0 : index
    %c0_80 = arith.constant 0 : index
    %196 = vector.load %arg11[%c4_78, %c0_79, %c0_80] : memref<8x8x1xf32, #tpu.memory_space<vmem>>, vector<1x8x1xf32>
    %197 = vector.shape_cast %196 : vector<1x8x1xf32> to vector<8x1xf32>
    %198 = vector.extract_strided_slice %168 {offsets = [4, 0], sizes = [1, 32], strides = [1, 1]} : vector<8x32xf32> to vector<1x32xf32>
    %199 = vector.broadcast %197 : vector<8x1xf32> to vector<8x32xf32>
    %200 = vector.broadcast %198 : vector<1x32xf32> to vector<8x32xf32>
    %201 = arith.mulf %199, %200 : vector<8x32xf32>
    %202 = arith.addf %195, %201 : vector<8x32xf32>
    %c5_81 = arith.constant 5 : index
    %c0_82 = arith.constant 0 : index
    %c0_83 = arith.constant 0 : index
    %203 = vector.load %arg11[%c5_81, %c0_82, %c0_83] : memref<8x8x1xf32, #tpu.memory_space<vmem>>, vector<1x8x1xf32>
    %204 = vector.shape_cast %203 : vector<1x8x1xf32> to vector<8x1xf32>
    %205 = vector.extract_strided_slice %168 {offsets = [5, 0], sizes = [1, 32], strides = [1, 1]} : vector<8x32xf32> to vector<1x32xf32>
    %206 = vector.broadcast %204 : vector<8x1xf32> to vector<8x32xf32>
    %207 = vector.broadcast %205 : vector<1x32xf32> to vector<8x32xf32>
    %208 = arith.mulf %206, %207 : vector<8x32xf32>
    %209 = arith.addf %202, %208 : vector<8x32xf32>
    %c6_84 = arith.constant 6 : index
    %c0_85 = arith.constant 0 : index
    %c0_86 = arith.constant 0 : index
    %210 = vector.load %arg11[%c6_84, %c0_85, %c0_86] : memref<8x8x1xf32, #tpu.memory_space<vmem>>, vector<1x8x1xf32>
    %211 = vector.shape_cast %210 : vector<1x8x1xf32> to vector<8x1xf32>
    %212 = vector.extract_strided_slice %168 {offsets = [6, 0], sizes = [1, 32], strides = [1, 1]} : vector<8x32xf32> to vector<1x32xf32>
    %213 = vector.broadcast %211 : vector<8x1xf32> to vector<8x32xf32>
    %214 = vector.broadcast %212 : vector<1x32xf32> to vector<8x32xf32>
    %215 = arith.mulf %213, %214 : vector<8x32xf32>
    %216 = arith.addf %209, %215 : vector<8x32xf32>
    %c7_87 = arith.constant 7 : index
    %c0_88 = arith.constant 0 : index
    %c0_89 = arith.constant 0 : index
    %217 = vector.load %arg11[%c7_87, %c0_88, %c0_89] : memref<8x8x1xf32, #tpu.memory_space<vmem>>, vector<1x8x1xf32>
    %218 = vector.shape_cast %217 : vector<1x8x1xf32> to vector<8x1xf32>
    %219 = vector.extract_strided_slice %168 {offsets = [7, 0], sizes = [1, 32], strides = [1, 1]} : vector<8x32xf32> to vector<1x32xf32>
    %220 = vector.broadcast %218 : vector<8x1xf32> to vector<8x32xf32>
    %221 = vector.broadcast %219 : vector<1x32xf32> to vector<8x32xf32>
    %222 = arith.mulf %220, %221 : vector<8x32xf32>
    %223 = arith.addf %216, %222 : vector<8x32xf32>
    %c0_90 = arith.constant 0 : index
    %c0_91 = arith.constant 0 : index
    %224 = vector.load %arg12[%c0_90, %c0_91] : memref<8x1xf32, #tpu.memory_space<vmem>>, vector<8x1xf32>
    %225 = vector.broadcast %224 : vector<8x1xf32> to vector<8x32xf32>
    %226 = arith.addf %223, %225 : vector<8x32xf32>
    %cst_92 = arith.constant 0.000000e+00 : f32
    %227 = vector.broadcast %cst_92 : f32 to vector<8x32xf32>
    %228 = arith.cmpf oge, %226, %227 : vector<8x32xf32>
    %229 = vector.broadcast %25 : f32 to vector<8x32xf32>
    %230 = arith.mulf %229, %226 : vector<8x32xf32>
    %231 = arith.select %228, %226, %230 : vector<8x32xi1>, vector<8x32xf32>
    %c0_93 = arith.constant 0 : index
    %c0_94 = arith.constant 0 : index
    %232 = vector.load %arg13[%c0_93, %c0_94] : memref<8x1xf32, #tpu.memory_space<vmem>>, vector<8x1xf32>
    %c0_95 = arith.constant 0 : index
    %c0_96 = arith.constant 0 : index
    %233 = vector.load %arg14[%c0_95, %c0_96] : memref<8x1xf32, #tpu.memory_space<vmem>>, vector<8x1xf32>
    %234 = vector.extract_strided_slice %231 {offsets = [0, 0], sizes = [8, 16], strides = [1, 1]} : vector<8x32xf32> to vector<8x16xf32>
    %235 = vector.shape_cast %234 : vector<8x16xf32> to vector<1x8x16xf32>
    %cst_97 = arith.constant dense<0.000000e+00> : vector<1xf32>
    %236 = vector.multi_reduction <add>, %235, %cst_97 [1, 2] : vector<1x8x16xf32> to vector<1xf32>
    %237 = vector.shape_cast %236 : vector<1xf32> to vector<1x1x1xf32>
    %238 = vector.extract %237[0, 0, 0] : f32 from vector<1x1x1xf32>
    %239 = arith.mulf %234, %234 : vector<8x16xf32>
    %240 = vector.shape_cast %239 : vector<8x16xf32> to vector<1x8x16xf32>
    %cst_98 = arith.constant dense<0.000000e+00> : vector<1xf32>
    %241 = vector.multi_reduction <add>, %240, %cst_98 [1, 2] : vector<1x8x16xf32> to vector<1xf32>
    %242 = vector.shape_cast %241 : vector<1xf32> to vector<1x1x1xf32>
    %243 = vector.extract %242[0, 0, 0] : f32 from vector<1x1x1xf32>
    %cst_99 = arith.constant 7.812500e-03 : f32
    %244 = arith.mulf %238, %cst_99 : f32
    %cst_100 = arith.constant 7.812500e-03 : f32
    %245 = arith.mulf %243, %cst_100 : f32
    %246 = arith.mulf %244, %244 : f32
    %247 = arith.subf %245, %246 : f32
    %cst_101 = arith.constant 0.000000e+00 : f32
    %248 = arith.maximumf %247, %cst_101 : f32
    %249 = vector.broadcast %244 : f32 to vector<8x16xf32>
    %250 = arith.subf %234, %249 : vector<8x16xf32>
    %cst_102 = arith.constant 9.99999993E-9 : f32
    %251 = arith.addf %248, %cst_102 : f32
    %252 = math.rsqrt %251 : f32
    %253 = vector.broadcast %252 : f32 to vector<8x16xf32>
    %254 = arith.mulf %250, %253 : vector<8x16xf32>
    %255 = vector.extract_strided_slice %231 {offsets = [0, 16], sizes = [8, 16], strides = [1, 1]} : vector<8x32xf32> to vector<8x16xf32>
    %256 = vector.shape_cast %255 : vector<8x16xf32> to vector<1x8x16xf32>
    %cst_103 = arith.constant dense<0.000000e+00> : vector<1xf32>
    %257 = vector.multi_reduction <add>, %256, %cst_103 [1, 2] : vector<1x8x16xf32> to vector<1xf32>
    %258 = vector.shape_cast %257 : vector<1xf32> to vector<1x1x1xf32>
    %259 = vector.extract %258[0, 0, 0] : f32 from vector<1x1x1xf32>
    %260 = arith.mulf %255, %255 : vector<8x16xf32>
    %261 = vector.shape_cast %260 : vector<8x16xf32> to vector<1x8x16xf32>
    %cst_104 = arith.constant dense<0.000000e+00> : vector<1xf32>
    %262 = vector.multi_reduction <add>, %261, %cst_104 [1, 2] : vector<1x8x16xf32> to vector<1xf32>
    %263 = vector.shape_cast %262 : vector<1xf32> to vector<1x1x1xf32>
    %264 = vector.extract %263[0, 0, 0] : f32 from vector<1x1x1xf32>
    %cst_105 = arith.constant 7.812500e-03 : f32
    %265 = arith.mulf %259, %cst_105 : f32
    %cst_106 = arith.constant 7.812500e-03 : f32
    %266 = arith.mulf %264, %cst_106 : f32
    %267 = arith.mulf %265, %265 : f32
    %268 = arith.subf %266, %267 : f32
    %cst_107 = arith.constant 0.000000e+00 : f32
    %269 = arith.maximumf %268, %cst_107 : f32
    %270 = vector.broadcast %265 : f32 to vector<8x16xf32>
    %271 = arith.subf %255, %270 : vector<8x16xf32>
    %cst_108 = arith.constant 9.99999993E-9 : f32
    %272 = arith.addf %269, %cst_108 : f32
    %273 = math.rsqrt %272 : f32
    %274 = vector.broadcast %273 : f32 to vector<8x16xf32>
    %275 = arith.mulf %271, %274 : vector<8x16xf32>
    %276 = tpu.concatenate %254, %275 in 1 : vector<8x16xf32>, vector<8x16xf32> -> vector<8x32xf32>
    %277 = vector.broadcast %232 : vector<8x1xf32> to vector<8x32xf32>
    %278 = arith.mulf %276, %277 : vector<8x32xf32>
    %279 = vector.broadcast %233 : vector<8x1xf32> to vector<8x32xf32>
    %280 = arith.addf %278, %279 : vector<8x32xf32>
    %c0_109 = arith.constant 0 : index
    %c0_110 = arith.constant 0 : index
    %c0_111 = arith.constant 0 : index
    %281 = vector.load %arg15[%c0_109, %c0_110, %c0_111] : memref<3x8x1xf32, #tpu.memory_space<vmem>>, vector<1x8x1xf32>
    %282 = vector.shape_cast %281 : vector<1x8x1xf32> to vector<8x1xf32>
    %c-1_i32 = arith.constant -1 : i32
    %283 = vector.broadcast %c-1_i32 : i32 to vector<8x32xi32>
    %284 = arith.addi %21, %283 : vector<8x32xi32>
    %c0_i32_112 = arith.constant 0 : i32
    %285 = vector.broadcast %c0_i32_112 : i32 to vector<8x32xi32>
    %286 = arith.cmpi sge, %284, %285 : vector<8x32xi32>
    %c-1_i32_113 = arith.constant -1 : i32
    %287 = vector.broadcast %c-1_i32_113 : i32 to vector<8x32xi32>
    %288 = arith.addi %21, %287 : vector<8x32xi32>
    %c16_i32_114 = arith.constant 16 : i32
    %289 = vector.broadcast %c16_i32_114 : i32 to vector<8x32xi32>
    %290 = arith.cmpi slt, %288, %289 : vector<8x32xi32>
    %291 = arith.andi %286, %290 : vector<8x32xi1>
    %c1_i32_115 = arith.constant 1 : i32
    %292 = tpu.dynamic_rotate %280 by %c1_i32_115 dim 1 : vector<8x32xf32>, i32 -> vector<8x32xf32>
    %cst_116 = arith.constant 0.000000e+00 : f32
    %293 = vector.broadcast %cst_116 : f32 to vector<8x32xf32>
    %294 = arith.select %291, %292, %293 : vector<8x32xi1>, vector<8x32xf32>
    %295 = vector.broadcast %282 : vector<8x1xf32> to vector<8x32xf32>
    %296 = arith.mulf %295, %294 : vector<8x32xf32>
    %c1_117 = arith.constant 1 : index
    %c0_118 = arith.constant 0 : index
    %c0_119 = arith.constant 0 : index
    %297 = vector.load %arg15[%c1_117, %c0_118, %c0_119] : memref<3x8x1xf32, #tpu.memory_space<vmem>>, vector<1x8x1xf32>
    %298 = vector.shape_cast %297 : vector<1x8x1xf32> to vector<8x1xf32>
    %299 = vector.broadcast %298 : vector<8x1xf32> to vector<8x32xf32>
    %300 = arith.mulf %299, %280 : vector<8x32xf32>
    %301 = arith.addf %296, %300 : vector<8x32xf32>
    %c2_120 = arith.constant 2 : index
    %c0_121 = arith.constant 0 : index
    %c0_122 = arith.constant 0 : index
    %302 = vector.load %arg15[%c2_120, %c0_121, %c0_122] : memref<3x8x1xf32, #tpu.memory_space<vmem>>, vector<1x8x1xf32>
    %303 = vector.shape_cast %302 : vector<1x8x1xf32> to vector<8x1xf32>
    %c1_i32_123 = arith.constant 1 : i32
    %304 = vector.broadcast %c1_i32_123 : i32 to vector<8x32xi32>
    %305 = arith.addi %21, %304 : vector<8x32xi32>
    %c0_i32_124 = arith.constant 0 : i32
    %306 = vector.broadcast %c0_i32_124 : i32 to vector<8x32xi32>
    %307 = arith.cmpi sge, %305, %306 : vector<8x32xi32>
    %c1_i32_125 = arith.constant 1 : i32
    %308 = vector.broadcast %c1_i32_125 : i32 to vector<8x32xi32>
    %309 = arith.addi %21, %308 : vector<8x32xi32>
    %c16_i32_126 = arith.constant 16 : i32
    %310 = vector.broadcast %c16_i32_126 : i32 to vector<8x32xi32>
    %311 = arith.cmpi slt, %309, %310 : vector<8x32xi32>
    %312 = arith.andi %307, %311 : vector<8x32xi1>
    %c31_i32 = arith.constant 31 : i32
    %313 = tpu.dynamic_rotate %280 by %c31_i32 dim 1 : vector<8x32xf32>, i32 -> vector<8x32xf32>
    %cst_127 = arith.constant 0.000000e+00 : f32
    %314 = vector.broadcast %cst_127 : f32 to vector<8x32xf32>
    %315 = arith.select %312, %313, %314 : vector<8x32xi1>, vector<8x32xf32>
    %316 = vector.broadcast %303 : vector<8x1xf32> to vector<8x32xf32>
    %317 = arith.mulf %316, %315 : vector<8x32xf32>
    %318 = arith.addf %301, %317 : vector<8x32xf32>
    %c0_128 = arith.constant 0 : index
    %c0_129 = arith.constant 0 : index
    %319 = vector.load %arg16[%c0_128, %c0_129] : memref<8x1xf32, #tpu.memory_space<vmem>>, vector<8x1xf32>
    %320 = vector.broadcast %319 : vector<8x1xf32> to vector<8x32xf32>
    %321 = arith.addf %318, %320 : vector<8x32xf32>
    %cst_130 = arith.constant 0.000000e+00 : f32
    %322 = vector.broadcast %cst_130 : f32 to vector<8x32xf32>
    %323 = arith.cmpf oge, %321, %322 : vector<8x32xf32>
    %324 = vector.broadcast %26 : f32 to vector<8x32xf32>
    %325 = arith.mulf %324, %321 : vector<8x32xf32>
    %326 = arith.select %323, %321, %325 : vector<8x32xi1>, vector<8x32xf32>
    %c0_131 = arith.constant 0 : index
    %c0_132 = arith.constant 0 : index
    %327 = vector.load %arg17[%c0_131, %c0_132] : memref<8x1xf32, #tpu.memory_space<vmem>>, vector<8x1xf32>
    %c0_133 = arith.constant 0 : index
    %c0_134 = arith.constant 0 : index
    %328 = vector.load %arg18[%c0_133, %c0_134] : memref<8x1xf32, #tpu.memory_space<vmem>>, vector<8x1xf32>
    %329 = vector.extract_strided_slice %326 {offsets = [0, 0], sizes = [8, 16], strides = [1, 1]} : vector<8x32xf32> to vector<8x16xf32>
    %330 = vector.shape_cast %329 : vector<8x16xf32> to vector<1x8x16xf32>
    %cst_135 = arith.constant dense<0.000000e+00> : vector<1xf32>
    %331 = vector.multi_reduction <add>, %330, %cst_135 [1, 2] : vector<1x8x16xf32> to vector<1xf32>
    %332 = vector.shape_cast %331 : vector<1xf32> to vector<1x1x1xf32>
    %333 = vector.extract %332[0, 0, 0] : f32 from vector<1x1x1xf32>
    %334 = arith.mulf %329, %329 : vector<8x16xf32>
    %335 = vector.shape_cast %334 : vector<8x16xf32> to vector<1x8x16xf32>
    %cst_136 = arith.constant dense<0.000000e+00> : vector<1xf32>
    %336 = vector.multi_reduction <add>, %335, %cst_136 [1, 2] : vector<1x8x16xf32> to vector<1xf32>
    %337 = vector.shape_cast %336 : vector<1xf32> to vector<1x1x1xf32>
    %338 = vector.extract %337[0, 0, 0] : f32 from vector<1x1x1xf32>
    %cst_137 = arith.constant 7.812500e-03 : f32
    %339 = arith.mulf %333, %cst_137 : f32
    %cst_138 = arith.constant 7.812500e-03 : f32
    %340 = arith.mulf %338, %cst_138 : f32
    %341 = arith.mulf %339, %339 : f32
    %342 = arith.subf %340, %341 : f32
    %cst_139 = arith.constant 0.000000e+00 : f32
    %343 = arith.maximumf %342, %cst_139 : f32
    %344 = vector.broadcast %339 : f32 to vector<8x16xf32>
    %345 = arith.subf %329, %344 : vector<8x16xf32>
    %cst_140 = arith.constant 9.99999993E-9 : f32
    %346 = arith.addf %343, %cst_140 : f32
    %347 = math.rsqrt %346 : f32
    %348 = vector.broadcast %347 : f32 to vector<8x16xf32>
    %349 = arith.mulf %345, %348 : vector<8x16xf32>
    %350 = vector.extract_strided_slice %326 {offsets = [0, 16], sizes = [8, 16], strides = [1, 1]} : vector<8x32xf32> to vector<8x16xf32>
    %351 = vector.shape_cast %350 : vector<8x16xf32> to vector<1x8x16xf32>
    %cst_141 = arith.constant dense<0.000000e+00> : vector<1xf32>
    %352 = vector.multi_reduction <add>, %351, %cst_141 [1, 2] : vector<1x8x16xf32> to vector<1xf32>
    %353 = vector.shape_cast %352 : vector<1xf32> to vector<1x1x1xf32>
    %354 = vector.extract %353[0, 0, 0] : f32 from vector<1x1x1xf32>
    %355 = arith.mulf %350, %350 : vector<8x16xf32>
    %356 = vector.shape_cast %355 : vector<8x16xf32> to vector<1x8x16xf32>
    %cst_142 = arith.constant dense<0.000000e+00> : vector<1xf32>
    %357 = vector.multi_reduction <add>, %356, %cst_142 [1, 2] : vector<1x8x16xf32> to vector<1xf32>
    %358 = vector.shape_cast %357 : vector<1xf32> to vector<1x1x1xf32>
    %359 = vector.extract %358[0, 0, 0] : f32 from vector<1x1x1xf32>
    %cst_143 = arith.constant 7.812500e-03 : f32
    %360 = arith.mulf %354, %cst_143 : f32
    %cst_144 = arith.constant 7.812500e-03 : f32
    %361 = arith.mulf %359, %cst_144 : f32
    %362 = arith.mulf %360, %360 : f32
    %363 = arith.subf %361, %362 : f32
    %cst_145 = arith.constant 0.000000e+00 : f32
    %364 = arith.maximumf %363, %cst_145 : f32
    %365 = vector.broadcast %360 : f32 to vector<8x16xf32>
    %366 = arith.subf %350, %365 : vector<8x16xf32>
    %cst_146 = arith.constant 9.99999993E-9 : f32
    %367 = arith.addf %364, %cst_146 : f32
    %368 = math.rsqrt %367 : f32
    %369 = vector.broadcast %368 : f32 to vector<8x16xf32>
    %370 = arith.mulf %366, %369 : vector<8x16xf32>
    %371 = tpu.concatenate %349, %370 in 1 : vector<8x16xf32>, vector<8x16xf32> -> vector<8x32xf32>
    %372 = vector.broadcast %327 : vector<8x1xf32> to vector<8x32xf32>
    %373 = arith.mulf %371, %372 : vector<8x32xf32>
    %374 = vector.broadcast %328 : vector<8x1xf32> to vector<8x32xf32>
    %375 = arith.addf %373, %374 : vector<8x32xf32>
    %c0_147 = arith.constant 0 : index
    %c0_148 = arith.constant 0 : index
    %c0_149 = arith.constant 0 : index
    %376 = vector.load %arg19[%c0_147, %c0_148, %c0_149] : memref<8x8x1xf32, #tpu.memory_space<vmem>>, vector<1x8x1xf32>
    %377 = vector.shape_cast %376 : vector<1x8x1xf32> to vector<8x1xf32>
    %378 = vector.extract_strided_slice %375 {offsets = [0, 0], sizes = [1, 32], strides = [1, 1]} : vector<8x32xf32> to vector<1x32xf32>
    %379 = vector.broadcast %377 : vector<8x1xf32> to vector<8x32xf32>
    %380 = vector.broadcast %378 : vector<1x32xf32> to vector<8x32xf32>
    %381 = arith.mulf %379, %380 : vector<8x32xf32>
    %c1_150 = arith.constant 1 : index
    %c0_151 = arith.constant 0 : index
    %c0_152 = arith.constant 0 : index
    %382 = vector.load %arg19[%c1_150, %c0_151, %c0_152] : memref<8x8x1xf32, #tpu.memory_space<vmem>>, vector<1x8x1xf32>
    %383 = vector.shape_cast %382 : vector<1x8x1xf32> to vector<8x1xf32>
    %384 = vector.extract_strided_slice %375 {offsets = [1, 0], sizes = [1, 32], strides = [1, 1]} : vector<8x32xf32> to vector<1x32xf32>
    %385 = vector.broadcast %383 : vector<8x1xf32> to vector<8x32xf32>
    %386 = vector.broadcast %384 : vector<1x32xf32> to vector<8x32xf32>
    %387 = arith.mulf %385, %386 : vector<8x32xf32>
    %388 = arith.addf %381, %387 : vector<8x32xf32>
    %c2_153 = arith.constant 2 : index
    %c0_154 = arith.constant 0 : index
    %c0_155 = arith.constant 0 : index
    %389 = vector.load %arg19[%c2_153, %c0_154, %c0_155] : memref<8x8x1xf32, #tpu.memory_space<vmem>>, vector<1x8x1xf32>
    %390 = vector.shape_cast %389 : vector<1x8x1xf32> to vector<8x1xf32>
    %391 = vector.extract_strided_slice %375 {offsets = [2, 0], sizes = [1, 32], strides = [1, 1]} : vector<8x32xf32> to vector<1x32xf32>
    %392 = vector.broadcast %390 : vector<8x1xf32> to vector<8x32xf32>
    %393 = vector.broadcast %391 : vector<1x32xf32> to vector<8x32xf32>
    %394 = arith.mulf %392, %393 : vector<8x32xf32>
    %395 = arith.addf %388, %394 : vector<8x32xf32>
    %c3_156 = arith.constant 3 : index
    %c0_157 = arith.constant 0 : index
    %c0_158 = arith.constant 0 : index
    %396 = vector.load %arg19[%c3_156, %c0_157, %c0_158] : memref<8x8x1xf32, #tpu.memory_space<vmem>>, vector<1x8x1xf32>
    %397 = vector.shape_cast %396 : vector<1x8x1xf32> to vector<8x1xf32>
    %398 = vector.extract_strided_slice %375 {offsets = [3, 0], sizes = [1, 32], strides = [1, 1]} : vector<8x32xf32> to vector<1x32xf32>
    %399 = vector.broadcast %397 : vector<8x1xf32> to vector<8x32xf32>
    %400 = vector.broadcast %398 : vector<1x32xf32> to vector<8x32xf32>
    %401 = arith.mulf %399, %400 : vector<8x32xf32>
    %402 = arith.addf %395, %401 : vector<8x32xf32>
    %c4_159 = arith.constant 4 : index
    %c0_160 = arith.constant 0 : index
    %c0_161 = arith.constant 0 : index
    %403 = vector.load %arg19[%c4_159, %c0_160, %c0_161] : memref<8x8x1xf32, #tpu.memory_space<vmem>>, vector<1x8x1xf32>
    %404 = vector.shape_cast %403 : vector<1x8x1xf32> to vector<8x1xf32>
    %405 = vector.extract_strided_slice %375 {offsets = [4, 0], sizes = [1, 32], strides = [1, 1]} : vector<8x32xf32> to vector<1x32xf32>
    %406 = vector.broadcast %404 : vector<8x1xf32> to vector<8x32xf32>
    %407 = vector.broadcast %405 : vector<1x32xf32> to vector<8x32xf32>
    %408 = arith.mulf %406, %407 : vector<8x32xf32>
    %409 = arith.addf %402, %408 : vector<8x32xf32>
    %c5_162 = arith.constant 5 : index
    %c0_163 = arith.constant 0 : index
    %c0_164 = arith.constant 0 : index
    %410 = vector.load %arg19[%c5_162, %c0_163, %c0_164] : memref<8x8x1xf32, #tpu.memory_space<vmem>>, vector<1x8x1xf32>
    %411 = vector.shape_cast %410 : vector<1x8x1xf32> to vector<8x1xf32>
    %412 = vector.extract_strided_slice %375 {offsets = [5, 0], sizes = [1, 32], strides = [1, 1]} : vector<8x32xf32> to vector<1x32xf32>
    %413 = vector.broadcast %411 : vector<8x1xf32> to vector<8x32xf32>
    %414 = vector.broadcast %412 : vector<1x32xf32> to vector<8x32xf32>
    %415 = arith.mulf %413, %414 : vector<8x32xf32>
    %416 = arith.addf %409, %415 : vector<8x32xf32>
    %c6_165 = arith.constant 6 : index
    %c0_166 = arith.constant 0 : index
    %c0_167 = arith.constant 0 : index
    %417 = vector.load %arg19[%c6_165, %c0_166, %c0_167] : memref<8x8x1xf32, #tpu.memory_space<vmem>>, vector<1x8x1xf32>
    %418 = vector.shape_cast %417 : vector<1x8x1xf32> to vector<8x1xf32>
    %419 = vector.extract_strided_slice %375 {offsets = [6, 0], sizes = [1, 32], strides = [1, 1]} : vector<8x32xf32> to vector<1x32xf32>
    %420 = vector.broadcast %418 : vector<8x1xf32> to vector<8x32xf32>
    %421 = vector.broadcast %419 : vector<1x32xf32> to vector<8x32xf32>
    %422 = arith.mulf %420, %421 : vector<8x32xf32>
    %423 = arith.addf %416, %422 : vector<8x32xf32>
    %c7_168 = arith.constant 7 : index
    %c0_169 = arith.constant 0 : index
    %c0_170 = arith.constant 0 : index
    %424 = vector.load %arg19[%c7_168, %c0_169, %c0_170] : memref<8x8x1xf32, #tpu.memory_space<vmem>>, vector<1x8x1xf32>
    %425 = vector.shape_cast %424 : vector<1x8x1xf32> to vector<8x1xf32>
    %426 = vector.extract_strided_slice %375 {offsets = [7, 0], sizes = [1, 32], strides = [1, 1]} : vector<8x32xf32> to vector<1x32xf32>
    %427 = vector.broadcast %425 : vector<8x1xf32> to vector<8x32xf32>
    %428 = vector.broadcast %426 : vector<1x32xf32> to vector<8x32xf32>
    %429 = arith.mulf %427, %428 : vector<8x32xf32>
    %430 = arith.addf %423, %429 : vector<8x32xf32>
    %c0_171 = arith.constant 0 : index
    %c0_172 = arith.constant 0 : index
    %431 = vector.load %arg20[%c0_171, %c0_172] : memref<8x1xf32, #tpu.memory_space<vmem>>, vector<8x1xf32>
    %432 = vector.broadcast %431 : vector<8x1xf32> to vector<8x32xf32>
    %433 = arith.addf %430, %432 : vector<8x32xf32>
    %434 = arith.addf %168, %433 : vector<8x32xf32>
    %c5_173 = arith.constant 5 : index
    %435 = memref.load %arg40[%c5_173] : memref<10xf32, #tpu.memory_space<smem>>
    %c6_174 = arith.constant 6 : index
    %436 = memref.load %arg40[%c6_174] : memref<10xf32, #tpu.memory_space<smem>>
    %c7_175 = arith.constant 7 : index
    %437 = memref.load %arg40[%c7_175] : memref<10xf32, #tpu.memory_space<smem>>
    %c8 = arith.constant 8 : index
    %438 = memref.load %arg40[%c8] : memref<10xf32, #tpu.memory_space<smem>>
    %c9 = arith.constant 9 : index
    %439 = memref.load %arg40[%c9] : memref<10xf32, #tpu.memory_space<smem>>
    %c0_176 = arith.constant 0 : index
    %c0_177 = arith.constant 0 : index
    %440 = vector.load %arg21[%c0_176, %c0_177] : memref<8x1xf32, #tpu.memory_space<vmem>>, vector<8x1xf32>
    %c0_178 = arith.constant 0 : index
    %c0_179 = arith.constant 0 : index
    %441 = vector.load %arg22[%c0_178, %c0_179] : memref<8x1xf32, #tpu.memory_space<vmem>>, vector<8x1xf32>
    %442 = vector.extract_strided_slice %434 {offsets = [0, 0], sizes = [8, 16], strides = [1, 1]} : vector<8x32xf32> to vector<8x16xf32>
    %443 = vector.shape_cast %442 : vector<8x16xf32> to vector<1x8x16xf32>
    %cst_180 = arith.constant dense<0.000000e+00> : vector<1xf32>
    %444 = vector.multi_reduction <add>, %443, %cst_180 [1, 2] : vector<1x8x16xf32> to vector<1xf32>
    %445 = vector.shape_cast %444 : vector<1xf32> to vector<1x1x1xf32>
    %446 = vector.extract %445[0, 0, 0] : f32 from vector<1x1x1xf32>
    %447 = arith.mulf %442, %442 : vector<8x16xf32>
    %448 = vector.shape_cast %447 : vector<8x16xf32> to vector<1x8x16xf32>
    %cst_181 = arith.constant dense<0.000000e+00> : vector<1xf32>
    %449 = vector.multi_reduction <add>, %448, %cst_181 [1, 2] : vector<1x8x16xf32> to vector<1xf32>
    %450 = vector.shape_cast %449 : vector<1xf32> to vector<1x1x1xf32>
    %451 = vector.extract %450[0, 0, 0] : f32 from vector<1x1x1xf32>
    %cst_182 = arith.constant 7.812500e-03 : f32
    %452 = arith.mulf %446, %cst_182 : f32
    %cst_183 = arith.constant 7.812500e-03 : f32
    %453 = arith.mulf %451, %cst_183 : f32
    %454 = arith.mulf %452, %452 : f32
    %455 = arith.subf %453, %454 : f32
    %cst_184 = arith.constant 0.000000e+00 : f32
    %456 = arith.maximumf %455, %cst_184 : f32
    %457 = vector.broadcast %452 : f32 to vector<8x16xf32>
    %458 = arith.subf %442, %457 : vector<8x16xf32>
    %cst_185 = arith.constant 9.99999993E-9 : f32
    %459 = arith.addf %456, %cst_185 : f32
    %460 = math.rsqrt %459 : f32
    %461 = vector.broadcast %460 : f32 to vector<8x16xf32>
    %462 = arith.mulf %458, %461 : vector<8x16xf32>
    %463 = vector.extract_strided_slice %434 {offsets = [0, 16], sizes = [8, 16], strides = [1, 1]} : vector<8x32xf32> to vector<8x16xf32>
    %464 = vector.shape_cast %463 : vector<8x16xf32> to vector<1x8x16xf32>
    %cst_186 = arith.constant dense<0.000000e+00> : vector<1xf32>
    %465 = vector.multi_reduction <add>, %464, %cst_186 [1, 2] : vector<1x8x16xf32> to vector<1xf32>
    %466 = vector.shape_cast %465 : vector<1xf32> to vector<1x1x1xf32>
    %467 = vector.extract %466[0, 0, 0] : f32 from vector<1x1x1xf32>
    %468 = arith.mulf %463, %463 : vector<8x16xf32>
    %469 = vector.shape_cast %468 : vector<8x16xf32> to vector<1x8x16xf32>
    %cst_187 = arith.constant dense<0.000000e+00> : vector<1xf32>
    %470 = vector.multi_reduction <add>, %469, %cst_187 [1, 2] : vector<1x8x16xf32> to vector<1xf32>
    %471 = vector.shape_cast %470 : vector<1xf32> to vector<1x1x1xf32>
    %472 = vector.extract %471[0, 0, 0] : f32 from vector<1x1x1xf32>
    %cst_188 = arith.constant 7.812500e-03 : f32
    %473 = arith.mulf %467, %cst_188 : f32
    %cst_189 = arith.constant 7.812500e-03 : f32
    %474 = arith.mulf %472, %cst_189 : f32
    %475 = arith.mulf %473, %473 : f32
    %476 = arith.subf %474, %475 : f32
    %cst_190 = arith.constant 0.000000e+00 : f32
    %477 = arith.maximumf %476, %cst_190 : f32
    %478 = vector.broadcast %473 : f32 to vector<8x16xf32>
    %479 = arith.subf %463, %478 : vector<8x16xf32>
    %cst_191 = arith.constant 9.99999993E-9 : f32
    %480 = arith.addf %477, %cst_191 : f32
    %481 = math.rsqrt %480 : f32
    %482 = vector.broadcast %481 : f32 to vector<8x16xf32>
    %483 = arith.mulf %479, %482 : vector<8x16xf32>
    %484 = tpu.concatenate %462, %483 in 1 : vector<8x16xf32>, vector<8x16xf32> -> vector<8x32xf32>
    %485 = vector.broadcast %440 : vector<8x1xf32> to vector<8x32xf32>
    %486 = arith.mulf %484, %485 : vector<8x32xf32>
    %487 = vector.broadcast %441 : vector<8x1xf32> to vector<8x32xf32>
    %488 = arith.addf %486, %487 : vector<8x32xf32>
    %c0_192 = arith.constant 0 : index
    %c0_193 = arith.constant 0 : index
    %c0_194 = arith.constant 0 : index
    %489 = vector.load %arg23[%c0_192, %c0_193, %c0_194] : memref<8x24x1xf32, #tpu.memory_space<vmem>>, vector<1x24x1xf32>
    %490 = vector.shape_cast %489 : vector<1x24x1xf32> to vector<24x1xf32>
    %491 = vector.extract_strided_slice %488 {offsets = [0, 0], sizes = [1, 32], strides = [1, 1]} : vector<8x32xf32> to vector<1x32xf32>
    %492 = vector.broadcast %490 : vector<24x1xf32> to vector<24x32xf32>
    %493 = vector.broadcast %491 : vector<1x32xf32> to vector<24x32xf32>
    %494 = arith.mulf %492, %493 : vector<24x32xf32>
    %c1_195 = arith.constant 1 : index
    %c0_196 = arith.constant 0 : index
    %c0_197 = arith.constant 0 : index
    %495 = vector.load %arg23[%c1_195, %c0_196, %c0_197] : memref<8x24x1xf32, #tpu.memory_space<vmem>>, vector<1x24x1xf32>
    %496 = vector.shape_cast %495 : vector<1x24x1xf32> to vector<24x1xf32>
    %497 = vector.extract_strided_slice %488 {offsets = [1, 0], sizes = [1, 32], strides = [1, 1]} : vector<8x32xf32> to vector<1x32xf32>
    %498 = vector.broadcast %496 : vector<24x1xf32> to vector<24x32xf32>
    %499 = vector.broadcast %497 : vector<1x32xf32> to vector<24x32xf32>
    %500 = arith.mulf %498, %499 : vector<24x32xf32>
    %501 = arith.addf %494, %500 : vector<24x32xf32>
    %c2_198 = arith.constant 2 : index
    %c0_199 = arith.constant 0 : index
    %c0_200 = arith.constant 0 : index
    %502 = vector.load %arg23[%c2_198, %c0_199, %c0_200] : memref<8x24x1xf32, #tpu.memory_space<vmem>>, vector<1x24x1xf32>
    %503 = vector.shape_cast %502 : vector<1x24x1xf32> to vector<24x1xf32>
    %504 = vector.extract_strided_slice %488 {offsets = [2, 0], sizes = [1, 32], strides = [1, 1]} : vector<8x32xf32> to vector<1x32xf32>
    %505 = vector.broadcast %503 : vector<24x1xf32> to vector<24x32xf32>
    %506 = vector.broadcast %504 : vector<1x32xf32> to vector<24x32xf32>
    %507 = arith.mulf %505, %506 : vector<24x32xf32>
    %508 = arith.addf %501, %507 : vector<24x32xf32>
    %c3_201 = arith.constant 3 : index
    %c0_202 = arith.constant 0 : index
    %c0_203 = arith.constant 0 : index
    %509 = vector.load %arg23[%c3_201, %c0_202, %c0_203] : memref<8x24x1xf32, #tpu.memory_space<vmem>>, vector<1x24x1xf32>
    %510 = vector.shape_cast %509 : vector<1x24x1xf32> to vector<24x1xf32>
    %511 = vector.extract_strided_slice %488 {offsets = [3, 0], sizes = [1, 32], strides = [1, 1]} : vector<8x32xf32> to vector<1x32xf32>
    %512 = vector.broadcast %510 : vector<24x1xf32> to vector<24x32xf32>
    %513 = vector.broadcast %511 : vector<1x32xf32> to vector<24x32xf32>
    %514 = arith.mulf %512, %513 : vector<24x32xf32>
    %515 = arith.addf %508, %514 : vector<24x32xf32>
    %c4_204 = arith.constant 4 : index
    %c0_205 = arith.constant 0 : index
    %c0_206 = arith.constant 0 : index
    %516 = vector.load %arg23[%c4_204, %c0_205, %c0_206] : memref<8x24x1xf32, #tpu.memory_space<vmem>>, vector<1x24x1xf32>
    %517 = vector.shape_cast %516 : vector<1x24x1xf32> to vector<24x1xf32>
    %518 = vector.extract_strided_slice %488 {offsets = [4, 0], sizes = [1, 32], strides = [1, 1]} : vector<8x32xf32> to vector<1x32xf32>
    %519 = vector.broadcast %517 : vector<24x1xf32> to vector<24x32xf32>
    %520 = vector.broadcast %518 : vector<1x32xf32> to vector<24x32xf32>
    %521 = arith.mulf %519, %520 : vector<24x32xf32>
    %522 = arith.addf %515, %521 : vector<24x32xf32>
    %c5_207 = arith.constant 5 : index
    %c0_208 = arith.constant 0 : index
    %c0_209 = arith.constant 0 : index
    %523 = vector.load %arg23[%c5_207, %c0_208, %c0_209] : memref<8x24x1xf32, #tpu.memory_space<vmem>>, vector<1x24x1xf32>
    %524 = vector.shape_cast %523 : vector<1x24x1xf32> to vector<24x1xf32>
    %525 = vector.extract_strided_slice %488 {offsets = [5, 0], sizes = [1, 32], strides = [1, 1]} : vector<8x32xf32> to vector<1x32xf32>
    %526 = vector.broadcast %524 : vector<24x1xf32> to vector<24x32xf32>
    %527 = vector.broadcast %525 : vector<1x32xf32> to vector<24x32xf32>
    %528 = arith.mulf %526, %527 : vector<24x32xf32>
    %529 = arith.addf %522, %528 : vector<24x32xf32>
    %c6_210 = arith.constant 6 : index
    %c0_211 = arith.constant 0 : index
    %c0_212 = arith.constant 0 : index
    %530 = vector.load %arg23[%c6_210, %c0_211, %c0_212] : memref<8x24x1xf32, #tpu.memory_space<vmem>>, vector<1x24x1xf32>
    %531 = vector.shape_cast %530 : vector<1x24x1xf32> to vector<24x1xf32>
    %532 = vector.extract_strided_slice %488 {offsets = [6, 0], sizes = [1, 32], strides = [1, 1]} : vector<8x32xf32> to vector<1x32xf32>
    %533 = vector.broadcast %531 : vector<24x1xf32> to vector<24x32xf32>
    %534 = vector.broadcast %532 : vector<1x32xf32> to vector<24x32xf32>
    %535 = arith.mulf %533, %534 : vector<24x32xf32>
    %536 = arith.addf %529, %535 : vector<24x32xf32>
    %c7_213 = arith.constant 7 : index
    %c0_214 = arith.constant 0 : index
    %c0_215 = arith.constant 0 : index
    %537 = vector.load %arg23[%c7_213, %c0_214, %c0_215] : memref<8x24x1xf32, #tpu.memory_space<vmem>>, vector<1x24x1xf32>
    %538 = vector.shape_cast %537 : vector<1x24x1xf32> to vector<24x1xf32>
    %539 = vector.extract_strided_slice %488 {offsets = [7, 0], sizes = [1, 32], strides = [1, 1]} : vector<8x32xf32> to vector<1x32xf32>
    %540 = vector.broadcast %538 : vector<24x1xf32> to vector<24x32xf32>
    %541 = vector.broadcast %539 : vector<1x32xf32> to vector<24x32xf32>
    %542 = arith.mulf %540, %541 : vector<24x32xf32>
    %543 = arith.addf %536, %542 : vector<24x32xf32>
    %c0_216 = arith.constant 0 : index
    %c0_217 = arith.constant 0 : index
    %544 = vector.load %arg24[%c0_216, %c0_217] : memref<24x1xf32, #tpu.memory_space<vmem>>, vector<24x1xf32>
    %545 = vector.broadcast %544 : vector<24x1xf32> to vector<24x32xf32>
    %546 = arith.addf %543, %545 : vector<24x32xf32>
    %cst_218 = arith.constant 0.000000e+00 : f32
    %547 = vector.broadcast %cst_218 : f32 to vector<24x32xf32>
    %548 = arith.cmpf oge, %546, %547 : vector<24x32xf32>
    %549 = vector.broadcast %435 : f32 to vector<24x32xf32>
    %550 = arith.mulf %549, %546 : vector<24x32xf32>
    %551 = arith.select %548, %546, %550 : vector<24x32xi1>, vector<24x32xf32>
    %552 = vector.extract_strided_slice %551 {offsets = [0, 0], sizes = [24, 16], strides = [1, 1]} : vector<24x32xf32> to vector<24x16xf32>
    %553 = vector.extract_strided_slice %551 {offsets = [0, 16], sizes = [24, 16], strides = [1, 1]} : vector<24x32xf32> to vector<24x16xf32>
    %554 = arith.addf %552, %553 : vector<24x16xf32>
    %cst_219 = arith.constant 5.000000e-01 : f32
    %555 = vector.broadcast %cst_219 : f32 to vector<24x16xf32>
    %556 = arith.mulf %554, %555 : vector<24x16xf32>
    %c0_220 = arith.constant 0 : index
    %c0_221 = arith.constant 0 : index
    %557 = vector.load %arg25[%c0_220, %c0_221] : memref<24x24xf32, #tpu.memory_space<vmem>>, vector<24x24xf32>
    %cst_222 = arith.constant dense<0.000000e+00> : vector<24x16xf32>
    %558 = tpu.matmul %557, %556, %cst_222 {dimension_numbers = #tpu.dot_dimension_numbers<[1], [0], [0], [1], [0, 0, 1, 1], [], []>} : vector<24x24xf32>, vector<24x16xf32>, vector<24x16xf32> -> vector<24x16xf32>
    %c0_223 = arith.constant 0 : index
    %c0_224 = arith.constant 0 : index
    %559 = vector.load %arg26[%c0_223, %c0_224] : memref<24x1xf32, #tpu.memory_space<vmem>>, vector<24x1xf32>
    %560 = vector.broadcast %559 : vector<24x1xf32> to vector<24x16xf32>
    %561 = arith.addf %558, %560 : vector<24x16xf32>
    %cst_225 = arith.constant 0.000000e+00 : f32
    %562 = vector.broadcast %cst_225 : f32 to vector<24x16xf32>
    %563 = arith.cmpf oge, %561, %562 : vector<24x16xf32>
    %564 = vector.broadcast %436 : f32 to vector<24x16xf32>
    %565 = arith.mulf %564, %561 : vector<24x16xf32>
    %566 = arith.select %563, %561, %565 : vector<24x16xi1>, vector<24x16xf32>
    %c0_226 = arith.constant 0 : index
    %c0_227 = arith.constant 0 : index
    %567 = vector.load %arg28[%c0_226, %c0_227] : memref<8x24xf32, #tpu.memory_space<vmem>>, vector<8x24xf32>
    %cst_228 = arith.constant dense<0.000000e+00> : vector<8x16xf32>
    %568 = tpu.matmul %567, %566, %cst_228 {dimension_numbers = #tpu.dot_dimension_numbers<[1], [0], [0], [1], [0, 0, 1, 1], [], []>} : vector<8x24xf32>, vector<24x16xf32>, vector<8x16xf32> -> vector<8x16xf32>
    %c0_229 = arith.constant 0 : index
    %c0_230 = arith.constant 0 : index
    %569 = vector.load %arg29[%c0_229, %c0_230] : memref<8x1xf32, #tpu.memory_space<vmem>>, vector<8x1xf32>
    %570 = vector.broadcast %569 : vector<8x1xf32> to vector<8x16xf32>
    %571 = arith.addf %568, %570 : vector<8x16xf32>
    %572 = tpu.concatenate %571, %571 in 1 : vector<8x16xf32>, vector<8x16xf32> -> vector<8x32xf32>
    %c0_231 = arith.constant 0 : index
    %c0_232 = arith.constant 0 : index
    %573 = vector.load %arg27[%c0_231, %c0_232] : memref<8x24xf32, #tpu.memory_space<vmem>>, vector<8x24xf32>
    %cst_233 = arith.constant dense<0.000000e+00> : vector<8x32xf32>
    %574 = tpu.matmul %573, %551, %cst_233 {dimension_numbers = #tpu.dot_dimension_numbers<[1], [0], [0], [1], [0, 0, 1, 1], [], []>} : vector<8x24xf32>, vector<24x32xf32>, vector<8x32xf32> -> vector<8x32xf32>
    %575 = arith.addf %574, %572 : vector<8x32xf32>
    %cst_234 = arith.constant 0.000000e+00 : f32
    %576 = vector.broadcast %cst_234 : f32 to vector<8x32xf32>
    %577 = arith.cmpf oge, %575, %576 : vector<8x32xf32>
    %578 = vector.broadcast %437 : f32 to vector<8x32xf32>
    %579 = arith.mulf %578, %575 : vector<8x32xf32>
    %580 = arith.select %577, %575, %579 : vector<8x32xi1>, vector<8x32xf32>
    %581 = arith.addf %434, %580 : vector<8x32xf32>
    %c0_235 = arith.constant 0 : index
    %c0_236 = arith.constant 0 : index
    %c0_237 = arith.constant 0 : index
    %582 = vector.load %arg30[%c0_235, %c0_236, %c0_237] : memref<8x8x1xf32, #tpu.memory_space<vmem>>, vector<1x8x1xf32>
    %583 = vector.shape_cast %582 : vector<1x8x1xf32> to vector<8x1xf32>
    %584 = vector.extract_strided_slice %581 {offsets = [0, 0], sizes = [1, 32], strides = [1, 1]} : vector<8x32xf32> to vector<1x32xf32>
    %585 = vector.broadcast %583 : vector<8x1xf32> to vector<8x32xf32>
    %586 = vector.broadcast %584 : vector<1x32xf32> to vector<8x32xf32>
    %587 = arith.mulf %585, %586 : vector<8x32xf32>
    %c1_238 = arith.constant 1 : index
    %c0_239 = arith.constant 0 : index
    %c0_240 = arith.constant 0 : index
    %588 = vector.load %arg30[%c1_238, %c0_239, %c0_240] : memref<8x8x1xf32, #tpu.memory_space<vmem>>, vector<1x8x1xf32>
    %589 = vector.shape_cast %588 : vector<1x8x1xf32> to vector<8x1xf32>
    %590 = vector.extract_strided_slice %581 {offsets = [1, 0], sizes = [1, 32], strides = [1, 1]} : vector<8x32xf32> to vector<1x32xf32>
    %591 = vector.broadcast %589 : vector<8x1xf32> to vector<8x32xf32>
    %592 = vector.broadcast %590 : vector<1x32xf32> to vector<8x32xf32>
    %593 = arith.mulf %591, %592 : vector<8x32xf32>
    %594 = arith.addf %587, %593 : vector<8x32xf32>
    %c2_241 = arith.constant 2 : index
    %c0_242 = arith.constant 0 : index
    %c0_243 = arith.constant 0 : index
    %595 = vector.load %arg30[%c2_241, %c0_242, %c0_243] : memref<8x8x1xf32, #tpu.memory_space<vmem>>, vector<1x8x1xf32>
    %596 = vector.shape_cast %595 : vector<1x8x1xf32> to vector<8x1xf32>
    %597 = vector.extract_strided_slice %581 {offsets = [2, 0], sizes = [1, 32], strides = [1, 1]} : vector<8x32xf32> to vector<1x32xf32>
    %598 = vector.broadcast %596 : vector<8x1xf32> to vector<8x32xf32>
    %599 = vector.broadcast %597 : vector<1x32xf32> to vector<8x32xf32>
    %600 = arith.mulf %598, %599 : vector<8x32xf32>
    %601 = arith.addf %594, %600 : vector<8x32xf32>
    %c3_244 = arith.constant 3 : index
    %c0_245 = arith.constant 0 : index
    %c0_246 = arith.constant 0 : index
    %602 = vector.load %arg30[%c3_244, %c0_245, %c0_246] : memref<8x8x1xf32, #tpu.memory_space<vmem>>, vector<1x8x1xf32>
    %603 = vector.shape_cast %602 : vector<1x8x1xf32> to vector<8x1xf32>
    %604 = vector.extract_strided_slice %581 {offsets = [3, 0], sizes = [1, 32], strides = [1, 1]} : vector<8x32xf32> to vector<1x32xf32>
    %605 = vector.broadcast %603 : vector<8x1xf32> to vector<8x32xf32>
    %606 = vector.broadcast %604 : vector<1x32xf32> to vector<8x32xf32>
    %607 = arith.mulf %605, %606 : vector<8x32xf32>
    %608 = arith.addf %601, %607 : vector<8x32xf32>
    %c4_247 = arith.constant 4 : index
    %c0_248 = arith.constant 0 : index
    %c0_249 = arith.constant 0 : index
    %609 = vector.load %arg30[%c4_247, %c0_248, %c0_249] : memref<8x8x1xf32, #tpu.memory_space<vmem>>, vector<1x8x1xf32>
    %610 = vector.shape_cast %609 : vector<1x8x1xf32> to vector<8x1xf32>
    %611 = vector.extract_strided_slice %581 {offsets = [4, 0], sizes = [1, 32], strides = [1, 1]} : vector<8x32xf32> to vector<1x32xf32>
    %612 = vector.broadcast %610 : vector<8x1xf32> to vector<8x32xf32>
    %613 = vector.broadcast %611 : vector<1x32xf32> to vector<8x32xf32>
    %614 = arith.mulf %612, %613 : vector<8x32xf32>
    %615 = arith.addf %608, %614 : vector<8x32xf32>
    %c5_250 = arith.constant 5 : index
    %c0_251 = arith.constant 0 : index
    %c0_252 = arith.constant 0 : index
    %616 = vector.load %arg30[%c5_250, %c0_251, %c0_252] : memref<8x8x1xf32, #tpu.memory_space<vmem>>, vector<1x8x1xf32>
    %617 = vector.shape_cast %616 : vector<1x8x1xf32> to vector<8x1xf32>
    %618 = vector.extract_strided_slice %581 {offsets = [5, 0], sizes = [1, 32], strides = [1, 1]} : vector<8x32xf32> to vector<1x32xf32>
    %619 = vector.broadcast %617 : vector<8x1xf32> to vector<8x32xf32>
    %620 = vector.broadcast %618 : vector<1x32xf32> to vector<8x32xf32>
    %621 = arith.mulf %619, %620 : vector<8x32xf32>
    %622 = arith.addf %615, %621 : vector<8x32xf32>
    %c6_253 = arith.constant 6 : index
    %c0_254 = arith.constant 0 : index
    %c0_255 = arith.constant 0 : index
    %623 = vector.load %arg30[%c6_253, %c0_254, %c0_255] : memref<8x8x1xf32, #tpu.memory_space<vmem>>, vector<1x8x1xf32>
    %624 = vector.shape_cast %623 : vector<1x8x1xf32> to vector<8x1xf32>
    %625 = vector.extract_strided_slice %581 {offsets = [6, 0], sizes = [1, 32], strides = [1, 1]} : vector<8x32xf32> to vector<1x32xf32>
    %626 = vector.broadcast %624 : vector<8x1xf32> to vector<8x32xf32>
    %627 = vector.broadcast %625 : vector<1x32xf32> to vector<8x32xf32>
    %628 = arith.mulf %626, %627 : vector<8x32xf32>
    %629 = arith.addf %622, %628 : vector<8x32xf32>
    %c7_256 = arith.constant 7 : index
    %c0_257 = arith.constant 0 : index
    %c0_258 = arith.constant 0 : index
    %630 = vector.load %arg30[%c7_256, %c0_257, %c0_258] : memref<8x8x1xf32, #tpu.memory_space<vmem>>, vector<1x8x1xf32>
    %631 = vector.shape_cast %630 : vector<1x8x1xf32> to vector<8x1xf32>
    %632 = vector.extract_strided_slice %581 {offsets = [7, 0], sizes = [1, 32], strides = [1, 1]} : vector<8x32xf32> to vector<1x32xf32>
    %633 = vector.broadcast %631 : vector<8x1xf32> to vector<8x32xf32>
    %634 = vector.broadcast %632 : vector<1x32xf32> to vector<8x32xf32>
    %635 = arith.mulf %633, %634 : vector<8x32xf32>
    %636 = arith.addf %629, %635 : vector<8x32xf32>
    %c0_259 = arith.constant 0 : index
    %c0_260 = arith.constant 0 : index
    %637 = vector.load %arg31[%c0_259, %c0_260] : memref<8x1xf32, #tpu.memory_space<vmem>>, vector<8x1xf32>
    %638 = vector.broadcast %637 : vector<8x1xf32> to vector<8x32xf32>
    %639 = arith.addf %636, %638 : vector<8x32xf32>
    %cst_261 = arith.constant 0.000000e+00 : f32
    %640 = vector.broadcast %cst_261 : f32 to vector<8x32xf32>
    %641 = arith.cmpf oge, %639, %640 : vector<8x32xf32>
    %642 = vector.broadcast %438 : f32 to vector<8x32xf32>
    %643 = arith.mulf %642, %639 : vector<8x32xf32>
    %644 = arith.select %641, %639, %643 : vector<8x32xi1>, vector<8x32xf32>
    %c0_262 = arith.constant 0 : index
    %c0_263 = arith.constant 0 : index
    %645 = vector.load %arg32[%c0_262, %c0_263] : memref<8x1xf32, #tpu.memory_space<vmem>>, vector<8x1xf32>
    %c0_264 = arith.constant 0 : index
    %c0_265 = arith.constant 0 : index
    %646 = vector.load %arg33[%c0_264, %c0_265] : memref<8x1xf32, #tpu.memory_space<vmem>>, vector<8x1xf32>
    %647 = vector.extract_strided_slice %644 {offsets = [0, 0], sizes = [8, 16], strides = [1, 1]} : vector<8x32xf32> to vector<8x16xf32>
    %648 = vector.shape_cast %647 : vector<8x16xf32> to vector<1x8x16xf32>
    %cst_266 = arith.constant dense<0.000000e+00> : vector<1xf32>
    %649 = vector.multi_reduction <add>, %648, %cst_266 [1, 2] : vector<1x8x16xf32> to vector<1xf32>
    %650 = vector.shape_cast %649 : vector<1xf32> to vector<1x1x1xf32>
    %651 = vector.extract %650[0, 0, 0] : f32 from vector<1x1x1xf32>
    %652 = arith.mulf %647, %647 : vector<8x16xf32>
    %653 = vector.shape_cast %652 : vector<8x16xf32> to vector<1x8x16xf32>
    %cst_267 = arith.constant dense<0.000000e+00> : vector<1xf32>
    %654 = vector.multi_reduction <add>, %653, %cst_267 [1, 2] : vector<1x8x16xf32> to vector<1xf32>
    %655 = vector.shape_cast %654 : vector<1xf32> to vector<1x1x1xf32>
    %656 = vector.extract %655[0, 0, 0] : f32 from vector<1x1x1xf32>
    %cst_268 = arith.constant 7.812500e-03 : f32
    %657 = arith.mulf %651, %cst_268 : f32
    %cst_269 = arith.constant 7.812500e-03 : f32
    %658 = arith.mulf %656, %cst_269 : f32
    %659 = arith.mulf %657, %657 : f32
    %660 = arith.subf %658, %659 : f32
    %cst_270 = arith.constant 0.000000e+00 : f32
    %661 = arith.maximumf %660, %cst_270 : f32
    %662 = vector.broadcast %657 : f32 to vector<8x16xf32>
    %663 = arith.subf %647, %662 : vector<8x16xf32>
    %cst_271 = arith.constant 9.99999993E-9 : f32
    %664 = arith.addf %661, %cst_271 : f32
    %665 = math.rsqrt %664 : f32
    %666 = vector.broadcast %665 : f32 to vector<8x16xf32>
    %667 = arith.mulf %663, %666 : vector<8x16xf32>
    %668 = vector.extract_strided_slice %644 {offsets = [0, 16], sizes = [8, 16], strides = [1, 1]} : vector<8x32xf32> to vector<8x16xf32>
    %669 = vector.shape_cast %668 : vector<8x16xf32> to vector<1x8x16xf32>
    %cst_272 = arith.constant dense<0.000000e+00> : vector<1xf32>
    %670 = vector.multi_reduction <add>, %669, %cst_272 [1, 2] : vector<1x8x16xf32> to vector<1xf32>
    %671 = vector.shape_cast %670 : vector<1xf32> to vector<1x1x1xf32>
    %672 = vector.extract %671[0, 0, 0] : f32 from vector<1x1x1xf32>
    %673 = arith.mulf %668, %668 : vector<8x16xf32>
    %674 = vector.shape_cast %673 : vector<8x16xf32> to vector<1x8x16xf32>
    %cst_273 = arith.constant dense<0.000000e+00> : vector<1xf32>
    %675 = vector.multi_reduction <add>, %674, %cst_273 [1, 2] : vector<1x8x16xf32> to vector<1xf32>
    %676 = vector.shape_cast %675 : vector<1xf32> to vector<1x1x1xf32>
    %677 = vector.extract %676[0, 0, 0] : f32 from vector<1x1x1xf32>
    %cst_274 = arith.constant 7.812500e-03 : f32
    %678 = arith.mulf %672, %cst_274 : f32
    %cst_275 = arith.constant 7.812500e-03 : f32
    %679 = arith.mulf %677, %cst_275 : f32
    %680 = arith.mulf %678, %678 : f32
    %681 = arith.subf %679, %680 : f32
    %cst_276 = arith.constant 0.000000e+00 : f32
    %682 = arith.maximumf %681, %cst_276 : f32
    %683 = vector.broadcast %678 : f32 to vector<8x16xf32>
    %684 = arith.subf %668, %683 : vector<8x16xf32>
    %cst_277 = arith.constant 9.99999993E-9 : f32
    %685 = arith.addf %682, %cst_277 : f32
    %686 = math.rsqrt %685 : f32
    %687 = vector.broadcast %686 : f32 to vector<8x16xf32>
    %688 = arith.mulf %684, %687 : vector<8x16xf32>
    %689 = tpu.concatenate %667, %688 in 1 : vector<8x16xf32>, vector<8x16xf32> -> vector<8x32xf32>
    %690 = vector.broadcast %645 : vector<8x1xf32> to vector<8x32xf32>
    %691 = arith.mulf %689, %690 : vector<8x32xf32>
    %692 = vector.broadcast %646 : vector<8x1xf32> to vector<8x32xf32>
    %693 = arith.addf %691, %692 : vector<8x32xf32>
    %c0_278 = arith.constant 0 : index
    %c0_279 = arith.constant 0 : index
    %c0_280 = arith.constant 0 : index
    %694 = vector.load %arg34[%c0_278, %c0_279, %c0_280] : memref<3x8x1xf32, #tpu.memory_space<vmem>>, vector<1x8x1xf32>
    %695 = vector.shape_cast %694 : vector<1x8x1xf32> to vector<8x1xf32>
    %c-2_i32 = arith.constant -2 : i32
    %696 = vector.broadcast %c-2_i32 : i32 to vector<8x32xi32>
    %697 = arith.addi %21, %696 : vector<8x32xi32>
    %c0_i32_281 = arith.constant 0 : i32
    %698 = vector.broadcast %c0_i32_281 : i32 to vector<8x32xi32>
    %699 = arith.cmpi sge, %697, %698 : vector<8x32xi32>
    %c-2_i32_282 = arith.constant -2 : i32
    %700 = vector.broadcast %c-2_i32_282 : i32 to vector<8x32xi32>
    %701 = arith.addi %21, %700 : vector<8x32xi32>
    %c16_i32_283 = arith.constant 16 : i32
    %702 = vector.broadcast %c16_i32_283 : i32 to vector<8x32xi32>
    %703 = arith.cmpi slt, %701, %702 : vector<8x32xi32>
    %704 = arith.andi %699, %703 : vector<8x32xi1>
    %c2_i32 = arith.constant 2 : i32
    %705 = tpu.dynamic_rotate %693 by %c2_i32 dim 1 : vector<8x32xf32>, i32 -> vector<8x32xf32>
    %cst_284 = arith.constant 0.000000e+00 : f32
    %706 = vector.broadcast %cst_284 : f32 to vector<8x32xf32>
    %707 = arith.select %704, %705, %706 : vector<8x32xi1>, vector<8x32xf32>
    %708 = vector.broadcast %695 : vector<8x1xf32> to vector<8x32xf32>
    %709 = arith.mulf %708, %707 : vector<8x32xf32>
    %c1_285 = arith.constant 1 : index
    %c0_286 = arith.constant 0 : index
    %c0_287 = arith.constant 0 : index
    %710 = vector.load %arg34[%c1_285, %c0_286, %c0_287] : memref<3x8x1xf32, #tpu.memory_space<vmem>>, vector<1x8x1xf32>
    %711 = vector.shape_cast %710 : vector<1x8x1xf32> to vector<8x1xf32>
    %712 = vector.broadcast %711 : vector<8x1xf32> to vector<8x32xf32>
    %713 = arith.mulf %712, %693 : vector<8x32xf32>
    %714 = arith.addf %709, %713 : vector<8x32xf32>
    %c2_288 = arith.constant 2 : index
    %c0_289 = arith.constant 0 : index
    %c0_290 = arith.constant 0 : index
    %715 = vector.load %arg34[%c2_288, %c0_289, %c0_290] : memref<3x8x1xf32, #tpu.memory_space<vmem>>, vector<1x8x1xf32>
    %716 = vector.shape_cast %715 : vector<1x8x1xf32> to vector<8x1xf32>
    %c2_i32_291 = arith.constant 2 : i32
    %717 = vector.broadcast %c2_i32_291 : i32 to vector<8x32xi32>
    %718 = arith.addi %21, %717 : vector<8x32xi32>
    %c0_i32_292 = arith.constant 0 : i32
    %719 = vector.broadcast %c0_i32_292 : i32 to vector<8x32xi32>
    %720 = arith.cmpi sge, %718, %719 : vector<8x32xi32>
    %c2_i32_293 = arith.constant 2 : i32
    %721 = vector.broadcast %c2_i32_293 : i32 to vector<8x32xi32>
    %722 = arith.addi %21, %721 : vector<8x32xi32>
    %c16_i32_294 = arith.constant 16 : i32
    %723 = vector.broadcast %c16_i32_294 : i32 to vector<8x32xi32>
    %724 = arith.cmpi slt, %722, %723 : vector<8x32xi32>
    %725 = arith.andi %720, %724 : vector<8x32xi1>
    %c30_i32 = arith.constant 30 : i32
    %726 = tpu.dynamic_rotate %693 by %c30_i32 dim 1 : vector<8x32xf32>, i32 -> vector<8x32xf32>
    %cst_295 = arith.constant 0.000000e+00 : f32
    %727 = vector.broadcast %cst_295 : f32 to vector<8x32xf32>
    %728 = arith.select %725, %726, %727 : vector<8x32xi1>, vector<8x32xf32>
    %729 = vector.broadcast %716 : vector<8x1xf32> to vector<8x32xf32>
    %730 = arith.mulf %729, %728 : vector<8x32xf32>
    %731 = arith.addf %714, %730 : vector<8x32xf32>
    %c0_296 = arith.constant 0 : index
    %c0_297 = arith.constant 0 : index
    %732 = vector.load %arg35[%c0_296, %c0_297] : memref<8x1xf32, #tpu.memory_space<vmem>>, vector<8x1xf32>
    %733 = vector.broadcast %732 : vector<8x1xf32> to vector<8x32xf32>
    %734 = arith.addf %731, %733 : vector<8x32xf32>
    %cst_298 = arith.constant 0.000000e+00 : f32
    %735 = vector.broadcast %cst_298 : f32 to vector<8x32xf32>
    %736 = arith.cmpf oge, %734, %735 : vector<8x32xf32>
    %737 = vector.broadcast %439 : f32 to vector<8x32xf32>
    %738 = arith.mulf %737, %734 : vector<8x32xf32>
    %739 = arith.select %736, %734, %738 : vector<8x32xi1>, vector<8x32xf32>
    %c0_299 = arith.constant 0 : index
    %c0_300 = arith.constant 0 : index
    %740 = vector.load %arg36[%c0_299, %c0_300] : memref<8x1xf32, #tpu.memory_space<vmem>>, vector<8x1xf32>
    %c0_301 = arith.constant 0 : index
    %c0_302 = arith.constant 0 : index
    %741 = vector.load %arg37[%c0_301, %c0_302] : memref<8x1xf32, #tpu.memory_space<vmem>>, vector<8x1xf32>
    %742 = vector.extract_strided_slice %739 {offsets = [0, 0], sizes = [8, 16], strides = [1, 1]} : vector<8x32xf32> to vector<8x16xf32>
    %743 = vector.shape_cast %742 : vector<8x16xf32> to vector<1x8x16xf32>
    %cst_303 = arith.constant dense<0.000000e+00> : vector<1xf32>
    %744 = vector.multi_reduction <add>, %743, %cst_303 [1, 2] : vector<1x8x16xf32> to vector<1xf32>
    %745 = vector.shape_cast %744 : vector<1xf32> to vector<1x1x1xf32>
    %746 = vector.extract %745[0, 0, 0] : f32 from vector<1x1x1xf32>
    %747 = arith.mulf %742, %742 : vector<8x16xf32>
    %748 = vector.shape_cast %747 : vector<8x16xf32> to vector<1x8x16xf32>
    %cst_304 = arith.constant dense<0.000000e+00> : vector<1xf32>
    %749 = vector.multi_reduction <add>, %748, %cst_304 [1, 2] : vector<1x8x16xf32> to vector<1xf32>
    %750 = vector.shape_cast %749 : vector<1xf32> to vector<1x1x1xf32>
    %751 = vector.extract %750[0, 0, 0] : f32 from vector<1x1x1xf32>
    %cst_305 = arith.constant 7.812500e-03 : f32
    %752 = arith.mulf %746, %cst_305 : f32
    %cst_306 = arith.constant 7.812500e-03 : f32
    %753 = arith.mulf %751, %cst_306 : f32
    %754 = arith.mulf %752, %752 : f32
    %755 = arith.subf %753, %754 : f32
    %cst_307 = arith.constant 0.000000e+00 : f32
    %756 = arith.maximumf %755, %cst_307 : f32
    %757 = vector.broadcast %752 : f32 to vector<8x16xf32>
    %758 = arith.subf %742, %757 : vector<8x16xf32>
    %cst_308 = arith.constant 9.99999993E-9 : f32
    %759 = arith.addf %756, %cst_308 : f32
    %760 = math.rsqrt %759 : f32
    %761 = vector.broadcast %760 : f32 to vector<8x16xf32>
    %762 = arith.mulf %758, %761 : vector<8x16xf32>
    %763 = vector.extract_strided_slice %739 {offsets = [0, 16], sizes = [8, 16], strides = [1, 1]} : vector<8x32xf32> to vector<8x16xf32>
    %764 = vector.shape_cast %763 : vector<8x16xf32> to vector<1x8x16xf32>
    %cst_309 = arith.constant dense<0.000000e+00> : vector<1xf32>
    %765 = vector.multi_reduction <add>, %764, %cst_309 [1, 2] : vector<1x8x16xf32> to vector<1xf32>
    %766 = vector.shape_cast %765 : vector<1xf32> to vector<1x1x1xf32>
    %767 = vector.extract %766[0, 0, 0] : f32 from vector<1x1x1xf32>
    %768 = arith.mulf %763, %763 : vector<8x16xf32>
    %769 = vector.shape_cast %768 : vector<8x16xf32> to vector<1x8x16xf32>
    %cst_310 = arith.constant dense<0.000000e+00> : vector<1xf32>
    %770 = vector.multi_reduction <add>, %769, %cst_310 [1, 2] : vector<1x8x16xf32> to vector<1xf32>
    %771 = vector.shape_cast %770 : vector<1xf32> to vector<1x1x1xf32>
    %772 = vector.extract %771[0, 0, 0] : f32 from vector<1x1x1xf32>
    %cst_311 = arith.constant 7.812500e-03 : f32
    %773 = arith.mulf %767, %cst_311 : f32
    %cst_312 = arith.constant 7.812500e-03 : f32
    %774 = arith.mulf %772, %cst_312 : f32
    %775 = arith.mulf %773, %773 : f32
    %776 = arith.subf %774, %775 : f32
    %cst_313 = arith.constant 0.000000e+00 : f32
    %777 = arith.maximumf %776, %cst_313 : f32
    %778 = vector.broadcast %773 : f32 to vector<8x16xf32>
    %779 = arith.subf %763, %778 : vector<8x16xf32>
    %cst_314 = arith.constant 9.99999993E-9 : f32
    %780 = arith.addf %777, %cst_314 : f32
    %781 = math.rsqrt %780 : f32
    %782 = vector.broadcast %781 : f32 to vector<8x16xf32>
    %783 = arith.mulf %779, %782 : vector<8x16xf32>
    %784 = tpu.concatenate %762, %783 in 1 : vector<8x16xf32>, vector<8x16xf32> -> vector<8x32xf32>
    %785 = vector.broadcast %740 : vector<8x1xf32> to vector<8x32xf32>
    %786 = arith.mulf %784, %785 : vector<8x32xf32>
    %787 = vector.broadcast %741 : vector<8x1xf32> to vector<8x32xf32>
    %788 = arith.addf %786, %787 : vector<8x32xf32>
    %c0_315 = arith.constant 0 : index
    %c0_316 = arith.constant 0 : index
    %c0_317 = arith.constant 0 : index
    %789 = vector.load %arg38[%c0_315, %c0_316, %c0_317] : memref<8x8x1xf32, #tpu.memory_space<vmem>>, vector<1x8x1xf32>
    %790 = vector.shape_cast %789 : vector<1x8x1xf32> to vector<8x1xf32>
    %791 = vector.extract_strided_slice %788 {offsets = [0, 0], sizes = [1, 32], strides = [1, 1]} : vector<8x32xf32> to vector<1x32xf32>
    %792 = vector.broadcast %790 : vector<8x1xf32> to vector<8x32xf32>
    %793 = vector.broadcast %791 : vector<1x32xf32> to vector<8x32xf32>
    %794 = arith.mulf %792, %793 : vector<8x32xf32>
    %c1_318 = arith.constant 1 : index
    %c0_319 = arith.constant 0 : index
    %c0_320 = arith.constant 0 : index
    %795 = vector.load %arg38[%c1_318, %c0_319, %c0_320] : memref<8x8x1xf32, #tpu.memory_space<vmem>>, vector<1x8x1xf32>
    %796 = vector.shape_cast %795 : vector<1x8x1xf32> to vector<8x1xf32>
    %797 = vector.extract_strided_slice %788 {offsets = [1, 0], sizes = [1, 32], strides = [1, 1]} : vector<8x32xf32> to vector<1x32xf32>
    %798 = vector.broadcast %796 : vector<8x1xf32> to vector<8x32xf32>
    %799 = vector.broadcast %797 : vector<1x32xf32> to vector<8x32xf32>
    %800 = arith.mulf %798, %799 : vector<8x32xf32>
    %801 = arith.addf %794, %800 : vector<8x32xf32>
    %c2_321 = arith.constant 2 : index
    %c0_322 = arith.constant 0 : index
    %c0_323 = arith.constant 0 : index
    %802 = vector.load %arg38[%c2_321, %c0_322, %c0_323] : memref<8x8x1xf32, #tpu.memory_space<vmem>>, vector<1x8x1xf32>
    %803 = vector.shape_cast %802 : vector<1x8x1xf32> to vector<8x1xf32>
    %804 = vector.extract_strided_slice %788 {offsets = [2, 0], sizes = [1, 32], strides = [1, 1]} : vector<8x32xf32> to vector<1x32xf32>
    %805 = vector.broadcast %803 : vector<8x1xf32> to vector<8x32xf32>
    %806 = vector.broadcast %804 : vector<1x32xf32> to vector<8x32xf32>
    %807 = arith.mulf %805, %806 : vector<8x32xf32>
    %808 = arith.addf %801, %807 : vector<8x32xf32>
    %c3_324 = arith.constant 3 : index
    %c0_325 = arith.constant 0 : index
    %c0_326 = arith.constant 0 : index
    %809 = vector.load %arg38[%c3_324, %c0_325, %c0_326] : memref<8x8x1xf32, #tpu.memory_space<vmem>>, vector<1x8x1xf32>
    %810 = vector.shape_cast %809 : vector<1x8x1xf32> to vector<8x1xf32>
    %811 = vector.extract_strided_slice %788 {offsets = [3, 0], sizes = [1, 32], strides = [1, 1]} : vector<8x32xf32> to vector<1x32xf32>
    %812 = vector.broadcast %810 : vector<8x1xf32> to vector<8x32xf32>
    %813 = vector.broadcast %811 : vector<1x32xf32> to vector<8x32xf32>
    %814 = arith.mulf %812, %813 : vector<8x32xf32>
    %815 = arith.addf %808, %814 : vector<8x32xf32>
    %c4_327 = arith.constant 4 : index
    %c0_328 = arith.constant 0 : index
    %c0_329 = arith.constant 0 : index
    %816 = vector.load %arg38[%c4_327, %c0_328, %c0_329] : memref<8x8x1xf32, #tpu.memory_space<vmem>>, vector<1x8x1xf32>
    %817 = vector.shape_cast %816 : vector<1x8x1xf32> to vector<8x1xf32>
    %818 = vector.extract_strided_slice %788 {offsets = [4, 0], sizes = [1, 32], strides = [1, 1]} : vector<8x32xf32> to vector<1x32xf32>
    %819 = vector.broadcast %817 : vector<8x1xf32> to vector<8x32xf32>
    %820 = vector.broadcast %818 : vector<1x32xf32> to vector<8x32xf32>
    %821 = arith.mulf %819, %820 : vector<8x32xf32>
    %822 = arith.addf %815, %821 : vector<8x32xf32>
    %c5_330 = arith.constant 5 : index
    %c0_331 = arith.constant 0 : index
    %c0_332 = arith.constant 0 : index
    %823 = vector.load %arg38[%c5_330, %c0_331, %c0_332] : memref<8x8x1xf32, #tpu.memory_space<vmem>>, vector<1x8x1xf32>
    %824 = vector.shape_cast %823 : vector<1x8x1xf32> to vector<8x1xf32>
    %825 = vector.extract_strided_slice %788 {offsets = [5, 0], sizes = [1, 32], strides = [1, 1]} : vector<8x32xf32> to vector<1x32xf32>
    %826 = vector.broadcast %824 : vector<8x1xf32> to vector<8x32xf32>
    %827 = vector.broadcast %825 : vector<1x32xf32> to vector<8x32xf32>
    %828 = arith.mulf %826, %827 : vector<8x32xf32>
    %829 = arith.addf %822, %828 : vector<8x32xf32>
    %c6_333 = arith.constant 6 : index
    %c0_334 = arith.constant 0 : index
    %c0_335 = arith.constant 0 : index
    %830 = vector.load %arg38[%c6_333, %c0_334, %c0_335] : memref<8x8x1xf32, #tpu.memory_space<vmem>>, vector<1x8x1xf32>
    %831 = vector.shape_cast %830 : vector<1x8x1xf32> to vector<8x1xf32>
    %832 = vector.extract_strided_slice %788 {offsets = [6, 0], sizes = [1, 32], strides = [1, 1]} : vector<8x32xf32> to vector<1x32xf32>
    %833 = vector.broadcast %831 : vector<8x1xf32> to vector<8x32xf32>
    %834 = vector.broadcast %832 : vector<1x32xf32> to vector<8x32xf32>
    %835 = arith.mulf %833, %834 : vector<8x32xf32>
    %836 = arith.addf %829, %835 : vector<8x32xf32>
    %c7_336 = arith.constant 7 : index
    %c0_337 = arith.constant 0 : index
    %c0_338 = arith.constant 0 : index
    %837 = vector.load %arg38[%c7_336, %c0_337, %c0_338] : memref<8x8x1xf32, #tpu.memory_space<vmem>>, vector<1x8x1xf32>
    %838 = vector.shape_cast %837 : vector<1x8x1xf32> to vector<8x1xf32>
    %839 = vector.extract_strided_slice %788 {offsets = [7, 0], sizes = [1, 32], strides = [1, 1]} : vector<8x32xf32> to vector<1x32xf32>
    %840 = vector.broadcast %838 : vector<8x1xf32> to vector<8x32xf32>
    %841 = vector.broadcast %839 : vector<1x32xf32> to vector<8x32xf32>
    %842 = arith.mulf %840, %841 : vector<8x32xf32>
    %843 = arith.addf %836, %842 : vector<8x32xf32>
    %c0_339 = arith.constant 0 : index
    %c0_340 = arith.constant 0 : index
    %844 = vector.load %arg39[%c0_339, %c0_340] : memref<8x1xf32, #tpu.memory_space<vmem>>, vector<8x1xf32>
    %845 = vector.broadcast %844 : vector<8x1xf32> to vector<8x32xf32>
    %846 = arith.addf %843, %845 : vector<8x32xf32>
    %847 = arith.addf %581, %846 : vector<8x32xf32>
    %848 = vector.extract_strided_slice %847 {offsets = [0, 0], sizes = [8, 16], strides = [1, 1]} : vector<8x32xf32> to vector<8x16xf32>
    %c0_341 = arith.constant 0 : index
    %c0_342 = arith.constant 0 : index
    %c0_343 = arith.constant 0 : index
    %c0_344 = arith.constant 0 : index
    %849 = vector.load %arg41[%c0_341, %c0_342, %c0_343, %c0_344] : memref<1x2x8x16xf32, #tpu.memory_space<vmem>>, vector<1x1x8x16xf32>
    %850 = vector.shape_cast %849 : vector<1x1x8x16xf32> to vector<8x16xf32>
    %851 = vector.shape_cast %848 : vector<8x16xf32> to vector<1x1x8x16xf32>
    tpu.vector_store %arg41[%c0_341, %c0_342, %c0_343, %c0_344], %851 {strides = array<i32>} : memref<1x2x8x16xf32, #tpu.memory_space<vmem>>, vector<1x1x8x16xf32>,
    %852 = vector.extract_strided_slice %847 {offsets = [0, 16], sizes = [8, 16], strides = [1, 1]} : vector<8x32xf32> to vector<8x16xf32>
    %c0_345 = arith.constant 0 : index
    %c1_346 = arith.constant 1 : index
    %c0_347 = arith.constant 0 : index
    %c0_348 = arith.constant 0 : index
    %853 = vector.load %arg41[%c0_345, %c1_346, %c0_347, %c0_348] : memref<1x2x8x16xf32, #tpu.memory_space<vmem>>, vector<1x1x8x16xf32>
    %854 = vector.shape_cast %853 : vector<1x1x8x16xf32> to vector<8x16xf32>
    %855 = vector.shape_cast %852 : vector<8x16xf32> to vector<1x1x8x16xf32>
    tpu.vector_store %arg41[%c0_345, %c1_346, %c0_347, %c0_348], %855 {strides = array<i32>} : memref<1x2x8x16xf32, #tpu.memory_space<vmem>>, vector<1x1x8x16xf32>,
    return
  }
  func.func @transform_0(%arg0: i32) -> (i32, i32, i32, i32) {
    %c0_i32 = arith.constant 0 : i32
    %c0_i32_0 = arith.constant 0 : i32
    %c0_i32_1 = arith.constant 0 : i32
    %c0_i32_2 = arith.constant 0 : i32
    return %arg0, %c0_i32, %c0_i32_0, %c0_i32_1 : i32, i32, i32, i32
  }
  func.func @transform_1(%arg0: i32) -> (i32, i32) {
    %c0_i32 = arith.constant 0 : i32
    %c0_i32_0 = arith.constant 0 : i32
    %c0_i32_1 = arith.constant 0 : i32
    return %c0_i32, %c0_i32_0 : i32, i32
  }
  func.func @transform_2(%arg0: i32) -> (i32, i32) {
    %c0_i32 = arith.constant 0 : i32
    %c0_i32_0 = arith.constant 0 : i32
    %c0_i32_1 = arith.constant 0 : i32
    return %c0_i32, %c0_i32_0 : i32, i32
  }
  func.func @transform_3(%arg0: i32) -> (i32, i32, i32) {
    %c0_i32 = arith.constant 0 : i32
    %c0_i32_0 = arith.constant 0 : i32
    %c0_i32_1 = arith.constant 0 : i32
    %c0_i32_2 = arith.constant 0 : i32
    return %c0_i32, %c0_i32_0, %c0_i32_1 : i32, i32, i32
  }
  func.func @transform_4(%arg0: i32) -> (i32, i32) {
    %c0_i32 = arith.constant 0 : i32
    %c0_i32_0 = arith.constant 0 : i32
    %c0_i32_1 = arith.constant 0 : i32
    return %c0_i32, %c0_i32_0 : i32, i32
  }
  func.func @transform_5(%arg0: i32) -> (i32, i32) {
    %c0_i32 = arith.constant 0 : i32
    %c0_i32_0 = arith.constant 0 : i32
    %c0_i32_1 = arith.constant 0 : i32
    return %c0_i32, %c0_i32_0 : i32, i32
  }
  func.func @transform_6(%arg0: i32) -> (i32, i32) {
    %c0_i32 = arith.constant 0 : i32
    %c0_i32_0 = arith.constant 0 : i32
    %c0_i32_1 = arith.constant 0 : i32
    return %c0_i32, %c0_i32_0 : i32, i32
  }
  func.func @transform_7(%arg0: i32) -> (i32, i32) {
    %c0_i32 = arith.constant 0 : i32
    %c0_i32_0 = arith.constant 0 : i32
    %c0_i32_1 = arith.constant 0 : i32
    return %c0_i32, %c0_i32_0 : i32, i32
  }
  func.func @transform_8(%arg0: i32) -> (i32, i32) {
    %c0_i32 = arith.constant 0 : i32
    %c0_i32_0 = arith.constant 0 : i32
    %c0_i32_1 = arith.constant 0 : i32
    return %c0_i32, %c0_i32_0 : i32, i32
  }
  func.func @transform_9(%arg0: i32) -> (i32, i32) {
    %c0_i32 = arith.constant 0 : i32
    %c0_i32_0 = arith.constant 0 : i32
    %c0_i32_1 = arith.constant 0 : i32
    return %c0_i32, %c0_i32_0 : i32, i32
  }
  func.func @transform_10(%arg0: i32) -> (i32, i32, i32) {
    %c0_i32 = arith.constant 0 : i32
    %c0_i32_0 = arith.constant 0 : i32
    %c0_i32_1 = arith.constant 0 : i32
    %c0_i32_2 = arith.constant 0 : i32
    return %c0_i32, %c0_i32_0, %c0_i32_1 : i32, i32, i32
  }
  func.func @transform_11(%arg0: i32) -> (i32, i32) {
    %c0_i32 = arith.constant 0 : i32
    %c0_i32_0 = arith.constant 0 : i32
    %c0_i32_1 = arith.constant 0 : i32
    return %c0_i32, %c0_i32_0 : i32, i32
  }
  func.func @transform_12(%arg0: i32) -> (i32, i32) {
    %c0_i32 = arith.constant 0 : i32
    %c0_i32_0 = arith.constant 0 : i32
    %c0_i32_1 = arith.constant 0 : i32
    return %c0_i32, %c0_i32_0 : i32, i32
  }
  func.func @transform_13(%arg0: i32) -> (i32, i32) {
    %c0_i32 = arith.constant 0 : i32
    %c0_i32_0 = arith.constant 0 : i32
    %c0_i32_1 = arith.constant 0 : i32
    return %c0_i32, %c0_i32_0 : i32, i32
  }
  func.func @transform_14(%arg0: i32) -> (i32, i32, i32) {
    %c0_i32 = arith.constant 0 : i32
    %c0_i32_0 = arith.constant 0 : i32
    %c0_i32_1 = arith.constant 0 : i32
    %c0_i32_2 = arith.constant 0 : i32
    return %c0_i32, %c0_i32_0, %c0_i32_1 : i32, i32, i32
  }
  func.func @transform_15(%arg0: i32) -> (i32, i32) {
    %c0_i32 = arith.constant 0 : i32
    %c0_i32_0 = arith.constant 0 : i32
    %c0_i32_1 = arith.constant 0 : i32
    return %c0_i32, %c0_i32_0 : i32, i32
  }
  func.func @transform_16(%arg0: i32) -> (i32, i32) {
    %c0_i32 = arith.constant 0 : i32
    %c0_i32_0 = arith.constant 0 : i32
    %c0_i32_1 = arith.constant 0 : i32
    return %c0_i32, %c0_i32_0 : i32, i32
  }
  func.func @transform_17(%arg0: i32) -> (i32, i32) {
    %c0_i32 = arith.constant 0 : i32
    %c0_i32_0 = arith.constant 0 : i32
    %c0_i32_1 = arith.constant 0 : i32
    return %c0_i32, %c0_i32_0 : i32, i32
  }
  func.func @transform_18(%arg0: i32) -> (i32, i32, i32) {
    %c0_i32 = arith.constant 0 : i32
    %c0_i32_0 = arith.constant 0 : i32
    %c0_i32_1 = arith.constant 0 : i32
    %c0_i32_2 = arith.constant 0 : i32
    return %c0_i32, %c0_i32_0, %c0_i32_1 : i32, i32, i32
  }
  func.func @transform_19(%arg0: i32) -> (i32, i32) {
    %c0_i32 = arith.constant 0 : i32
    %c0_i32_0 = arith.constant 0 : i32
    %c0_i32_1 = arith.constant 0 : i32
    return %c0_i32, %c0_i32_0 : i32, i32
  }
  func.func @transform_20(%arg0: i32) -> (i32, i32) {
    %c0_i32 = arith.constant 0 : i32
    %c0_i32_0 = arith.constant 0 : i32
    %c0_i32_1 = arith.constant 0 : i32
    return %c0_i32, %c0_i32_0 : i32, i32
  }
  func.func @transform_21(%arg0: i32) -> (i32, i32) {
    %c0_i32 = arith.constant 0 : i32
    %c0_i32_0 = arith.constant 0 : i32
    %c0_i32_1 = arith.constant 0 : i32
    return %c0_i32, %c0_i32_0 : i32, i32
  }
  func.func @transform_22(%arg0: i32) -> (i32, i32, i32) {
    %c0_i32 = arith.constant 0 : i32
    %c0_i32_0 = arith.constant 0 : i32
    %c0_i32_1 = arith.constant 0 : i32
    %c0_i32_2 = arith.constant 0 : i32
    return %c0_i32, %c0_i32_0, %c0_i32_1 : i32, i32, i32
  }
  func.func @transform_23(%arg0: i32) -> (i32, i32) {
    %c0_i32 = arith.constant 0 : i32
    %c0_i32_0 = arith.constant 0 : i32
    %c0_i32_1 = arith.constant 0 : i32
    return %c0_i32, %c0_i32_0 : i32, i32
  }
  func.func @transform_24(%arg0: i32) -> (i32, i32) {
    %c0_i32 = arith.constant 0 : i32
    %c0_i32_0 = arith.constant 0 : i32
    %c0_i32_1 = arith.constant 0 : i32
    return %c0_i32, %c0_i32_0 : i32, i32
  }
  func.func @transform_25(%arg0: i32) -> (i32, i32) {
    %c0_i32 = arith.constant 0 : i32
    %c0_i32_0 = arith.constant 0 : i32
    %c0_i32_1 = arith.constant 0 : i32
    return %c0_i32, %c0_i32_0 : i32, i32
  }
  func.func @transform_26(%arg0: i32) -> (i32, i32) {
    %c0_i32 = arith.constant 0 : i32
    %c0_i32_0 = arith.constant 0 : i32
    %c0_i32_1 = arith.constant 0 : i32
    return %c0_i32, %c0_i32_0 : i32, i32
  }
  func.func @transform_27(%arg0: i32) -> (i32, i32) {
    %c0_i32 = arith.constant 0 : i32
    %c0_i32_0 = arith.constant 0 : i32
    %c0_i32_1 = arith.constant 0 : i32
    return %c0_i32, %c0_i32_0 : i32, i32
  }
  func.func @transform_28(%arg0: i32) -> (i32, i32) {
    %c0_i32 = arith.constant 0 : i32
    %c0_i32_0 = arith.constant 0 : i32
    %c0_i32_1 = arith.constant 0 : i32
    return %c0_i32, %c0_i32_0 : i32, i32
  }
  func.func @transform_29(%arg0: i32) -> (i32, i32, i32) {
    %c0_i32 = arith.constant 0 : i32
    %c0_i32_0 = arith.constant 0 : i32
    %c0_i32_1 = arith.constant 0 : i32
    %c0_i32_2 = arith.constant 0 : i32
    return %c0_i32, %c0_i32_0, %c0_i32_1 : i32, i32, i32
  }
  func.func @transform_30(%arg0: i32) -> (i32, i32) {
    %c0_i32 = arith.constant 0 : i32
    %c0_i32_0 = arith.constant 0 : i32
    %c0_i32_1 = arith.constant 0 : i32
    return %c0_i32, %c0_i32_0 : i32, i32
  }
  func.func @transform_31(%arg0: i32) -> (i32, i32) {
    %c0_i32 = arith.constant 0 : i32
    %c0_i32_0 = arith.constant 0 : i32
    %c0_i32_1 = arith.constant 0 : i32
    return %c0_i32, %c0_i32_0 : i32, i32
  }
  func.func @transform_32(%arg0: i32) -> (i32, i32) {
    %c0_i32 = arith.constant 0 : i32
    %c0_i32_0 = arith.constant 0 : i32
    %c0_i32_1 = arith.constant 0 : i32
    return %c0_i32, %c0_i32_0 : i32, i32
  }
  func.func @transform_33(%arg0: i32) -> (i32, i32, i32) {
    %c0_i32 = arith.constant 0 : i32
    %c0_i32_0 = arith.constant 0 : i32
    %c0_i32_1 = arith.constant 0 : i32
    %c0_i32_2 = arith.constant 0 : i32
    return %c0_i32, %c0_i32_0, %c0_i32_1 : i32, i32, i32
  }
  func.func @transform_34(%arg0: i32) -> (i32, i32) {
    %c0_i32 = arith.constant 0 : i32
    %c0_i32_0 = arith.constant 0 : i32
    %c0_i32_1 = arith.constant 0 : i32
    return %c0_i32, %c0_i32_0 : i32, i32
  }
  func.func @transform_35(%arg0: i32) -> (i32, i32) {
    %c0_i32 = arith.constant 0 : i32
    %c0_i32_0 = arith.constant 0 : i32
    %c0_i32_1 = arith.constant 0 : i32
    return %c0_i32, %c0_i32_0 : i32, i32
  }
  func.func @transform_36(%arg0: i32) -> (i32, i32) {
    %c0_i32 = arith.constant 0 : i32
    %c0_i32_0 = arith.constant 0 : i32
    %c0_i32_1 = arith.constant 0 : i32
    return %c0_i32, %c0_i32_0 : i32, i32
  }
  func.func @transform_37(%arg0: i32) -> (i32, i32, i32) {
    %c0_i32 = arith.constant 0 : i32
    %c0_i32_0 = arith.constant 0 : i32
    %c0_i32_1 = arith.constant 0 : i32
    %c0_i32_2 = arith.constant 0 : i32
    return %c0_i32, %c0_i32_0, %c0_i32_1 : i32, i32, i32
  }
  func.func @transform_38(%arg0: i32) -> (i32, i32) {
    %c0_i32 = arith.constant 0 : i32
    %c0_i32_0 = arith.constant 0 : i32
    %c0_i32_1 = arith.constant 0 : i32
    return %c0_i32, %c0_i32_0 : i32, i32
  }
  func.func @transform_39(%arg0: i32) -> i32 {
    %c0_i32 = arith.constant 0 : i32
    %c0_i32_0 = arith.constant 0 : i32
    return %c0_i32 : i32
  }
  func.func @transform_40(%arg0: i32) -> (i32, i32, i32, i32) {
    %c0_i32 = arith.constant 0 : i32
    %c0_i32_0 = arith.constant 0 : i32
    %c0_i32_1 = arith.constant 0 : i32
    %c0_i32_2 = arith.constant 0 : i32
    return %arg0, %c0_i32, %c0_i32_0, %c0_i32_1 : i32, i32, i32, i32
  }
}

</mosaic_0001>

<llo_original>
// kernel: tpu_custom_call.1
$region0: #{tpu_custom_call.1}
  #allocation0 [shape = 'u32[]', space=smem, size = 0x4, offset = 0x4, fixed_abs, tag = 'smem constant byte address 0x4 - core index']
  #allocation1 [shape = 'u32[144,128]{1,0:T(1,128)}', space=vmem, size = 0x12000, scoped, tag = 'internal scratch']
  %s0 = inlined_call_operand.smem [shape: u32[41], index: -1, kind: input, shape index: {}]
  %s1 = sld [smem:[%s0]]
  %s2 = scalar_lea.smem %s0, 1
  %s3 = sld [smem:[%s2]]
  %s4 = scalar_lea.smem %s0, 2
  %s5 = sld [smem:[%s4]]
  %s6 = scalar_lea.smem %s0, 3
  %s7 = sld [smem:[%s6]]
  %s8 = scalar_lea.smem %s0, 4
  %s9 = sld [smem:[%s8]]
  %s10 = scalar_lea.smem %s0, 5
  %s11 = sld [smem:[%s10]]
  %s12 = scalar_lea.smem %s0, 6
  %s13 = sld [smem:[%s12]]
  %s14 = scalar_lea.smem %s0, 7
  %s15 = sld [smem:[%s14]]
  %s16 = scalar_lea.smem %s0, 8
  %s17 = sld [smem:[%s16]]
  %s18 = scalar_lea.smem %s0, 9
  %s19 = sld [smem:[%s18]]
  %s20 = scalar_lea.smem %s0, 10
  %s21 = sld [smem:[%s20]]
  %s22 = scalar_lea.smem %s0, 11
  %s23 = sld [smem:[%s22]]
  %s24 = scalar_lea.smem %s0, 12
  %s25 = sld [smem:[%s24]]
  %s26 = scalar_lea.smem %s0, 13
  %s27 = sld [smem:[%s26]]
  %s28 = scalar_lea.smem %s0, 14
  %s29 = sld [smem:[%s28]]
  %s30 = scalar_lea.smem %s0, 15
  %s31 = sld [smem:[%s30]]
  %s32 = scalar_lea.smem %s0, 16
  %s33 = sld [smem:[%s32]]
  %s34 = scalar_lea.smem %s0, 17
  %s35 = sld [smem:[%s34]]
  %s36 = scalar_lea.smem %s0, 18
  %s37 = sld [smem:[%s36]]
  %s38 = scalar_lea.smem %s0, 19
  %s39 = sld [smem:[%s38]]
  %s40 = scalar_lea.smem %s0, 20
  %s41 = sld [smem:[%s40]]
  %s42 = scalar_lea.smem %s0, 21
  %s43 = sld [smem:[%s42]]
  %s44 = scalar_lea.smem %s0, 22
  %s45 = sld [smem:[%s44]]
  %s46 = scalar_lea.smem %s0, 23
  %s47 = sld [smem:[%s46]]
  %s48 = scalar_lea.smem %s0, 24
  %s49 = sld [smem:[%s48]]
  %s50 = scalar_lea.smem %s0, 25
  %s51 = sld [smem:[%s50]]
  %s52 = scalar_lea.smem %s0, 26
  %s53 = sld [smem:[%s52]]
  %s54 = scalar_lea.smem %s0, 27
  %s55 = sld [smem:[%s54]]
  %s56 = scalar_lea.smem %s0, 28
  %s57 = sld [smem:[%s56]]
  %s58 = scalar_lea.smem %s0, 29
  %s59 = sld [smem:[%s58]]
  %s60 = scalar_lea.smem %s0, 30
  %s61 = sld [smem:[%s60]]
  %s62 = scalar_lea.smem %s0, 31
  %s63 = sld [smem:[%s62]]
  %s64 = scalar_lea.smem %s0, 32
  %s65 = sld [smem:[%s64]]
  %s66 = scalar_lea.smem %s0, 33
  %s67 = sld [smem:[%s66]]
  %s68 = scalar_lea.smem %s0, 34
  %s69 = sld [smem:[%s68]]
  %s70 = scalar_lea.smem %s0, 35
  %s71 = sld [smem:[%s70]]
  %s72 = scalar_lea.smem %s0, 36
  %s73 = sld [smem:[%s72]]
  %s74 = scalar_lea.smem %s0, 37
  %s75 = sld [smem:[%s74]]
  %s76 = scalar_lea.smem %s0, 38
  %s77 = sld [smem:[%s76]]
  %s78 = scalar_lea.smem %s0, 39
  %s79 = sld [smem:[%s78]]
  %s80 = scalar_lea.smem %s0, 40
  %s81 = sld [smem:[%s80]]
  %s82 = sld [smem:[#allocation0]]
  $region197: #{tpu_custom_call.1} parent=0
    _
  %s84 = ssub.s32 1, %s82
  %s85 = scalar_select 0, %s84, %s82
  $region1: #{tpu_custom_call.1} parent=0
    #allocation2 [shape = 'u8[512]{0}', space=smem, size = 0x200, scoped, tag = 'input window, operand 39, single buffered']
    #allocation3 [shape = 's32[2]{0}', space=sflag, size = 0x8, scoped, tag = 'scoped memory for tpu_custom_call.1']
    #allocation4 [shape = 's32[2]{0}', space=sflag, size = 0x8, scoped, tag = 'scoped memory for tpu_custom_call.1']
    #allocation5 [shape = 'u8[16384]{0}', space=vmem, size = 0x4000, scoped, tag = 'output window, operand 0']
    %86 = vsyncpa [#allocation4], 0
    %87 = vsyncpa [#allocation3], 0
    %s88 = scalar_lea.sflag [#allocation3], 1
    %89 = vsyncpa %s88, 0
    loop: start=0, step=1, limit=4
    $region2: #{tpu_custom_call.1} parent=1 // loop_pre_header
      _
    $region3: #{tpu_custom_call.1} parent=1 // loop_header
      %s91 = sphi 0, %s95
      %p92 = scmp.ge.s32.totalorder %s91, 4
      %s101 = sphi 0, %s103
      %s104 = sphi 0, %s101
      %s105 = sphi 0, %s104
      %s121 = sphi 0, %s105
      %s125 = sphi 0, %s125
      %s127 = sphi 0, %s125
      %s128 = sphi 0, %s127
      %s142 = sphi 0, %s128
      %s146 = sphi 0, %s146
      %s148 = sphi 0, %s146
      %s149 = sphi 0, %s148
      %s163 = sphi 0, %s149
      %s167 = sphi 0, %s167
      %s169 = sphi 0, %s167
      %s170 = sphi 0, %s169
      %s184 = sphi 0, %s170
      %s188 = sphi 0, %s188
      %s190 = sphi 0, %s188
      %s191 = sphi 0, %s190
      %s205 = sphi 0, %s191
      %s209 = sphi 0, %s209
      %s211 = sphi 0, %s209
      %s212 = sphi 0, %s211
      %s226 = sphi 0, %s212
      %s230 = sphi 0, %s230
      %s232 = sphi 0, %s230
      %s233 = sphi 0, %s232
      %s247 = sphi 0, %s233
      %s251 = sphi 0, %s251
      %s253 = sphi 0, %s251
      %s254 = sphi 0, %s253
      %s268 = sphi 0, %s254
      %s272 = sphi 0, %s272
      %s274 = sphi 0, %s272
      %s275 = sphi 0, %s274
      %s289 = sphi 0, %s275
      %s293 = sphi 0, %s293
      %s295 = sphi 0, %s293
      %s296 = sphi 0, %s295
      %s310 = sphi 0, %s296
      %s314 = sphi 0, %s314
      %s316 = sphi 0, %s314
      %s317 = sphi 0, %s316
      %s331 = sphi 0, %s317
      %s335 = sphi 0, %s335
      %s337 = sphi 0, %s335
      %s338 = sphi 0, %s337
      %s352 = sphi 0, %s338
      %s356 = sphi 0, %s356
      %s358 = sphi 0, %s356
      %s359 = sphi 0, %s358
      %s373 = sphi 0, %s359
      %s377 = sphi 0, %s377
      %s379 = sphi 0, %s377
      %s380 = sphi 0, %s379
      %s394 = sphi 0, %s380
      %s398 = sphi 0, %s398
      %s400 = sphi 0, %s398
      %s401 = sphi 0, %s400
      %s415 = sphi 0, %s401
      %s419 = sphi 0, %s419
      %s421 = sphi 0, %s419
      %s422 = sphi 0, %s421
      %s436 = sphi 0, %s422
      %s440 = sphi 0, %s440
      %s442 = sphi 0, %s440
      %s443 = sphi 0, %s442
      %s457 = sphi 0, %s443
      %s461 = sphi 0, %s461
      %s463 = sphi 0, %s461
      %s464 = sphi 0, %s463
      %s478 = sphi 0, %s464
      %s482 = sphi 0, %s482
      %s484 = sphi 0, %s482
      %s485 = sphi 0, %s484
      %s499 = sphi 0, %s485
      %s503 = sphi 0, %s503
      %s505 = sphi 0, %s503
      %s506 = sphi 0, %s505
      %s520 = sphi 0, %s506
      %s524 = sphi 0, %s524
      %s526 = sphi 0, %s524
      %s527 = sphi 0, %s526
      %s541 = sphi 0, %s527
      %s545 = sphi 0, %s545
      %s547 = sphi 0, %s545
      %s548 = sphi 0, %s547
      %s562 = sphi 0, %s548
      %s566 = sphi 0, %s566
      %s568 = sphi 0, %s566
      %s569 = sphi 0, %s568
      %s583 = sphi 0, %s569
      %s587 = sphi 0, %s587
      %s589 = sphi 0, %s587
      %s590 = sphi 0, %s589
      %s604 = sphi 0, %s590
      %s608 = sphi 0, %s608
      %s610 = sphi 0, %s608
      %s611 = sphi 0, %s610
      %s625 = sphi 0, %s611
      %s629 = sphi 0, %s629
      %s631 = sphi 0, %s629
      %s632 = sphi 0, %s631
      %s646 = sphi 0, %s632
      %s650 = sphi 0, %s650
      %s652 = sphi 0, %s650
      %s653 = sphi 0, %s652
      %s667 = sphi 0, %s653
      %s671 = sphi 0, %s671
      %s673 = sphi 0, %s671
      %s674 = sphi 0, %s673
      %s688 = sphi 0, %s674
      %s692 = sphi 0, %s692
      %s694 = sphi 0, %s692
      %s695 = sphi 0, %s694
      %s709 = sphi 0, %s695
      %s713 = sphi 0, %s713
      %s715 = sphi 0, %s713
      %s716 = sphi 0, %s715
      %s730 = sphi 0, %s716
      %s734 = sphi 0, %s734
      %s736 = sphi 0, %s734
      %s737 = sphi 0, %s736
      %s751 = sphi 0, %s737
      %s755 = sphi 0, %s755
      %s757 = sphi 0, %s755
      %s758 = sphi 0, %s757
      %s772 = sphi 0, %s758
      %s776 = sphi 0, %s776
      %s778 = sphi 0, %s776
      %s779 = sphi 0, %s778
      %s793 = sphi 0, %s779
      %s797 = sphi 0, %s797
      %s799 = sphi 0, %s797
      %s800 = sphi 0, %s799
      %s814 = sphi 0, %s800
      %s818 = sphi 0, %s818
      %s820 = sphi 0, %s818
      %s821 = sphi 0, %s820
      %s835 = sphi 0, %s821
      %s839 = sphi 0, %s839
      %s841 = sphi 0, %s839
      %s842 = sphi 0, %s841
      %s856 = sphi 0, %s842
      %s860 = sphi 0, %s860
      %s862 = sphi 0, %s860
      %s863 = sphi 0, %s862
      %s877 = sphi 0, %s863
      %s881 = sphi 0, %s881
      %s883 = sphi 0, %s881
      %s884 = sphi 0, %s883
      %s898 = sphi 0, %s884
      %s902 = sphi 0, %s902
      %s904 = sphi 0, %s902
      %s905 = sphi 0, %s904
      %s919 = sphi 0, %s905
      %s923 = sphi 0, %s923
      %s925 = sphi 0, %s923
      %s926 = sphi 0, %s925
      %s940 = sphi 0, %s926
      %s946 = sphi 0, %s948
      %s949 = sphi 0, %s946
      %s950 = sphi 0, %s949
      %s966 = sphi 0, %s950
    $region4: #{tpu_custom_call.1} parent=1 // loop_header_branch
      %94 = sbr.rel (%p92) target = $region8
    $region5: #{tpu_custom_call.1} parent=1 // loop_body
      %s96 = ssub.s32 %s91, 1
      %s97 = ssub.s32 %s91, 2
      %s98 = sadd.s32 %s91, 1
      %s99 = ssub.s32 %s91, %s98
      %p100 = scmp.eq.s32.totalorder %s99, 0
      %s102 = sadd.s32 %s101, 1
      %s103 = scalar_select %p100, %s101, %s102
      %p106 = pneg %p100
      %p107 = scmp.eq.s32.totalorder %s91, 1
      %p108 = por %p106, %p107
      %p109 = scmp.ne.s32.totalorder %s101, %s104
      %p110 = scmp.eq.s32.totalorder %s91, 0
      %p111 = por %p109, %p110
      %p112 = scmp.ne.s32.totalorder %s101, %s104
      %p113 = scmp.eq.s32.totalorder %s96, 1
      %p114 = por %p112, %p113
      %p115 = scmp.ne.s32.totalorder %s104, %s105
      %p116 = scmp.eq.s32.totalorder %s96, 0
      %p117 = por %p115, %p116
      %p118 = scmp.ne.s32.totalorder %s104, %s105
      %p119 = scmp.eq.s32.totalorder %s97, 1
      %p120 = por %p118, %p119
      %p122 = scmp.ne.s32.totalorder %s105, %s121
      %p123 = scmp.eq.s32.totalorder %s97, 0
      %p124 = por %p122, %p123
      %s126 = sadd.s32 %s125, 1
      %p129 = scmp.eq.s32.totalorder %s91, 1
      %p130 = scmp.ne.s32.totalorder %s125, %s127
      %p131 = scmp.eq.s32.totalorder %s91, 0
      %p132 = por %p130, %p131
      %p133 = scmp.ne.s32.totalorder %s125, %s127
      %p134 = scmp.eq.s32.totalorder %s96, 1
      %p135 = por %p133, %p134
      %p136 = scmp.ne.s32.totalorder %s127, %s128
      %p137 = scmp.eq.s32.totalorder %s96, 0
      %p138 = por %p136, %p137
      %p139 = scmp.ne.s32.totalorder %s127, %s128
      %p140 = scmp.eq.s32.totalorder %s97, 1
      %p141 = por %p139, %p140
      %p143 = scmp.ne.s32.totalorder %s128, %s142
      %p144 = scmp.eq.s32.totalorder %s97, 0
      %p145 = por %p143, %p144
      %s147 = sadd.s32 %s146, 1
      %p150 = scmp.eq.s32.totalorder %s91, 1
      %p151 = scmp.ne.s32.totalorder %s146, %s148
      %p152 = scmp.eq.s32.totalorder %s91, 0
      %p153 = por %p151, %p152
      %p154 = scmp.ne.s32.totalorder %s146, %s148
      %p155 = scmp.eq.s32.totalorder %s96, 1
      %p156 = por %p154, %p155
      %p157 = scmp.ne.s32.totalorder %s148, %s149
      %p158 = scmp.eq.s32.totalorder %s96, 0
      %p159 = por %p157, %p158
      %p160 = scmp.ne.s32.totalorder %s148, %s149
      %p161 = scmp.eq.s32.totalorder %s97, 1
      %p162 = por %p160, %p161
      %p164 = scmp.ne.s32.totalorder %s149, %s163
      %p165 = scmp.eq.s32.totalorder %s97, 0
      %p166 = por %p164, %p165
      %s168 = sadd.s32 %s167, 1
      %p171 = scmp.eq.s32.totalorder %s91, 1
      %p172 = scmp.ne.s32.totalorder %s167, %s169
      %p173 = scmp.eq.s32.totalorder %s91, 0
      %p174 = por %p172, %p173
      %p175 = scmp.ne.s32.totalorder %s167, %s169
      %p176 = scmp.eq.s32.totalorder %s96, 1
      %p177 = por %p175, %p176
      %p178 = scmp.ne.s32.totalorder %s169, %s170
      %p179 = scmp.eq.s32.totalorder %s96, 0
      %p180 = por %p178, %p179
      %p181 = scmp.ne.s32.totalorder %s169, %s170
      %p182 = scmp.eq.s32.totalorder %s97, 1
      %p183 = por %p181, %p182
      %p185 = scmp.ne.s32.totalorder %s170, %s184
      %p186 = scmp.eq.s32.totalorder %s97, 0
      %p187 = por %p185, %p186
      %s189 = sadd.s32 %s188, 1
      %p192 = scmp.eq.s32.totalorder %s91, 1
      %p193 = scmp.ne.s32.totalorder %s188, %s190
      %p194 = scmp.eq.s32.totalorder %s91, 0
      %p195 = por %p193, %p194
      %p196 = scmp.ne.s32.totalorder %s188, %s190
      %p197 = scmp.eq.s32.totalorder %s96, 1
      %p198 = por %p196, %p197
      %p199 = scmp.ne.s32.totalorder %s190, %s191
      %p200 = scmp.eq.s32.totalorder %s96, 0
      %p201 = por %p199, %p200
      %p202 = scmp.ne.s32.totalorder %s190, %s191
      %p203 = scmp.eq.s32.totalorder %s97, 1
      %p204 = por %p202, %p203
      %p206 = scmp.ne.s32.totalorder %s191, %s205
      %p207 = scmp.eq.s32.totalorder %s97, 0
      %p208 = por %p206, %p207
      %s210 = sadd.s32 %s209, 1
      %p213 = scmp.eq.s32.totalorder %s91, 1
      %p214 = scmp.ne.s32.totalorder %s209, %s211
      %p215 = scmp.eq.s32.totalorder %s91, 0
      %p216 = por %p214, %p215
      %p217 = scmp.ne.s32.totalorder %s209, %s211
      %p218 = scmp.eq.s32.totalorder %s96, 1
      %p219 = por %p217, %p218
      %p220 = scmp.ne.s32.totalorder %s211, %s212
      %p221 = scmp.eq.s32.totalorder %s96, 0
      %p222 = por %p220, %p221
      %p223 = scmp.ne.s32.totalorder %s211, %s212
      %p224 = scmp.eq.s32.totalorder %s97, 1
      %p225 = por %p223, %p224
      %p227 = scmp.ne.s32.totalorder %s212, %s226
      %p228 = scmp.eq.s32.totalorder %s97, 0
      %p229 = por %p227, %p228
      %s231 = sadd.s32 %s230, 1
      %p234 = scmp.eq.s32.totalorder %s91, 1
      %p235 = scmp.ne.s32.totalorder %s230, %s232
      %p236 = scmp.eq.s32.totalorder %s91, 0
      %p237 = por %p235, %p236
      %p238 = scmp.ne.s32.totalorder %s230, %s232
      %p239 = scmp.eq.s32.totalorder %s96, 1
      %p240 = por %p238, %p239
      %p241 = scmp.ne.s32.totalorder %s232, %s233
      %p242 = scmp.eq.s32.totalorder %s96, 0
      %p243 = por %p241, %p242
      %p244 = scmp.ne.s32.totalorder %s232, %s233
      %p245 = scmp.eq.s32.totalorder %s97, 1
      %p246 = por %p244, %p245
      %p248 = scmp.ne.s32.totalorder %s233, %s247
      %p249 = scmp.eq.s32.totalorder %s97, 0
      %p250 = por %p248, %p249
      %s252 = sadd.s32 %s251, 1
      %p255 = scmp.eq.s32.totalorder %s91, 1
      %p256 = scmp.ne.s32.totalorder %s251, %s253
      %p257 = scmp.eq.s32.totalorder %s91, 0
      %p258 = por %p256, %p257
      %p259 = scmp.ne.s32.totalorder %s251, %s253
      %p260 = scmp.eq.s32.totalorder %s96, 1
      %p261 = por %p259, %p260
      %p262 = scmp.ne.s32.totalorder %s253, %s254
      %p263 = scmp.eq.s32.totalorder %s96, 0
      %p264 = por %p262, %p263
      %p265 = scmp.ne.s32.totalorder %s253, %s254
      %p266 = scmp.eq.s32.totalorder %s97, 1
      %p267 = por %p265, %p266
      %p269 = scmp.ne.s32.totalorder %s254, %s268
      %p270 = scmp.eq.s32.totalorder %s97, 0
      %p271 = por %p269, %p270
      %s273 = sadd.s32 %s272, 1
      %p276 = scmp.eq.s32.totalorder %s91, 1
      %p277 = scmp.ne.s32.totalorder %s272, %s274
      %p278 = scmp.eq.s32.totalorder %s91, 0
      %p279 = por %p277, %p278
      %p280 = scmp.ne.s32.totalorder %s272, %s274
      %p281 = scmp.eq.s32.totalorder %s96, 1
      %p282 = por %p280, %p281
      %p283 = scmp.ne.s32.totalorder %s274, %s275
      %p284 = scmp.eq.s32.totalorder %s96, 0
      %p285 = por %p283, %p284
      %p286 = scmp.ne.s32.totalorder %s274, %s275
      %p287 = scmp.eq.s32.totalorder %s97, 1
      %p288 = por %p286, %p287
      %p290 = scmp.ne.s32.totalorder %s275, %s289
      %p291 = scmp.eq.s32.totalorder %s97, 0
      %p292 = por %p290, %p291
      %s294 = sadd.s32 %s293, 1
      %p297 = scmp.eq.s32.totalorder %s91, 1
      %p298 = scmp.ne.s32.totalorder %s293, %s295
      %p299 = scmp.eq.s32.totalorder %s91, 0
      %p300 = por %p298, %p299
      %p301 = scmp.ne.s32.totalorder %s293, %s295
      %p302 = scmp.eq.s32.totalorder %s96, 1
      %p303 = por %p301, %p302
      %p304 = scmp.ne.s32.totalorder %s295, %s296
      %p305 = scmp.eq.s32.totalorder %s96, 0
      %p306 = por %p304, %p305
      %p307 = scmp.ne.s32.totalorder %s295, %s296
      %p308 = scmp.eq.s32.totalorder %s97, 1
      %p309 = por %p307, %p308
      %p311 = scmp.ne.s32.totalorder %s296, %s310
      %p312 = scmp.eq.s32.totalorder %s97, 0
      %p313 = por %p311, %p312
      %s315 = sadd.s32 %s314, 1
      %p318 = scmp.eq.s32.totalorder %s91, 1
      %p319 = scmp.ne.s32.totalorder %s314, %s316
      %p320 = scmp.eq.s32.totalorder %s91, 0
      %p321 = por %p319, %p320
      %p322 = scmp.ne.s32.totalorder %s314, %s316
      %p323 = scmp.eq.s32.totalorder %s96, 1
      %p324 = por %p322, %p323
      %p325 = scmp.ne.s32.totalorder %s316, %s317
      %p326 = scmp.eq.s32.totalorder %s96, 0
      %p327 = por %p325, %p326
      %p328 = scmp.ne.s32.totalorder %s316, %s317
      %p329 = scmp.eq.s32.totalorder %s97, 1
      %p330 = por %p328, %p329
      %p332 = scmp.ne.s32.totalorder %s317, %s331
      %p333 = scmp.eq.s32.totalorder %s97, 0
      %p334 = por %p332, %p333
      %s336 = sadd.s32 %s335, 1
      %p339 = scmp.eq.s32.totalorder %s91, 1
      %p340 = scmp.ne.s32.totalorder %s335, %s337
      %p341 = scmp.eq.s32.totalorder %s91, 0
      %p342 = por %p340, %p341
      %p343 = scmp.ne.s32.totalorder %s335, %s337
      %p344 = scmp.eq.s32.totalorder %s96, 1
      %p345 = por %p343, %p344
      %p346 = scmp.ne.s32.totalorder %s337, %s338
      %p347 = scmp.eq.s32.totalorder %s96, 0
      %p348 = por %p346, %p347
      %p349 = scmp.ne.s32.totalorder %s337, %s338
      %p350 = scmp.eq.s32.totalorder %s97, 1
      %p351 = por %p349, %p350
      %p353 = scmp.ne.s32.totalorder %s338, %s352
      %p354 = scmp.eq.s32.totalorder %s97, 0
      %p355 = por %p353, %p354
      %s357 = sadd.s32 %s356, 1
      %p360 = scmp.eq.s32.totalorder %s91, 1
      %p361 = scmp.ne.s32.totalorder %s356, %s358
      %p362 = scmp.eq.s32.totalorder %s91, 0
      %p363 = por %p361, %p362
      %p364 = scmp.ne.s32.totalorder %s356, %s358
      %p365 = scmp.eq.s32.totalorder %s96, 1
      %p366 = por %p364, %p365
      %p367 = scmp.ne.s32.totalorder %s358, %s359
      %p368 = scmp.eq.s32.totalorder %s96, 0
      %p369 = por %p367, %p368
      %p370 = scmp.ne.s32.totalorder %s358, %s359
      %p371 = scmp.eq.s32.totalorder %s97, 1
      %p372 = por %p370, %p371
      %p374 = scmp.ne.s32.totalorder %s359, %s373
      %p375 = scmp.eq.s32.totalorder %s97, 0
      %p376 = por %p374, %p375
      %s378 = sadd.s32 %s377, 1
      %p381 = scmp.eq.s32.totalorder %s91, 1
      %p382 = scmp.ne.s32.totalorder %s377, %s379
      %p383 = scmp.eq.s32.totalorder %s91, 0
      %p384 = por %p382, %p383
      %p385 = scmp.ne.s32.totalorder %s377, %s379
      %p386 = scmp.eq.s32.totalorder %s96, 1
      %p387 = por %p385, %p386
      %p388 = scmp.ne.s32.totalorder %s379, %s380
      %p389 = scmp.eq.s32.totalorder %s96, 0
      %p390 = por %p388, %p389
      %p391 = scmp.ne.s32.totalorder %s379, %s380
      %p392 = scmp.eq.s32.totalorder %s97, 1
      %p393 = por %p391, %p392
      %p395 = scmp.ne.s32.totalorder %s380, %s394
      %p396 = scmp.eq.s32.totalorder %s97, 0
      %p397 = por %p395, %p396
      %s399 = sadd.s32 %s398, 1
      %p402 = scmp.eq.s32.totalorder %s91, 1
      %p403 = scmp.ne.s32.totalorder %s398, %s400
      %p404 = scmp.eq.s32.totalorder %s91, 0
      %p405 = por %p403, %p404
      %p406 = scmp.ne.s32.totalorder %s398, %s400
      %p407 = scmp.eq.s32.totalorder %s96, 1
      %p408 = por %p406, %p407
      %p409 = scmp.ne.s32.totalorder %s400, %s401
      %p410 = scmp.eq.s32.totalorder %s96, 0
      %p411 = por %p409, %p410
      %p412 = scmp.ne.s32.totalorder %s400, %s401
      %p413 = scmp.eq.s32.totalorder %s97, 1
      %p414 = por %p412, %p413
      %p416 = scmp.ne.s32.totalorder %s401, %s415
      %p417 = scmp.eq.s32.totalorder %s97, 0
      %p418 = por %p416, %p417
      %s420 = sadd.s32 %s419, 1
      %p423 = scmp.eq.s32.totalorder %s91, 1
      %p424 = scmp.ne.s32.totalorder %s419, %s421
      %p425 = scmp.eq.s32.totalorder %s91, 0
      %p426 = por %p424, %p425
      %p427 = scmp.ne.s32.totalorder %s419, %s421
      %p428 = scmp.eq.s32.totalorder %s96, 1
      %p429 = por %p427, %p428
      %p430 = scmp.ne.s32.totalorder %s421, %s422
      %p431 = scmp.eq.s32.totalorder %s96, 0
      %p432 = por %p430, %p431
      %p433 = scmp.ne.s32.totalorder %s421, %s422
      %p434 = scmp.eq.s32.totalorder %s97, 1
      %p435 = por %p433, %p434
      %p437 = scmp.ne.s32.totalorder %s422, %s436
      %p438 = scmp.eq.s32.totalorder %s97, 0
      %p439 = por %p437, %p438
      %s441 = sadd.s32 %s440, 1
      %p444 = scmp.eq.s32.totalorder %s91, 1
      %p445 = scmp.ne.s32.totalorder %s440, %s442
      %p446 = scmp.eq.s32.totalorder %s91, 0
      %p447 = por %p445, %p446
      %p448 = scmp.ne.s32.totalorder %s440, %s442
      %p449 = scmp.eq.s32.totalorder %s96, 1
      %p450 = por %p448, %p449
      %p451 = scmp.ne.s32.totalorder %s442, %s443
      %p452 = scmp.eq.s32.totalorder %s96, 0
      %p453 = por %p451, %p452
      %p454 = scmp.ne.s32.totalorder %s442, %s443
      %p455 = scmp.eq.s32.totalorder %s97, 1
      %p456 = por %p454, %p455
      %p458 = scmp.ne.s32.totalorder %s443, %s457
      %p459 = scmp.eq.s32.totalorder %s97, 0
      %p460 = por %p458, %p459
      %s462 = sadd.s32 %s461, 1
      %p465 = scmp.eq.s32.totalorder %s91, 1
      %p466 = scmp.ne.s32.totalorder %s461, %s463
      %p467 = scmp.eq.s32.totalorder %s91, 0
      %p468 = por %p466, %p467
      %p469 = scmp.ne.s32.totalorder %s461, %s463
      %p470 = scmp.eq.s32.totalorder %s96, 1
      %p471 = por %p469, %p470
      %p472 = scmp.ne.s32.totalorder %s463, %s464
      %p473 = scmp.eq.s32.totalorder %s96, 0
      %p474 = por %p472, %p473
      %p475 = scmp.ne.s32.totalorder %s463, %s464
      %p476 = scmp.eq.s32.totalorder %s97, 1
      %p477 = por %p475, %p476
      %p479 = scmp.ne.s32.totalorder %s464, %s478
      %p480 = scmp.eq.s32.totalorder %s97, 0
      %p481 = por %p479, %p480
      %s483 = sadd.s32 %s482, 1
      %p486 = scmp.eq.s32.totalorder %s91, 1
      %p487 = scmp.ne.s32.totalorder %s482, %s484
      %p488 = scmp.eq.s32.totalorder %s91, 0
      %p489 = por %p487, %p488
      %p490 = scmp.ne.s32.totalorder %s482, %s484
      %p491 = scmp.eq.s32.totalorder %s96, 1
      %p492 = por %p490, %p491
      %p493 = scmp.ne.s32.totalorder %s484, %s485
      %p494 = scmp.eq.s32.totalorder %s96, 0
      %p495 = por %p493, %p494
      %p496 = scmp.ne.s32.totalorder %s484, %s485
      %p497 = scmp.eq.s32.totalorder %s97, 1
      %p498 = por %p496, %p497
      %p500 = scmp.ne.s32.totalorder %s485, %s499
      %p501 = scmp.eq.s32.totalorder %s97, 0
      %p502 = por %p500, %p501
      %s504 = sadd.s32 %s503, 1
      %p507 = scmp.eq.s32.totalorder %s91, 1
      %p508 = scmp.ne.s32.totalorder %s503, %s505
      %p509 = scmp.eq.s32.totalorder %s91, 0
      %p510 = por %p508, %p509
      %p511 = scmp.ne.s32.totalorder %s503, %s505
      %p512 = scmp.eq.s32.totalorder %s96, 1
      %p513 = por %p511, %p512
      %p514 = scmp.ne.s32.totalorder %s505, %s506
      %p515 = scmp.eq.s32.totalorder %s96, 0
      %p516 = por %p514, %p515
      %p517 = scmp.ne.s32.totalorder %s505, %s506
      %p518 = scmp.eq.s32.totalorder %s97, 1
      %p519 = por %p517, %p518
      %p521 = scmp.ne.s32.totalorder %s506, %s520
      %p522 = scmp.eq.s32.totalorder %s97, 0
      %p523 = por %p521, %p522
      %s525 = sadd.s32 %s524, 1
      %p528 = scmp.eq.s32.totalorder %s91, 1
      %p529 = scmp.ne.s32.totalorder %s524, %s526
      %p530 = scmp.eq.s32.totalorder %s91, 0
      %p531 = por %p529, %p530
      %p532 = scmp.ne.s32.totalorder %s524, %s526
      %p533 = scmp.eq.s32.totalorder %s96, 1
      %p534 = por %p532, %p533
      %p535 = scmp.ne.s32.totalorder %s526, %s527
      %p536 = scmp.eq.s32.totalorder %s96, 0
      %p537 = por %p535, %p536
      %p538 = scmp.ne.s32.totalorder %s526, %s527
      %p539 = scmp.eq.s32.totalorder %s97, 1
      %p540 = por %p538, %p539
      %p542 = scmp.ne.s32.totalorder %s527, %s541
      %p543 = scmp.eq.s32.totalorder %s97, 0
      %p544 = por %p542, %p543
      %s546 = sadd.s32 %s545, 1
      %p549 = scmp.eq.s32.totalorder %s91, 1
      %p550 = scmp.ne.s32.totalorder %s545, %s547
      %p551 = scmp.eq.s32.totalorder %s91, 0
      %p552 = por %p550, %p551
      %p553 = scmp.ne.s32.totalorder %s545, %s547
      %p554 = scmp.eq.s32.totalorder %s96, 1
      %p555 = por %p553, %p554
      %p556 = scmp.ne.s32.totalorder %s547, %s548
      %p557 = scmp.eq.s32.totalorder %s96, 0
      %p558 = por %p556, %p557
      %p559 = scmp.ne.s32.totalorder %s547, %s548
      %p560 = scmp.eq.s32.totalorder %s97, 1
      %p561 = por %p559, %p560
      %p563 = scmp.ne.s32.totalorder %s548, %s562
      %p564 = scmp.eq.s32.totalorder %s97, 0
      %p565 = por %p563, %p564
      %s567 = sadd.s32 %s566, 1
      %p570 = scmp.eq.s32.totalorder %s91, 1
      %p571 = scmp.ne.s32.totalorder %s566, %s568
      %p572 = scmp.eq.s32.totalorder %s91, 0
      %p573 = por %p571, %p572
      %p574 = scmp.ne.s32.totalorder %s566, %s568
      %p575 = scmp.eq.s32.totalorder %s96, 1
      %p576 = por %p574, %p575
      %p577 = scmp.ne.s32.totalorder %s568, %s569
      %p578 = scmp.eq.s32.totalorder %s96, 0
      %p579 = por %p577, %p578
      %p580 = scmp.ne.s32.totalorder %s568, %s569
      %p581 = scmp.eq.s32.totalorder %s97, 1
      %p582 = por %p580, %p581
      %p584 = scmp.ne.s32.totalorder %s569, %s583
      %p585 = scmp.eq.s32.totalorder %s97, 0
      %p586 = por %p584, %p585
      %s588 = sadd.s32 %s587, 1
      %p591 = scmp.eq.s32.totalorder %s91, 1
      %p592 = scmp.ne.s32.totalorder %s587, %s589
      %p593 = scmp.eq.s32.totalorder %s91, 0
      %p594 = por %p592, %p593
      %p595 = scmp.ne.s32.totalorder %s587, %s589
      %p596 = scmp.eq.s32.totalorder %s96, 1
      %p597 = por %p595, %p596
      %p598 = scmp.ne.s32.totalorder %s589, %s590
      %p599 = scmp.eq.s32.totalorder %s96, 0
      %p600 = por %p598, %p599
      %p601 = scmp.ne.s32.totalorder %s589, %s590
      %p602 = scmp.eq.s32.totalorder %s97, 1
      %p603 = por %p601, %p602
      %p605 = scmp.ne.s32.totalorder %s590, %s604
      %p606 = scmp.eq.s32.totalorder %s97, 0
      %p607 = por %p605, %p606
      %s609 = sadd.s32 %s608, 1
      %p612 = scmp.eq.s32.totalorder %s91, 1
      %p613 = scmp.ne.s32.totalorder %s608, %s610
      %p614 = scmp.eq.s32.totalorder %s91, 0
      %p615 = por %p613, %p614
      %p616 = scmp.ne.s32.totalorder %s608, %s610
      %p617 = scmp.eq.s32.totalorder %s96, 1
      %p618 = por %p616, %p617
      %p619 = scmp.ne.s32.totalorder %s610, %s611
      %p620 = scmp.eq.s32.totalorder %s96, 0
      %p621 = por %p619, %p620
      %p622 = scmp.ne.s32.totalorder %s610, %s611
      %p623 = scmp.eq.s32.totalorder %s97, 1
      %p624 = por %p622, %p623
      %p626 = scmp.ne.s32.totalorder %s611, %s625
      %p627 = scmp.eq.s32.totalorder %s97, 0
      %p628 = por %p626, %p627
      %s630 = sadd.s32 %s629, 1
      %p633 = scmp.eq.s32.totalorder %s91, 1
      %p634 = scmp.ne.s32.totalorder %s629, %s631
      %p635 = scmp.eq.s32.totalorder %s91, 0
      %p636 = por %p634, %p635
      %p637 = scmp.ne.s32.totalorder %s629, %s631
      %p638 = scmp.eq.s32.totalorder %s96, 1
      %p639 = por %p637, %p638
      %p640 = scmp.ne.s32.totalorder %s631, %s632
      %p641 = scmp.eq.s32.totalorder %s96, 0
      %p642 = por %p640, %p641
      %p643 = scmp.ne.s32.totalorder %s631, %s632
      %p644 = scmp.eq.s32.totalorder %s97, 1
      %p645 = por %p643, %p644
      %p647 = scmp.ne.s32.totalorder %s632, %s646
      %p648 = scmp.eq.s32.totalorder %s97, 0
      %p649 = por %p647, %p648
      %s651 = sadd.s32 %s650, 1
      %p654 = scmp.eq.s32.totalorder %s91, 1
      %p655 = scmp.ne.s32.totalorder %s650, %s652
      %p656 = scmp.eq.s32.totalorder %s91, 0
      %p657 = por %p655, %p656
      %p658 = scmp.ne.s32.totalorder %s650, %s652
      %p659 = scmp.eq.s32.totalorder %s96, 1
      %p660 = por %p658, %p659
      %p661 = scmp.ne.s32.totalorder %s652, %s653
      %p662 = scmp.eq.s32.totalorder %s96, 0
      %p663 = por %p661, %p662
      %p664 = scmp.ne.s32.totalorder %s652, %s653
      %p665 = scmp.eq.s32.totalorder %s97, 1
      %p666 = por %p664, %p665
      %p668 = scmp.ne.s32.totalorder %s653, %s667
      %p669 = scmp.eq.s32.totalorder %s97, 0
      %p670 = por %p668, %p669
      %s672 = sadd.s32 %s671, 1
      %p675 = scmp.eq.s32.totalorder %s91, 1
      %p676 = scmp.ne.s32.totalorder %s671, %s673
      %p677 = scmp.eq.s32.totalorder %s91, 0
      %p678 = por %p676, %p677
      %p679 = scmp.ne.s32.totalorder %s671, %s673
      %p680 = scmp.eq.s32.totalorder %s96, 1
      %p681 = por %p679, %p680
      %p682 = scmp.ne.s32.totalorder %s673, %s674
      %p683 = scmp.eq.s32.totalorder %s96, 0
      %p684 = por %p682, %p683
      %p685 = scmp.ne.s32.totalorder %s673, %s674
      %p686 = scmp.eq.s32.totalorder %s97, 1
      %p687 = por %p685, %p686
      %p689 = scmp.ne.s32.totalorder %s674, %s688
      %p690 = scmp.eq.s32.totalorder %s97, 0
      %p691 = por %p689, %p690
      %s693 = sadd.s32 %s692, 1
      %p696 = scmp.eq.s32.totalorder %s91, 1
      %p697 = scmp.ne.s32.totalorder %s692, %s694
      %p698 = scmp.eq.s32.totalorder %s91, 0
      %p699 = por %p697, %p698
      %p700 = scmp.ne.s32.totalorder %s692, %s694
      %p701 = scmp.eq.s32.totalorder %s96, 1
      %p702 = por %p700, %p701
      %p703 = scmp.ne.s32.totalorder %s694, %s695
      %p704 = scmp.eq.s32.totalorder %s96, 0
      %p705 = por %p703, %p704
      %p706 = scmp.ne.s32.totalorder %s694, %s695
      %p707 = scmp.eq.s32.totalorder %s97, 1
      %p708 = por %p706, %p707
      %p710 = scmp.ne.s32.totalorder %s695, %s709
      %p711 = scmp.eq.s32.totalorder %s97, 0
      %p712 = por %p710, %p711
      %s714 = sadd.s32 %s713, 1
      %p717 = scmp.eq.s32.totalorder %s91, 1
      %p718 = scmp.ne.s32.totalorder %s713, %s715
      %p719 = scmp.eq.s32.totalorder %s91, 0
      %p720 = por %p718, %p719
      %p721 = scmp.ne.s32.totalorder %s713, %s715
      %p722 = scmp.eq.s32.totalorder %s96, 1
      %p723 = por %p721, %p722
      %p724 = scmp.ne.s32.totalorder %s715, %s716
      %p725 = scmp.eq.s32.totalorder %s96, 0
      %p726 = por %p724, %p725
      %p727 = scmp.ne.s32.totalorder %s715, %s716
      %p728 = scmp.eq.s32.totalorder %s97, 1
      %p729 = por %p727, %p728
      %p731 = scmp.ne.s32.totalorder %s716, %s730
      %p732 = scmp.eq.s32.totalorder %s97, 0
      %p733 = por %p731, %p732
      %s735 = sadd.s32 %s734, 1
      %p738 = scmp.eq.s32.totalorder %s91, 1
      %p739 = scmp.ne.s32.totalorder %s734, %s736
      %p740 = scmp.eq.s32.totalorder %s91, 0
      %p741 = por %p739, %p740
      %p742 = scmp.ne.s32.totalorder %s734, %s736
      %p743 = scmp.eq.s32.totalorder %s96, 1
      %p744 = por %p742, %p743
      %p745 = scmp.ne.s32.totalorder %s736, %s737
      %p746 = scmp.eq.s32.totalorder %s96, 0
      %p747 = por %p745, %p746
      %p748 = scmp.ne.s32.totalorder %s736, %s737
      %p749 = scmp.eq.s32.totalorder %s97, 1
      %p750 = por %p748, %p749
      %p752 = scmp.ne.s32.totalorder %s737, %s751
      %p753 = scmp.eq.s32.totalorder %s97, 0
      %p754 = por %p752, %p753
      %s756 = sadd.s32 %s755, 1
      %p759 = scmp.eq.s32.totalorder %s91, 1
      %p760 = scmp.ne.s32.totalorder %s755, %s757
      %p761 = scmp.eq.s32.totalorder %s91, 0
      %p762 = por %p760, %p761
      %p763 = scmp.ne.s32.totalorder %s755, %s757
      %p764 = scmp.eq.s32.totalorder %s96, 1
      %p765 = por %p763, %p764
      %p766 = scmp.ne.s32.totalorder %s757, %s758
      %p767 = scmp.eq.s32.totalorder %s96, 0
      %p768 = por %p766, %p767
      %p769 = scmp.ne.s32.totalorder %s757, %s758
      %p770 = scmp.eq.s32.totalorder %s97, 1
      %p771 = por %p769, %p770
      %p773 = scmp.ne.s32.totalorder %s758, %s772
      %p774 = scmp.eq.s32.totalorder %s97, 0
      %p775 = por %p773, %p774
      %s777 = sadd.s32 %s776, 1
      %p780 = scmp.eq.s32.totalorder %s91, 1
      %p781 = scmp.ne.s32.totalorder %s776, %s778
      %p782 = scmp.eq.s32.totalorder %s91, 0
      %p783 = por %p781, %p782
      %p784 = scmp.ne.s32.totalorder %s776, %s778
      %p785 = scmp.eq.s32.totalorder %s96, 1
      %p786 = por %p784, %p785
      %p787 = scmp.ne.s32.totalorder %s778, %s779
      %p788 = scmp.eq.s32.totalorder %s96, 0
      %p789 = por %p787, %p788
      %p790 = scmp.ne.s32.totalorder %s778, %s779
      %p791 = scmp.eq.s32.totalorder %s97, 1
      %p792 = por %p790, %p791
      %p794 = scmp.ne.s32.totalorder %s779, %s793
      %p795 = scmp.eq.s32.totalorder %s97, 0
      %p796 = por %p794, %p795
      %s798 = sadd.s32 %s797, 1
      %p801 = scmp.eq.s32.totalorder %s91, 1
      %p802 = scmp.ne.s32.totalorder %s797, %s799
      %p803 = scmp.eq.s32.totalorder %s91, 0
      %p804 = por %p802, %p803
      %p805 = scmp.ne.s32.totalorder %s797, %s799
      %p806 = scmp.eq.s32.totalorder %s96, 1
      %p807 = por %p805, %p806
      %p808 = scmp.ne.s32.totalorder %s799, %s800
      %p809 = scmp.eq.s32.totalorder %s96, 0
      %p810 = por %p808, %p809
      %p811 = scmp.ne.s32.totalorder %s799, %s800
      %p812 = scmp.eq.s32.totalorder %s97, 1
      %p813 = por %p811, %p812
      %p815 = scmp.ne.s32.totalorder %s800, %s814
      %p816 = scmp.eq.s32.totalorder %s97, 0
      %p817 = por %p815, %p816
      %s819 = sadd.s32 %s818, 1
      %p822 = scmp.eq.s32.totalorder %s91, 1
      %p823 = scmp.ne.s32.totalorder %s818, %s820
      %p824 = scmp.eq.s32.totalorder %s91, 0
      %p825 = por %p823, %p824
      %p826 = scmp.ne.s32.totalorder %s818, %s820
      %p827 = scmp.eq.s32.totalorder %s96, 1
      %p828 = por %p826, %p827
      %p829 = scmp.ne.s32.totalorder %s820, %s821
      %p830 = scmp.eq.s32.totalorder %s96, 0
      %p831 = por %p829, %p830
      %p832 = scmp.ne.s32.totalorder %s820, %s821
      %p833 = scmp.eq.s32.totalorder %s97, 1
      %p834 = por %p832, %p833
      %p836 = scmp.ne.s32.totalorder %s821, %s835
      %p837 = scmp.eq.s32.totalorder %s97, 0
      %p838 = por %p836, %p837
      %s840 = sadd.s32 %s839, 1
      %p843 = scmp.eq.s32.totalorder %s91, 1
      %p844 = scmp.ne.s32.totalorder %s839, %s841
      %p845 = scmp.eq.s32.totalorder %s91, 0
      %p846 = por %p844, %p845
      %p847 = scmp.ne.s32.totalorder %s839, %s841
      %p848 = scmp.eq.s32.totalorder %s96, 1
      %p849 = por %p847, %p848
      %p850 = scmp.ne.s32.totalorder %s841, %s842
      %p851 = scmp.eq.s32.totalorder %s96, 0
      %p852 = por %p850, %p851
      %p853 = scmp.ne.s32.totalorder %s841, %s842
      %p854 = scmp.eq.s32.totalorder %s97, 1
      %p855 = por %p853, %p854
      %p857 = scmp.ne.s32.totalorder %s842, %s856
      %p858 = scmp.eq.s32.totalorder %s97, 0
      %p859 = por %p857, %p858
      %s861 = sadd.s32 %s860, 1
      %p864 = scmp.eq.s32.totalorder %s91, 1
      %p865 = scmp.ne.s32.totalorder %s860, %s862
      %p866 = scmp.eq.s32.totalorder %s91, 0
      %p867 = por %p865, %p866
      %p868 = scmp.ne.s32.totalorder %s860, %s862
      %p869 = scmp.eq.s32.totalorder %s96, 1
      %p870 = por %p868, %p869
      %p871 = scmp.ne.s32.totalorder %s862, %s863
      %p872 = scmp.eq.s32.totalorder %s96, 0
      %p873 = por %p871, %p872
      %p874 = scmp.ne.s32.totalorder %s862, %s863
      %p875 = scmp.eq.s32.totalorder %s97, 1
      %p876 = por %p874, %p875
      %p878 = scmp.ne.s32.totalorder %s863, %s877
      %p879 = scmp.eq.s32.totalorder %s97, 0
      %p880 = por %p878, %p879
      %s882 = sadd.s32 %s881, 1
      %p885 = scmp.eq.s32.totalorder %s91, 1
      %p886 = scmp.ne.s32.totalorder %s881, %s883
      %p887 = scmp.eq.s32.totalorder %s91, 0
      %p888 = por %p886, %p887
      %p889 = scmp.ne.s32.totalorder %s881, %s883
      %p890 = scmp.eq.s32.totalorder %s96, 1
      %p891 = por %p889, %p890
      %p892 = scmp.ne.s32.totalorder %s883, %s884
      %p893 = scmp.eq.s32.totalorder %s96, 0
      %p894 = por %p892, %p893
      %p895 = scmp.ne.s32.totalorder %s883, %s884
      %p896 = scmp.eq.s32.totalorder %s97, 1
      %p897 = por %p895, %p896
      %p899 = scmp.ne.s32.totalorder %s884, %s898
      %p900 = scmp.eq.s32.totalorder %s97, 0
      %p901 = por %p899, %p900
      %s903 = sadd.s32 %s902, 1
      %p906 = scmp.eq.s32.totalorder %s91, 1
      %p907 = scmp.ne.s32.totalorder %s902, %s904
      %p908 = scmp.eq.s32.totalorder %s91, 0
      %p909 = por %p907, %p908
      %p910 = scmp.ne.s32.totalorder %s902, %s904
      %p911 = scmp.eq.s32.totalorder %s96, 1
      %p912 = por %p910, %p911
      %p913 = scmp.ne.s32.totalorder %s904, %s905
      %p914 = scmp.eq.s32.totalorder %s96, 0
      %p915 = por %p913, %p914
      %p916 = scmp.ne.s32.totalorder %s904, %s905
      %p917 = scmp.eq.s32.totalorder %s97, 1
      %p918 = por %p916, %p917
      %p920 = scmp.ne.s32.totalorder %s905, %s919
      %p921 = scmp.eq.s32.totalorder %s97, 0
      %p922 = por %p920, %p921
      %s924 = sadd.s32 %s923, 1
      %p927 = scmp.eq.s32.totalorder %s91, 1
      %p928 = scmp.ne.s32.totalorder %s923, %s925
      %p929 = scmp.eq.s32.totalorder %s91, 0
      %p930 = por %p928, %p929
      %p931 = scmp.ne.s32.totalorder %s923, %s925
      %p932 = scmp.eq.s32.totalorder %s96, 1
      %p933 = por %p931, %p932
      %p934 = scmp.ne.s32.totalorder %s925, %s926
      %p935 = scmp.eq.s32.totalorder %s96, 0
      %p936 = por %p934, %p935
      %p937 = scmp.ne.s32.totalorder %s925, %s926
      %p938 = scmp.eq.s32.totalorder %s97, 1
      %p939 = por %p937, %p938
      %p941 = scmp.ne.s32.totalorder %s926, %s940
      %p942 = scmp.eq.s32.totalorder %s97, 0
      %p943 = por %p941, %p942
      %s944 = ssub.s32 %s91, %s98
      %p945 = scmp.eq.s32.totalorder %s944, 0
      %s947 = sadd.s32 %s946, 1
      %s948 = scalar_select %p945, %s946, %s947
      %p951 = pneg %p945
      %p952 = scmp.eq.s32.totalorder %s91, 1
      %p953 = por %p951, %p952
      %p954 = scmp.ne.s32.totalorder %s946, %s949
      %p955 = scmp.eq.s32.totalorder %s91, 0
      %p956 = por %p954, %p955
      %p957 = scmp.ne.s32.totalorder %s946, %s949
      %p958 = scmp.eq.s32.totalorder %s96, 1
      %p959 = por %p957, %p958
      %p960 = scmp.ne.s32.totalorder %s949, %s950
      %p961 = scmp.eq.s32.totalorder %s96, 0
      %p962 = por %p960, %p961
      %p963 = scmp.ne.s32.totalorder %s949, %s950
      %p964 = scmp.eq.s32.totalorder %s97, 1
      %p965 = por %p963, %p964
      %p967 = scmp.ne.s32.totalorder %s950, %s966
      %p968 = scmp.eq.s32.totalorder %s97, 0
      %p969 = por %p967, %p968
      %p970 = scmp.le.s32.totalorder 1, %s91
      %p971 = scmp.lt.s32.totalorder %s91, 3
      %p972 = pnand %p970, %p971
      %p973 = pneg %p972
      // Predicated region
      $region9: #{tpu_custom_call.1} parent=5 // pred_check
        _
      $region10: #{tpu_custom_call.1} parent=5 // pred_check_branch
        %975 = sbr.rel (%p972) target = $region12
      $region11: #{tpu_custom_call.1} parent=5 // pred_region
        %s976 = ssub.s32 %s91, 1
        // Predicated region
        $region13: #{tpu_custom_call.1} parent=11 // pred_check
          %p977 = pneg %p138
        $region14: #{tpu_custom_call.1} parent=11 // pred_check_branch
          %979 = sbr.rel (%p977) target = $region16
        $region15: #{tpu_custom_call.1} parent=11 // pred_region
          _
        $region16: #{tpu_custom_call.1} parent=11 // pred_fallthru
          _
        // Predicated region
        $region17: #{tpu_custom_call.1} parent=11 // pred_check
          %p980 = pneg %p159
        $region18: #{tpu_custom_call.1} parent=11 // pred_check_branch
          %982 = sbr.rel (%p980) target = $region20
        $region19: #{tpu_custom_call.1} parent=11 // pred_region
          _
        $region20: #{tpu_custom_call.1} parent=11 // pred_fallthru
          _
        // Predicated region
        $region21: #{tpu_custom_call.1} parent=11 // pred_check
          %p983 = pneg %p180
        $region22: #{tpu_custom_call.1} parent=11 // pred_check_branch
          %985 = sbr.rel (%p983) target = $region24
        $region23: #{tpu_custom_call.1} parent=11 // pred_region
          _
        $region24: #{tpu_custom_call.1} parent=11 // pred_fallthru
          _
        // Predicated region
        $region25: #{tpu_custom_call.1} parent=11 // pred_check
          %p986 = pneg %p201
        $region26: #{tpu_custom_call.1} parent=11 // pred_check_branch
          %988 = sbr.rel (%p986) target = $region28
        $region27: #{tpu_custom_call.1} parent=11 // pred_region
          _
        $region28: #{tpu_custom_call.1} parent=11 // pred_fallthru
          _
        // Predicated region
        $region29: #{tpu_custom_call.1} parent=11 // pred_check
          %p989 = pneg %p222
        $region30: #{tpu_custom_call.1} parent=11 // pred_check_branch
          %991 = sbr.rel (%p989) target = $region32
        $region31: #{tpu_custom_call.1} parent=11 // pred_region
          _
        $region32: #{tpu_custom_call.1} parent=11 // pred_fallthru
          _
        // Predicated region
        $region33: #{tpu_custom_call.1} parent=11 // pred_check
          %p992 = pneg %p243
        $region34: #{tpu_custom_call.1} parent=11 // pred_check_branch
          %994 = sbr.rel (%p992) target = $region36
        $region35: #{tpu_custom_call.1} parent=11 // pred_region
          _
        $region36: #{tpu_custom_call.1} parent=11 // pred_fallthru
          _
        // Predicated region
        $region37: #{tpu_custom_call.1} parent=11 // pred_check
          %p995 = pneg %p264
        $region38: #{tpu_custom_call.1} parent=11 // pred_check_branch
          %997 = sbr.rel (%p995) target = $region40
        $region39: #{tpu_custom_call.1} parent=11 // pred_region
          _
        $region40: #{tpu_custom_call.1} parent=11 // pred_fallthru
          _
        // Predicated region
        $region41: #{tpu_custom_call.1} parent=11 // pred_check
          %p998 = pneg %p285
        $region42: #{tpu_custom_call.1} parent=11 // pred_check_branch
          %1000 = sbr.rel (%p998) target = $region44
        $region43: #{tpu_custom_call.1} parent=11 // pred_region
          _
        $region44: #{tpu_custom_call.1} parent=11 // pred_fallthru
          _
        // Predicated region
        $region45: #{tpu_custom_call.1} parent=11 // pred_check
          %p1001 = pneg %p306
        $region46: #{tpu_custom_call.1} parent=11 // pred_check_branch
          %1003 = sbr.rel (%p1001) target = $region48
        $region47: #{tpu_custom_call.1} parent=11 // pred_region
          _
        $region48: #{tpu_custom_call.1} parent=11 // pred_fallthru
          _
        // Predicated region
        $region49: #{tpu_custom_call.1} parent=11 // pred_check
          %p1004 = pneg %p327
        $region50: #{tpu_custom_call.1} parent=11 // pred_check_branch
          %1006 = sbr.rel (%p1004) target = $region52
        $region51: #{tpu_custom_call.1} parent=11 // pred_region
          _
        $region52: #{tpu_custom_call.1} parent=11 // pred_fallthru
          _
        // Predicated region
        $region53: #{tpu_custom_call.1} parent=11 // pred_check
          %p1007 = pneg %p348
        $region54: #{tpu_custom_call.1} parent=11 // pred_check_branch
          %1009 = sbr.rel (%p1007) target = $region56
        $region55: #{tpu_custom_call.1} parent=11 // pred_region
          _
        $region56: #{tpu_custom_call.1} parent=11 // pred_fallthru
          _
        // Predicated region
        $region57: #{tpu_custom_call.1} parent=11 // pred_check
          %p1010 = pneg %p369
        $region58: #{tpu_custom_call.1} parent=11 // pred_check_branch
          %1012 = sbr.rel (%p1010) target = $region60
        $region59: #{tpu_custom_call.1} parent=11 // pred_region
          _
        $region60: #{tpu_custom_call.1} parent=11 // pred_fallthru
          _
        // Predicated region
        $region61: #{tpu_custom_call.1} parent=11 // pred_check
          %p1013 = pneg %p390
        $region62: #{tpu_custom_call.1} parent=11 // pred_check_branch
          %1015 = sbr.rel (%p1013) target = $region64
        $region63: #{tpu_custom_call.1} parent=11 // pred_region
          _
        $region64: #{tpu_custom_call.1} parent=11 // pred_fallthru
          _
        // Predicated region
        $region65: #{tpu_custom_call.1} parent=11 // pred_check
          %p1016 = pneg %p411
        $region66: #{tpu_custom_call.1} parent=11 // pred_check_branch
          %1018 = sbr.rel (%p1016) target = $region68
        $region67: #{tpu_custom_call.1} parent=11 // pred_region
          _
        $region68: #{tpu_custom_call.1} parent=11 // pred_fallthru
          _
        // Predicated region
        $region69: #{tpu_custom_call.1} parent=11 // pred_check
          %p1019 = pneg %p432
        $region70: #{tpu_custom_call.1} parent=11 // pred_check_branch
          %1021 = sbr.rel (%p1019) target = $region72
        $region71: #{tpu_custom_call.1} parent=11 // pred_region
          _
        $region72: #{tpu_custom_call.1} parent=11 // pred_fallthru
          _
        // Predicated region
        $region73: #{tpu_custom_call.1} parent=11 // pred_check
          %p1022 = pneg %p453
        $region74: #{tpu_custom_call.1} parent=11 // pred_check_branch
          %1024 = sbr.rel (%p1022) target = $region76
        $region75: #{tpu_custom_call.1} parent=11 // pred_region
          _
        $region76: #{tpu_custom_call.1} parent=11 // pred_fallthru
          _
        // Predicated region
        $region77: #{tpu_custom_call.1} parent=11 // pred_check
          %p1025 = pneg %p474
        $region78: #{tpu_custom_call.1} parent=11 // pred_check_branch
          %1027 = sbr.rel (%p1025) target = $region80
        $region79: #{tpu_custom_call.1} parent=11 // pred_region
          _
        $region80: #{tpu_custom_call.1} parent=11 // pred_fallthru
          _
        // Predicated region
        $region81: #{tpu_custom_call.1} parent=11 // pred_check
          %p1028 = pneg %p495
        $region82: #{tpu_custom_call.1} parent=11 // pred_check_branch
          %1030 = sbr.rel (%p1028) target = $region84
        $region83: #{tpu_custom_call.1} parent=11 // pred_region
          _
        $region84: #{tpu_custom_call.1} parent=11 // pred_fallthru
          _
        // Predicated region
        $region85: #{tpu_custom_call.1} parent=11 // pred_check
          %p1031 = pneg %p516
        $region86: #{tpu_custom_call.1} parent=11 // pred_check_branch
          %1033 = sbr.rel (%p1031) target = $region88
        $region87: #{tpu_custom_call.1} parent=11 // pred_region
          _
        $region88: #{tpu_custom_call.1} parent=11 // pred_fallthru
          _
        // Predicated region
        $region89: #{tpu_custom_call.1} parent=11 // pred_check
          %p1034 = pneg %p537
        $region90: #{tpu_custom_call.1} parent=11 // pred_check_branch
          %1036 = sbr.rel (%p1034) target = $region92
        $region91: #{tpu_custom_call.1} parent=11 // pred_region
          _
        $region92: #{tpu_custom_call.1} parent=11 // pred_fallthru
          _
        // Predicated region
        $region93: #{tpu_custom_call.1} parent=11 // pred_check
          %p1037 = pneg %p558
        $region94: #{tpu_custom_call.1} parent=11 // pred_check_branch
          %1039 = sbr.rel (%p1037) target = $region96
        $region95: #{tpu_custom_call.1} parent=11 // pred_region
          _
        $region96: #{tpu_custom_call.1} parent=11 // pred_fallthru
          _
        // Predicated region
        $region97: #{tpu_custom_call.1} parent=11 // pred_check
          %p1040 = pneg %p579
        $region98: #{tpu_custom_call.1} parent=11 // pred_check_branch
          %1042 = sbr.rel (%p1040) target = $region100
        $region99: #{tpu_custom_call.1} parent=11 // pred_region
          _
        $region100: #{tpu_custom_call.1} parent=11 // pred_fallthru
          _
        // Predicated region
        $region101: #{tpu_custom_call.1} parent=11 // pred_check
          %p1043 = pneg %p600
        $region102: #{tpu_custom_call.1} parent=11 // pred_check_branch
          %1045 = sbr.rel (%p1043) target = $region104
        $region103: #{tpu_custom_call.1} parent=11 // pred_region
          _
        $region104: #{tpu_custom_call.1} parent=11 // pred_fallthru
          _
        // Predicated region
        $region105: #{tpu_custom_call.1} parent=11 // pred_check
          %p1046 = pneg %p621
        $region106: #{tpu_custom_call.1} parent=11 // pred_check_branch
          %1048 = sbr.rel (%p1046) target = $region108
        $region107: #{tpu_custom_call.1} parent=11 // pred_region
          _
        $region108: #{tpu_custom_call.1} parent=11 // pred_fallthru
          _
        // Predicated region
        $region109: #{tpu_custom_call.1} parent=11 // pred_check
          %p1049 = pneg %p642
        $region110: #{tpu_custom_call.1} parent=11 // pred_check_branch
          %1051 = sbr.rel (%p1049) target = $region112
        $region111: #{tpu_custom_call.1} parent=11 // pred_region
          _
        $region112: #{tpu_custom_call.1} parent=11 // pred_fallthru
          _
        // Predicated region
        $region113: #{tpu_custom_call.1} parent=11 // pred_check
          %p1052 = pneg %p663
        $region114: #{tpu_custom_call.1} parent=11 // pred_check_branch
          %1054 = sbr.rel (%p1052) target = $region116
        $region115: #{tpu_custom_call.1} parent=11 // pred_region
          _
        $region116: #{tpu_custom_call.1} parent=11 // pred_fallthru
          _
        // Predicated region
        $region117: #{tpu_custom_call.1} parent=11 // pred_check
          %p1055 = pneg %p684
        $region118: #{tpu_custom_call.1} parent=11 // pred_check_branch
          %1057 = sbr.rel (%p1055) target = $region120
        $region119: #{tpu_custom_call.1} parent=11 // pred_region
          _
        $region120: #{tpu_custom_call.1} parent=11 // pred_fallthru
          _
        // Predicated region
        $region121: #{tpu_custom_call.1} parent=11 // pred_check
          %p1058 = pneg %p705
        $region122: #{tpu_custom_call.1} parent=11 // pred_check_branch
          %1060 = sbr.rel (%p1058) target = $region124
        $region123: #{tpu_custom_call.1} parent=11 // pred_region
          _
        $region124: #{tpu_custom_call.1} parent=11 // pred_fallthru
          _
        // Predicated region
        $region125: #{tpu_custom_call.1} parent=11 // pred_check
          %p1061 = pneg %p726
        $region126: #{tpu_custom_call.1} parent=11 // pred_check_branch
          %1063 = sbr.rel (%p1061) target = $region128
        $region127: #{tpu_custom_call.1} parent=11 // pred_region
          _
        $region128: #{tpu_custom_call.1} parent=11 // pred_fallthru
          _
        // Predicated region
        $region129: #{tpu_custom_call.1} parent=11 // pred_check
          %p1064 = pneg %p747
        $region130: #{tpu_custom_call.1} parent=11 // pred_check_branch
          %1066 = sbr.rel (%p1064) target = $region132
        $region131: #{tpu_custom_call.1} parent=11 // pred_region
          _
        $region132: #{tpu_custom_call.1} parent=11 // pred_fallthru
          _
        // Predicated region
        $region133: #{tpu_custom_call.1} parent=11 // pred_check
          %p1067 = pneg %p768
        $region134: #{tpu_custom_call.1} parent=11 // pred_check_branch
          %1069 = sbr.rel (%p1067) target = $region136
        $region135: #{tpu_custom_call.1} parent=11 // pred_region
          _
        $region136: #{tpu_custom_call.1} parent=11 // pred_fallthru
          _
        // Predicated region
        $region137: #{tpu_custom_call.1} parent=11 // pred_check
          %p1070 = pneg %p789
        $region138: #{tpu_custom_call.1} parent=11 // pred_check_branch
          %1072 = sbr.rel (%p1070) target = $region140
        $region139: #{tpu_custom_call.1} parent=11 // pred_region
          _
        $region140: #{tpu_custom_call.1} parent=11 // pred_fallthru
          _
        // Predicated region
        $region141: #{tpu_custom_call.1} parent=11 // pred_check
          %p1073 = pneg %p810
        $region142: #{tpu_custom_call.1} parent=11 // pred_check_branch
          %1075 = sbr.rel (%p1073) target = $region144
        $region143: #{tpu_custom_call.1} parent=11 // pred_region
          _
        $region144: #{tpu_custom_call.1} parent=11 // pred_fallthru
          _
        // Predicated region
        $region145: #{tpu_custom_call.1} parent=11 // pred_check
          %p1076 = pneg %p831
        $region146: #{tpu_custom_call.1} parent=11 // pred_check_branch
          %1078 = sbr.rel (%p1076) target = $region148
        $region147: #{tpu_custom_call.1} parent=11 // pred_region
          _
        $region148: #{tpu_custom_call.1} parent=11 // pred_fallthru
          _
        // Predicated region
        $region149: #{tpu_custom_call.1} parent=11 // pred_check
          %p1079 = pneg %p852
        $region150: #{tpu_custom_call.1} parent=11 // pred_check_branch
          %1081 = sbr.rel (%p1079) target = $region152
        $region151: #{tpu_custom_call.1} parent=11 // pred_region
          _
        $region152: #{tpu_custom_call.1} parent=11 // pred_fallthru
          _
        // Predicated region
        $region153: #{tpu_custom_call.1} parent=11 // pred_check
          %p1082 = pneg %p873
        $region154: #{tpu_custom_call.1} parent=11 // pred_check_branch
          %1084 = sbr.rel (%p1082) target = $region156
        $region155: #{tpu_custom_call.1} parent=11 // pred_region
          _
        $region156: #{tpu_custom_call.1} parent=11 // pred_fallthru
          _
        // Predicated region
        $region157: #{tpu_custom_call.1} parent=11 // pred_check
          %p1085 = pneg %p894
        $region158: #{tpu_custom_call.1} parent=11 // pred_check_branch
          %1087 = sbr.rel (%p1085) target = $region160
        $region159: #{tpu_custom_call.1} parent=11 // pred_region
          _
        $region160: #{tpu_custom_call.1} parent=11 // pred_fallthru
          _
        // Predicated region
        $region161: #{tpu_custom_call.1} parent=11 // pred_check
          %p1088 = pneg %p915
        $region162: #{tpu_custom_call.1} parent=11 // pred_check_branch
          %1090 = sbr.rel (%p1088) target = $region164
        $region163: #{tpu_custom_call.1} parent=11 // pred_region
          _
        $region164: #{tpu_custom_call.1} parent=11 // pred_fallthru
          _
        // Predicated region
        $region165: #{tpu_custom_call.1} parent=11 // pred_check
          %p1091 = pneg %p936
        $region166: #{tpu_custom_call.1} parent=11 // pred_check_branch
          %1093 = sbr.rel (%p1091) target = $region168
        $region167: #{tpu_custom_call.1} parent=11 // pred_region
          %s1095 = ssub.s32 16, 16
          %1096 = vsyncadd [#allocation4], %s1095
          %s1098 = sshll.u32 %s79, 4
          %s1099 = int_to_ptr.vmem [resolvable:$true] %s1098
          %1101 = dma.vmem_to_smem %s1099, 16, [#allocation2], [#allocation4]
        $region168: #{tpu_custom_call.1} parent=11 // pred_fallthru
          _
      $region12: #{tpu_custom_call.1} parent=5 // pred_fallthru
        _
      %p1102 = scmp.lt.s32.totalorder %s91, 2
      // Predicated region
      $region169: #{tpu_custom_call.1} parent=5 // pred_check
        %p1103 = pneg %p1102
      $region170: #{tpu_custom_call.1} parent=5 // pred_check_branch
        %1105 = sbr.rel (%p1103) target = $region172
      $region171: #{tpu_custom_call.1} parent=5 // pred_region
        // Predicated region
        $region173: #{tpu_custom_call.1} parent=171 // pred_check
          %p1106 = pneg %p111
        $region174: #{tpu_custom_call.1} parent=171 // pred_check_branch
          %1108 = sbr.rel (%p1106) target = $region176
        $region175: #{tpu_custom_call.1} parent=171 // pred_region
          %p1109 = scmp.lt.s32.totalorder %s91, 1
          %s1110 = scalar_select %p1109, %s91, 1
          %s1111 = smul.addr %s1110, 2
          %s1112 = smul.addr %s1111, 8
          %s1113 = scalar_lea.vmem %s1, %s1112
        $region176: #{tpu_custom_call.1} parent=171 // pred_fallthru
          _
      $region172: #{tpu_custom_call.1} parent=5 // pred_fallthru
        _
      %p1114 = scmp.le.s32.totalorder 1, %s91
      %p1115 = scmp.lt.s32.totalorder %s91, 3
      %p1116 = pnand %p1114, %p1115
      %p1117 = pneg %p1116
      // Predicated region
      $region177: #{tpu_custom_call.1} parent=5 // pred_check
        _
      $region178: #{tpu_custom_call.1} parent=5 // pred_check_branch
        %1119 = sbr.rel (%p1116) target = $region180
      $region179: #{tpu_custom_call.1} parent=5 // pred_region
        %s1120 = ssub.s32 %s91, 1
        // Predicated region
        $region181: #{tpu_custom_call.1} parent=179 // pred_check
          %p1121 = pneg %p936
        $region182: #{tpu_custom_call.1} parent=179 // pred_check_branch
          %1123 = sbr.rel (%p1121) target = $region184
        $region183: #{tpu_custom_call.1} parent=179 // pred_region
          %1124 = dma.done [#allocation4], 16
        $region184: #{tpu_custom_call.1} parent=179 // pred_fallthru
          _
        %1125 = sfence
        %p1126 = scmp.lt.s32.totalorder %s96, 1
        %s1127 = scalar_select %p1126, %s96, 1
        %s1128 = smul.addr %s1127, 2
        %s1129 = smul.addr %s1128, 8
        %s1130 = scalar_lea.vmem %s1, %s1129
        %p1131 = pneg %p117
        %p1132 = pneg %p114
        %p1133 = pneg %p138
        %p1134 = pneg %p135
        %p1135 = pneg %p159
        %p1136 = pneg %p156
        %p1137 = pneg %p180
        %p1138 = pneg %p177
        %p1139 = pneg %p201
        %p1140 = pneg %p198
        %p1141 = pneg %p222
        %p1142 = pneg %p219
        %p1143 = pneg %p243
        %p1144 = pneg %p240
        %p1145 = pneg %p264
        %p1146 = pneg %p261
        %p1147 = pneg %p285
        %p1148 = pneg %p282
        %p1149 = pneg %p306
        %p1150 = pneg %p303
        %p1151 = pneg %p327
        %p1152 = pneg %p324
        %p1153 = pneg %p348
        %p1154 = pneg %p345
        %p1155 = pneg %p369
        %p1156 = pneg %p366
        %p1157 = pneg %p390
        %p1158 = pneg %p387
        %p1159 = pneg %p411
        %p1160 = pneg %p408
        %p1161 = pneg %p432
        %p1162 = pneg %p429
        %p1163 = pneg %p453
        %p1164 = pneg %p450
        %p1165 = pneg %p474
        %p1166 = pneg %p471
        %p1167 = pneg %p495
        %p1168 = pneg %p492
        %p1169 = pneg %p516
        %p1170 = pneg %p513
        %p1171 = pneg %p537
        %p1172 = pneg %p534
        %p1173 = pneg %p558
        %p1174 = pneg %p555
        %p1175 = pneg %p579
        %p1176 = pneg %p576
        %p1177 = pneg %p600
        %p1178 = pneg %p597
        %p1179 = pneg %p621
        %p1180 = pneg %p618
        %p1181 = pneg %p642
        %p1182 = pneg %p639
        %p1183 = pneg %p663
        %p1184 = pneg %p660
        %p1185 = pneg %p684
        %p1186 = pneg %p681
        %p1187 = pneg %p705
        %p1188 = pneg %p702
        %p1189 = pneg %p726
        %p1190 = pneg %p723
        %p1191 = pneg %p747
        %p1192 = pneg %p744
        %p1193 = pneg %p768
        %p1194 = pneg %p765
        %p1195 = pneg %p789
        %p1196 = pneg %p786
        %p1197 = pneg %p810
        %p1198 = pneg %p807
        %p1199 = pneg %p831
        %p1200 = pneg %p828
        %p1201 = pneg %p852
        %p1202 = pneg %p849
        %p1203 = pneg %p873
        %p1204 = pneg %p870
        %p1205 = pneg %p894
        %p1206 = pneg %p891
        %p1207 = pneg %p915
        %p1208 = pneg %p912
        %p1209 = pneg %p936
        %p1210 = pneg %p933
        %p1211 = pneg %p962
        %p1212 = pneg %p959
        %s1213 = sand.u32 %s949, 1
        %s1214 = scalar_lea.sflag [#allocation3], %s1213
        %s1215 = sand.u32 %s949, 1
        %s1216 = smul.addr %s1215, 16
        %s1217 = scalar_lea.vmem [#allocation5], %s1216
        %p1218 = scmp.lt.s32.totalorder %s96, 1
        %s1219 = scalar_select %p1218, %s96, 1
        %s1220 = smul.addr %s1219, 2
        %s1221 = smul.addr %s1220, 8
        %s1222 = scalar_lea.vmem %s1, %s1221
        %v1223 = vld [vmem:[%s1222] sm:$0xff]
        %s1224 = scalar_lea.vmem %s1222, 8
        %v1225 = vld [vmem:[%s1224] sm:$0xff]
        %1227 = vrot.lane.b32.xlu0 %v1225, 16
        %v1228 = vpop.permute.xlu0 %1227
        %vm1230 = vcmask 130048
        %v1231 = vsel %vm1230, %v1223, %v1228
        %v1232 = vlaneseq
        %v1233 = vand.u32 %v1232, 127
        %vm1234 = vcmp.lt.s32.totalorder %v1233, 0
        %v1235 = vsub.s32 0, %v1233
        %v1236 = vsel %vm1234, %v1235, %v1233
        %v1237 = vshrl.u32 %v1236, 4
        %v1238 = vand.u32 %v1236, 15
        %v1239 = vsub.s32 0, %v1238
        %v1240 = vsel %vm1234, %v1239, %v1238
        %vm1241 = vcmp.ne.s32.totalorder %v1240, 0
        %vm1242 = vcmp.lt.s32.totalorder %v1240, 0
        %vm1243 = vmand %vm1242, %vm1241
        %v1244 = vadd.s32 %v1240, 16
        %v1245 = vsel %vm1243, %v1244, %v1240
        %s1246 = sld [smem:[#allocation2]]
        %s1247 = sld [smem:[#allocation2 + $0x1]]
        %s1248 = sld [smem:[#allocation2 + $0x2]]
        %s1249 = sld [smem:[#allocation2 + $0x3]]
        %s1250 = sld [smem:[#allocation2 + $0x4]]
        %v1251 = vld [vmem:[%s3] sm:$0xff]
        %v1252 = vld [vmem:[%s5] sm:$0xff]
        %v1253 = vsel %vm1230, %v1231, 0.0
        %1254 = vadd.xlane.f32.xlu0 %v1253
        %v1255 = vpop.xlane.xlu0 %1254
        %v1256 = vrot.slane %v1255, 4
        %v1257 = vadd.f32 %v1255, %v1256
        %v1258 = vrot.slane %v1257, 2
        %v1259 = vadd.f32 %v1257, %v1258
        %v1260 = vrot.slane %v1259, 1
        %v1261 = vadd.f32 %v1259, %v1260
        %s1262 = vtos %v1261
        %v1263 = vmul.f32 %v1231, %v1231
        %v1264 = vsel %vm1230, %v1263, 0.0
        %1265 = vadd.xlane.f32.xlu0 %v1264
        %v1266 = vpop.xlane.xlu0 %1265
        %v1267 = vrot.slane %v1266, 4
        %v1268 = vadd.f32 %v1266, %v1267
        %v1269 = vrot.slane %v1268, 2
        %v1270 = vadd.f32 %v1268, %v1269
        %v1271 = vrot.slane %v1270, 1
        %v1272 = vadd.f32 %v1270, %v1271
        %s1273 = vtos %v1272
        %s1274 = smul.f32 %s1262, 0.0078125
        %s1275 = smul.f32 %s1273, 0.0078125
        %s1276 = smul.f32 %s1274, %s1274
        %s1277 = ssub.f32 %s1275, %s1276
        %s1278 = smax.f32 %s1277, 0.0
        %v1279 = vstv %s1274
        %v1280 = vsub.f32 %v1231, %v1279
        %s1281 = sadd.f32 %s1278, 1e-08
        %v1282 = vstv %s1281
        %v1283 = vrsqrt.pop %v1282
        %s1284 = vtos %v1283
        %v1285 = vstv %s1284
        %v1286 = vmul.f32 %v1280, %v1285
        %1288 = vrot.lane.b32.xlu0 %v1231, 112
        %v1289 = vpop.permute.xlu0 %1288
        %v1291 = vsel %vm1230, %v1289, 0.0
        %1292 = vadd.xlane.f32.xlu0 %v1291
        %v1293 = vpop.xlane.xlu0 %1292
        %v1294 = vrot.slane %v1293, 4
        %v1295 = vadd.f32 %v1293, %v1294
        %v1296 = vrot.slane %v1295, 2
        %v1297 = vadd.f32 %v1295, %v1296
        %v1298 = vrot.slane %v1297, 1
        %v1299 = vadd.f32 %v1297, %v1298
        %s1300 = vtos %v1299
        %1302 = vrot.lane.b32.xlu0 %v1263, 112
        %v1303 = vpop.permute.xlu0 %1302
        %v1305 = vsel %vm1230, %v1303, 0.0
        %1306 = vadd.xlane.f32.xlu0 %v1305
        %v1307 = vpop.xlane.xlu0 %1306
        %v1308 = vrot.slane %v1307, 4
        %v1309 = vadd.f32 %v1307, %v1308
        %v1310 = vrot.slane %v1309, 2
        %v1311 = vadd.f32 %v1309, %v1310
        %v1312 = vrot.slane %v1311, 1
        %v1313 = vadd.f32 %v1311, %v1312
        %s1314 = vtos %v1313
        %s1315 = smul.f32 %s1300, 0.0078125
        %s1316 = smul.f32 %s1314, 0.0078125
        %s1317 = smul.f32 %s1315, %s1315
        %s1318 = ssub.f32 %s1316, %s1317
        %s1319 = smax.f32 %s1318, 0.0
        %v1320 = vstv %s1315
        %v1321 = vsub.f32 %v1231, %v1320
        %s1322 = sadd.f32 %s1319, 1e-08
        %v1323 = vstv %s1322
        %v1324 = vrsqrt.pop %v1323
        %s1325 = vtos %v1324
        %v1326 = vstv %s1325
        %v1327 = vmul.f32 %v1321, %v1326
        %v1328 = vsel %vm1230, %v1286, %v1327
        %1330 = vset.pattern.permute.xlu0 0
        %1331 = vperm.xlu0 %1330, %v1251
        %v1332 = vpop.permute.xlu0 %1331
        %v1334 = vmul.f32 %v1328, %v1332
        %1336 = vset.pattern.permute.xlu0 0
        %1337 = vperm.xlu0 %1336, %v1252
        %v1338 = vpop.permute.xlu0 %1337
        %v1340 = vadd.f32 %v1334, %v1338
        %v1341 = vld [vmem:[%s7] sm:$0xff]
        %v1342 = vld [vmem:[%s7 + $0x8] sm:$0xff]
        %v1343 = vld [vmem:[%s7 + $0x10] sm:$0xff]
        %1345 = vset.pattern.permute.xlu0 0
        %1346 = vperm.xlu0 %1345, %v1341
        %v1347 = vpop.permute.xlu0 %1346
        %1350 = vset.pattern.permute.xlu0 0
        %1351 = vperm.xlu0 %1350, %v1342
        %v1352 = vpop.permute.xlu0 %1351
        %1355 = vset.pattern.permute.xlu0 0
        %1356 = vperm.xlu0 %1355, %v1343
        %v1357 = vpop.permute.xlu0 %1356
        %v1359 = vlaneseq
        %v1360 = vshrl.u32 %v1359, 7
        %v1361 = vsub.s32 0, %v1360
        %v1362 = vrot.slane %v1340, %v1361
        %v1363 = vmul.f32 %v1347, %v1362
        %v1364 = vmul.f32 %v1352, %v1362
        %v1365 = vmul.f32 %v1357, %v1362
        %s1366 = scalar_lea.vmem %s7, 24
        %v1367 = vld [vmem:[%s1366] sm:$0xff]
        %v1368 = vld [vmem:[%s1366 + $0x8] sm:$0xff]
        %v1369 = vld [vmem:[%s1366 + $0x10] sm:$0xff]
        %1371 = vset.pattern.permute.xlu0 0
        %1372 = vperm.xlu0 %1371, %v1367
        %v1373 = vpop.permute.xlu0 %1372
        %1376 = vset.pattern.permute.xlu0 0
        %1377 = vperm.xlu0 %1376, %v1368
        %v1378 = vpop.permute.xlu0 %1377
        %1381 = vset.pattern.permute.xlu0 0
        %1382 = vperm.xlu0 %1381, %v1369
        %v1383 = vpop.permute.xlu0 %1382
        %v1385 = vlaneseq
        %v1386 = vshrl.u32 %v1385, 7
        %v1387 = vsub.s32 1, %v1386
        %v1388 = vrot.slane %v1340, %v1387
        %v1389 = vmul.f32 %v1373, %v1388
        %v1390 = vmul.f32 %v1378, %v1388
        %v1391 = vmul.f32 %v1383, %v1388
        %v1392 = vadd.f32 %v1363, %v1389
        %v1393 = vadd.f32 %v1364, %v1390
        %v1394 = vadd.f32 %v1365, %v1391
        %s1395 = scalar_lea.vmem %s7, 48
        %v1396 = vld [vmem:[%s1395] sm:$0xff]
        %v1397 = vld [vmem:[%s1395 + $0x8] sm:$0xff]
        %v1398 = vld [vmem:[%s1395 + $0x10] sm:$0xff]
        %1400 = vset.pattern.permute.xlu0 0
        %1401 = vperm.xlu0 %1400, %v1396
        %v1402 = vpop.permute.xlu0 %1401
        %1405 = vset.pattern.permute.xlu0 0
        %1406 = vperm.xlu0 %1405, %v1397
        %v1407 = vpop.permute.xlu0 %1406
        %1410 = vset.pattern.permute.xlu0 0
        %1411 = vperm.xlu0 %1410, %v1398
        %v1412 = vpop.permute.xlu0 %1411
        %v1414 = vlaneseq
        %v1415 = vshrl.u32 %v1414, 7
        %v1416 = vsub.s32 2, %v1415
        %v1417 = vrot.slane %v1340, %v1416
        %v1418 = vmul.f32 %v1402, %v1417
        %v1419 = vmul.f32 %v1407, %v1417
        %v1420 = vmul.f32 %v1412, %v1417
        %v1421 = vadd.f32 %v1392, %v1418
        %v1422 = vadd.f32 %v1393, %v1419
        %v1423 = vadd.f32 %v1394, %v1420
        %s1424 = scalar_lea.vmem %s7, 72
        %v1425 = vld [vmem:[%s1424] sm:$0xff]
        %v1426 = vld [vmem:[%s1424 + $0x8] sm:$0xff]
        %v1427 = vld [vmem:[%s1424 + $0x10] sm:$0xff]
        %1429 = vset.pattern.permute.xlu0 0
        %1430 = vperm.xlu0 %1429, %v1425
        %v1431 = vpop.permute.xlu0 %1430
        %1434 = vset.pattern.permute.xlu0 0
        %1435 = vperm.xlu0 %1434, %v1426
        %v1436 = vpop.permute.xlu0 %1435
        %1439 = vset.pattern.permute.xlu0 0
        %1440 = vperm.xlu0 %1439, %v1427
        %v1441 = vpop.permute.xlu0 %1440
        %v1443 = vlaneseq
        %v1444 = vshrl.u32 %v1443, 7
        %v1445 = vsub.s32 3, %v1444
        %v1446 = vrot.slane %v1340, %v1445
        %v1447 = vmul.f32 %v1431, %v1446
        %v1448 = vmul.f32 %v1436, %v1446
        %v1449 = vmul.f32 %v1441, %v1446
        %v1450 = vadd.f32 %v1421, %v1447
        %v1451 = vadd.f32 %v1422, %v1448
        %v1452 = vadd.f32 %v1423, %v1449
        %s1453 = scalar_lea.vmem %s7, 96
        %v1454 = vld [vmem:[%s1453] sm:$0xff]
        %v1455 = vld [vmem:[%s1453 + $0x8] sm:$0xff]
        %v1456 = vld [vmem:[%s1453 + $0x10] sm:$0xff]
        %1458 = vset.pattern.permute.xlu0 0
        %1459 = vperm.xlu0 %1458, %v1454
        %v1460 = vpop.permute.xlu0 %1459
        %1463 = vset.pattern.permute.xlu0 0
        %1464 = vperm.xlu0 %1463, %v1455
        %v1465 = vpop.permute.xlu0 %1464
        %1468 = vset.pattern.permute.xlu0 0
        %1469 = vperm.xlu0 %1468, %v1456
        %v1470 = vpop.permute.xlu0 %1469
        %v1472 = vlaneseq
        %v1473 = vshrl.u32 %v1472, 7
        %v1474 = vsub.s32 4, %v1473
        %v1475 = vrot.slane %v1340, %v1474
        %v1476 = vmul.f32 %v1460, %v1475
        %v1477 = vmul.f32 %v1465, %v1475
        %v1478 = vmul.f32 %v1470, %v1475
        %v1479 = vadd.f32 %v1450, %v1476
        %v1480 = vadd.f32 %v1451, %v1477
        %v1481 = vadd.f32 %v1452, %v1478
        %s1482 = scalar_lea.vmem %s7, 120
        %v1483 = vld [vmem:[%s1482] sm:$0xff]
        %v1484 = vld [vmem:[%s1482 + $0x8] sm:$0xff]
        %v1485 = vld [vmem:[%s1482 + $0x10] sm:$0xff]
        %1487 = vset.pattern.permute.xlu0 0
        %1488 = vperm.xlu0 %1487, %v1483
        %v1489 = vpop.permute.xlu0 %1488
        %1492 = vset.pattern.permute.xlu0 0
        %1493 = vperm.xlu0 %1492, %v1484
        %v1494 = vpop.permute.xlu0 %1493
        %1497 = vset.pattern.permute.xlu0 0
        %1498 = vperm.xlu0 %1497, %v1485
        %v1499 = vpop.permute.xlu0 %1498
        %v1501 = vlaneseq
        %v1502 = vshrl.u32 %v1501, 7
        %v1503 = vsub.s32 5, %v1502
        %v1504 = vrot.slane %v1340, %v1503
        %v1505 = vmul.f32 %v1489, %v1504
        %v1506 = vmul.f32 %v1494, %v1504
        %v1507 = vmul.f32 %v1499, %v1504
        %v1508 = vadd.f32 %v1479, %v1505
        %v1509 = vadd.f32 %v1480, %v1506
        %v1510 = vadd.f32 %v1481, %v1507
        %s1511 = scalar_lea.vmem %s7, 144
        %v1512 = vld [vmem:[%s1511] sm:$0xff]
        %v1513 = vld [vmem:[%s1511 + $0x8] sm:$0xff]
        %v1514 = vld [vmem:[%s1511 + $0x10] sm:$0xff]
        %1516 = vset.pattern.permute.xlu0 0
        %1517 = vperm.xlu0 %1516, %v1512
        %v1518 = vpop.permute.xlu0 %1517
        %1521 = vset.pattern.permute.xlu0 0
        %1522 = vperm.xlu0 %1521, %v1513
        %v1523 = vpop.permute.xlu0 %1522
        %1526 = vset.pattern.permute.xlu0 0
        %1527 = vperm.xlu0 %1526, %v1514
        %v1528 = vpop.permute.xlu0 %1527
        %v1530 = vlaneseq
        %v1531 = vshrl.u32 %v1530, 7
        %v1532 = vsub.s32 6, %v1531
        %v1533 = vrot.slane %v1340, %v1532
        %v1534 = vmul.f32 %v1518, %v1533
        %v1535 = vmul.f32 %v1523, %v1533
        %v1536 = vmul.f32 %v1528, %v1533
        %v1537 = vadd.f32 %v1508, %v1534
        %v1538 = vadd.f32 %v1509, %v1535
        %v1539 = vadd.f32 %v1510, %v1536
        %s1540 = scalar_lea.vmem %s7, 168
        %v1541 = vld [vmem:[%s1540] sm:$0xff]
        %v1542 = vld [vmem:[%s1540 + $0x8] sm:$0xff]
        %v1543 = vld [vmem:[%s1540 + $0x10] sm:$0xff]
        %1545 = vset.pattern.permute.xlu0 0
        %1546 = vperm.xlu0 %1545, %v1541
        %v1547 = vpop.permute.xlu0 %1546
        %1550 = vset.pattern.permute.xlu0 0
        %1551 = vperm.xlu0 %1550, %v1542
        %v1552 = vpop.permute.xlu0 %1551
        %1555 = vset.pattern.permute.xlu0 0
        %1556 = vperm.xlu0 %1555, %v1543
        %v1557 = vpop.permute.xlu0 %1556
        %v1559 = vlaneseq
        %v1560 = vshrl.u32 %v1559, 7
        %v1561 = vsub.s32 7, %v1560
        %v1562 = vrot.slane %v1340, %v1561
        %v1563 = vmul.f32 %v1547, %v1562
        %v1564 = vmul.f32 %v1552, %v1562
        %v1565 = vmul.f32 %v1557, %v1562
        %v1566 = vadd.f32 %v1537, %v1563
        %v1567 = vadd.f32 %v1538, %v1564
        %v1568 = vadd.f32 %v1539, %v1565
        %v1569 = vld [vmem:[%s9] sm:$0xff]
        %v1570 = vld [vmem:[%s9 + $0x8] sm:$0xff]
        %v1571 = vld [vmem:[%s9 + $0x10] sm:$0xff]
        %1573 = vset.pattern.permute.xlu0 0
        %1574 = vperm.xlu0 %1573, %v1569
        %v1575 = vpop.permute.xlu0 %1574
        %1578 = vset.pattern.permute.xlu0 0
        %1579 = vperm.xlu0 %1578, %v1570
        %v1580 = vpop.permute.xlu0 %1579
        %1583 = vset.pattern.permute.xlu0 0
        %1584 = vperm.xlu0 %1583, %v1571
        %v1585 = vpop.permute.xlu0 %1584
        %v1587 = vadd.f32 %v1566, %v1575
        %v1588 = vadd.f32 %v1567, %v1580
        %v1589 = vadd.f32 %v1568, %v1585
        %vm1590 = vcmp.ge.f32.partialorder %v1587, 0.0
        %vm1591 = vcmp.ge.f32.partialorder %v1588, 0.0
        %vm1592 = vcmp.ge.f32.partialorder %v1589, 0.0
        %v1593 = vstv %s1246
        %v1594 = vmul.f32 %v1593, %v1587
        %v1595 = vmul.f32 %v1593, %v1588
        %v1596 = vmul.f32 %v1593, %v1589
        %v1597 = vsel %vm1590, %v1587, %v1594
        %v1598 = vsel %vm1591, %v1588, %v1595
        %v1599 = vsel %vm1592, %v1589, %v1596
        %1603 = vrot.lane.b32.xlu0 %v1597, 112
        %v1604 = vpop.permute.xlu0 %1603
        %1605 = vrot.lane.b32.xlu0 %v1598, 112
        %v1606 = vpop.permute.xlu0 %1605
        %1607 = vrot.lane.b32.xlu0 %v1599, 112
        %v1608 = vpop.permute.xlu0 %1607
        %v1612 = vadd.f32 %v1597, %v1604
        %v1613 = vadd.f32 %v1598, %v1606
        %v1614 = vadd.f32 %v1599, %v1608
        %v1615 = vmul.f32 %v1612, 0.5
        %v1616 = vmul.f32 %v1613, 0.5
        %v1617 = vmul.f32 %v1614, 0.5
        %v1618 = vld [vmem:[%s11] sm:$0xff]
        %v1619 = vld [vmem:[%s11 + $0x8] sm:$0xff]
        %v1620 = vld [vmem:[%s11 + $0x10] sm:$0xff]
        %v1621 = vld [vmem:[%s13] sm:$0xff]
        %v1622 = vld [vmem:[%s13 + $0x8] sm:$0xff]
        %v1623 = vld [vmem:[%s13 + $0x10] sm:$0xff]
        %1625 = vset.pattern.permute.xlu0 0
        %1626 = vperm.xlu0 %1625, %v1621
        %v1627 = vpop.permute.xlu0 %1626
        %1630 = vset.pattern.permute.xlu0 0
        %1631 = vperm.xlu0 %1630, %v1622
        %v1632 = vpop.permute.xlu0 %1631
        %1635 = vset.pattern.permute.xlu0 0
        %1636 = vperm.xlu0 %1635, %v1623
        %v1637 = vpop.permute.xlu0 %1636
        %vm1639 = vcmask 195584
        %v1641 = vsel %vm1639, %v1618, 0
        %v1644 = vsel %vm1639, %v1619, 0
        %v1647 = vsel %vm1639, %v1620, 0
        %1649 = vmatprep.subr.mxu0 0.0
        %1650 = vmatpush1.msra.mxu0 0.0
        %1651 = vmatprep.subr.mxu0 0.0
        %1652 = vmatpush1.msra.mxu0 0.0
        %1653 = vmatprep.subr.mxu0 0.0
        %1654 = vmatpush1.msra.mxu0 0.0
        %1655 = vmatprep.subr.mxu0 0.0
        %1656 = vmatpush1.msra.mxu0 0.0
        %1657 = vmatprep.subr.mxu0 0.0
        %1658 = vmatpush1.msra.mxu0 0.0
        %1659 = vmatprep.subr.mxu0 0.0
        %1660 = vmatpush1.msra.mxu0 0.0
        %1661 = vmatprep.subr.mxu0 0.0
        %1662 = vmatpush1.msra.mxu0 0.0
        %1663 = vmatprep.subr.mxu0 0.0
        %1664 = vmatpush1.msra.mxu0 0.0
        %1665 = vmatprep.subr.mxu0 0.0
        %1666 = vmatpush1.msra.mxu0 0.0
        %1667 = vmatprep.subr.mxu0 0.0
        %1668 = vmatpush1.msra.mxu0 0.0
        %1669 = vmatprep.subr.mxu0 0.0
        %1670 = vmatpush1.msra.mxu0 0.0
        %1671 = vmatprep.subr.mxu0 0.0
        %1672 = vmatpush1.msra.mxu0 0.0
        %1673 = vmatprep.subr.mxu0 0.0
        %1674 = vmatpush1.msra.mxu0 0.0
        %1675 = vmatprep.subr.mxu0 0.0
        %1676 = vmatpush1.msra.mxu0 %v1617
        %1677 = vmatprep.subr.mxu0 0.0
        %1678 = vmatpush1.msra.mxu0 %v1616
        %1679 = vmatprep.subr.mxu0 0.0
        %1680 = vmatpush1.msra.mxu0 %v1615
        %1681 = vmatprep.subr.mxu0 0.0
        %1682 = vmatpush2.msra.mxu0 0.0
        %1683 = vmatprep.subr.mxu0 0.0
        %1684 = vmatpush2.msra.mxu0 0.0
        %1685 = vmatprep.subr.mxu0 0.0
        %1686 = vmatpush2.msra.mxu0 0.0
        %1687 = vmatprep.subr.mxu0 0.0
        %1688 = vmatpush2.msra.mxu0 0.0
        %1689 = vmatprep.subr.mxu0 0.0
        %1690 = vmatpush2.msra.mxu0 0.0
        %1691 = vmatprep.subr.mxu0 0.0
        %1692 = vmatpush2.msra.mxu0 0.0
        %1693 = vmatprep.subr.mxu0 0.0
        %1694 = vmatpush2.msra.mxu0 0.0
        %1695 = vmatprep.subr.mxu0 0.0
        %1696 = vmatpush2.msra.mxu0 0.0
        %1697 = vmatprep.subr.mxu0 0.0
        %1698 = vmatpush2.msra.mxu0 0.0
        %1699 = vmatprep.subr.mxu0 0.0
        %1700 = vmatpush2.msra.mxu0 0.0
        %1701 = vmatprep.subr.mxu0 0.0
        %1702 = vmatpush2.msra.mxu0 0.0
        %1703 = vmatprep.subr.mxu0 0.0
        %1704 = vmatpush2.msra.mxu0 0.0
        %1705 = vmatprep.subr.mxu0 0.0
        %1706 = vmatpush2.msra.mxu0 0.0
        %1707 = vmatprep.subr.mxu0 0.0
        %1708 = vmatpush2.msra.mxu0 0.0
        %1709 = vmatprep.subr.mxu0 0.0
        %1710 = vmatpush2.msra.mxu0 0.0
        %1711 = vmatprep.subr.mxu0 0.0
        %1712 = vmatpush2.msra.mxu0 0.0
        %1713 = vmatprep.mubr.f32.mxu0 0.0
        %1714 = vmatmul.mubr.f32.gmra.mxu0 %v1641
        %v1715 = vpop.f32.mrf.mxu0
        %v1716 = vadd.f32 %v1627, %v1715
        %v1717 = vpop.f32.mrf.mxu0
        %1718 = vmatprep.mubr.f32.mxu0 0.0
        %1719 = vmatmul.mubr.f32.gmra.mxu0 %v1644
        %v1720 = vpop.f32.mrf.mxu0
        %v1721 = vadd.f32 %v1632, %v1720
        %v1722 = vpop.f32.mrf.mxu0
        %1723 = vmatprep.mubr.f32.mxu0 0.0
        %1724 = vmatmul.mubr.f32.gmra.mxu0 %v1647
        %v1725 = vpop.f32.mrf.mxu0
        %v1726 = vadd.f32 %v1637, %v1725
        %v1727 = vpop.f32.mrf.mxu0
        %1728 = vdwg.mxu0
        %vm1729 = vcmp.ge.f32.partialorder %v1716, 0.0
        %vm1730 = vcmp.ge.f32.partialorder %v1721, 0.0
        %vm1731 = vcmp.ge.f32.partialorder %v1726, 0.0
        %v1732 = vstv %s1247
        %v1733 = vmul.f32 %v1732, %v1716
        %v1734 = vmul.f32 %v1732, %v1721
        %v1735 = vmul.f32 %v1732, %v1726
        %v1736 = vsel %vm1729, %v1716, %v1733
        %v1737 = vsel %vm1730, %v1721, %v1734
        %v1738 = vsel %vm1731, %v1726, %v1735
        %v1739 = vld [vmem:[%s17] sm:$0xff]
        %v1740 = vld [vmem:[%s19] sm:$0xff]
        %1742 = vset.pattern.permute.xlu0 0
        %1743 = vperm.xlu0 %1742, %v1740
        %v1744 = vpop.permute.xlu0 %1743
        %v1747 = vsel %vm1639, %v1739, 0
        %1749 = vmatprep.subr.mxu0 0.0
        %1750 = vmatpush1.msra.mxu0 0.0
        %1751 = vmatprep.subr.mxu0 0.0
        %1752 = vmatpush1.msra.mxu0 0.0
        %1753 = vmatprep.subr.mxu0 0.0
        %1754 = vmatpush1.msra.mxu0 0.0
        %1755 = vmatprep.subr.mxu0 0.0
        %1756 = vmatpush1.msra.mxu0 0.0
        %1757 = vmatprep.subr.mxu0 0.0
        %1758 = vmatpush1.msra.mxu0 0.0
        %1759 = vmatprep.subr.mxu0 0.0
        %1760 = vmatpush1.msra.mxu0 0.0
        %1761 = vmatprep.subr.mxu0 0.0
        %1762 = vmatpush1.msra.mxu0 0.0
        %1763 = vmatprep.subr.mxu0 0.0
        %1764 = vmatpush1.msra.mxu0 0.0
        %1765 = vmatprep.subr.mxu0 0.0
        %1766 = vmatpush1.msra.mxu0 0.0
        %1767 = vmatprep.subr.mxu0 0.0
        %1768 = vmatpush1.msra.mxu0 0.0
        %1769 = vmatprep.subr.mxu0 0.0
        %1770 = vmatpush1.msra.mxu0 0.0
        %1771 = vmatprep.subr.mxu0 0.0
        %1772 = vmatpush1.msra.mxu0 0.0
        %1773 = vmatprep.subr.mxu0 0.0
        %1774 = vmatpush1.msra.mxu0 0.0
        %1775 = vmatprep.subr.mxu0 0.0
        %1776 = vmatpush1.msra.mxu0 %v1738
        %1777 = vmatprep.subr.mxu0 0.0
        %1778 = vmatpush1.msra.mxu0 %v1737
        %1779 = vmatprep.subr.mxu0 0.0
        %1780 = vmatpush1.msra.mxu0 %v1736
        %1781 = vmatprep.subr.mxu0 0.0
        %1782 = vmatpush2.msra.mxu0 0.0
        %1783 = vmatprep.subr.mxu0 0.0
        %1784 = vmatpush2.msra.mxu0 0.0
        %1785 = vmatprep.subr.mxu0 0.0
        %1786 = vmatpush2.msra.mxu0 0.0
        %1787 = vmatprep.subr.mxu0 0.0
        %1788 = vmatpush2.msra.mxu0 0.0
        %1789 = vmatprep.subr.mxu0 0.0
        %1790 = vmatpush2.msra.mxu0 0.0
        %1791 = vmatprep.subr.mxu0 0.0
        %1792 = vmatpush2.msra.mxu0 0.0
        %1793 = vmatprep.subr.mxu0 0.0
        %1794 = vmatpush2.msra.mxu0 0.0
        %1795 = vmatprep.subr.mxu0 0.0
        %1796 = vmatpush2.msra.mxu0 0.0
        %1797 = vmatprep.subr.mxu0 0.0
        %1798 = vmatpush2.msra.mxu0 0.0
        %1799 = vmatprep.subr.mxu0 0.0
        %1800 = vmatpush2.msra.mxu0 0.0
        %1801 = vmatprep.subr.mxu0 0.0
        %1802 = vmatpush2.msra.mxu0 0.0
        %1803 = vmatprep.subr.mxu0 0.0
        %1804 = vmatpush2.msra.mxu0 0.0
        %1805 = vmatprep.subr.mxu0 0.0
        %1806 = vmatpush2.msra.mxu0 0.0
        %1807 = vmatprep.subr.mxu0 0.0
        %1808 = vmatpush2.msra.mxu0 0.0
        %1809 = vmatprep.subr.mxu0 0.0
        %1810 = vmatpush2.msra.mxu0 0.0
        %1811 = vmatprep.subr.mxu0 0.0
        %1812 = vmatpush2.msra.mxu0 0.0
        %1813 = vmatprep.mubr.f32.mxu0 0.0
        %1814 = vmatmul.mubr.f32.gmra.mxu0 %v1747
        %v1815 = vpop.f32.mrf.mxu0
        %v1816 = vadd.f32 %v1744, %v1815
        %v1817 = vpop.f32.mrf.mxu0
        %1818 = vdwg.mxu0
        %1820 = vrot.lane.b32.xlu0 %v1816, 16
        %v1821 = vpop.permute.xlu0 %1820
        %v1823 = vsel %vm1230, %v1816, %v1821
        %v1824 = vld [vmem:[%s15] sm:$0xff]
        %v1826 = vsel %vm1639, %v1824, 0
        %1828 = vmatprep.subr.mxu0 0.0
        %1829 = vmatpush1.msra.mxu0 0.0
        %1830 = vmatprep.subr.mxu0 0.0
        %1831 = vmatpush1.msra.mxu0 0.0
        %1832 = vmatprep.subr.mxu0 0.0
        %1833 = vmatpush1.msra.mxu0 0.0
        %1834 = vmatprep.subr.mxu0 0.0
        %1835 = vmatpush1.msra.mxu0 0.0
        %1836 = vmatprep.subr.mxu0 0.0
        %1837 = vmatpush1.msra.mxu0 0.0
        %1838 = vmatprep.subr.mxu0 0.0
        %1839 = vmatpush1.msra.mxu0 0.0
        %1840 = vmatprep.subr.mxu0 0.0
        %1841 = vmatpush1.msra.mxu0 0.0
        %1842 = vmatprep.subr.mxu0 0.0
        %1843 = vmatpush1.msra.mxu0 0.0
        %1844 = vmatprep.subr.mxu0 0.0
        %1845 = vmatpush1.msra.mxu0 0.0
        %1846 = vmatprep.subr.mxu0 0.0
        %1847 = vmatpush1.msra.mxu0 0.0
        %1848 = vmatprep.subr.mxu0 0.0
        %1849 = vmatpush1.msra.mxu0 0.0
        %1850 = vmatprep.subr.mxu0 0.0
        %1851 = vmatpush1.msra.mxu0 0.0
        %1852 = vmatprep.subr.mxu0 0.0
        %1853 = vmatpush1.msra.mxu0 0.0
        %1854 = vmatprep.subr.mxu0 0.0
        %1855 = vmatpush1.msra.mxu0 %v1599
        %1856 = vmatprep.subr.mxu0 0.0
        %1857 = vmatpush1.msra.mxu0 %v1598
        %1858 = vmatprep.subr.mxu0 0.0
        %1859 = vmatpush1.msra.mxu0 %v1597
        %1860 = vmatprep.subr.mxu0 0.0
        %1861 = vmatpush2.msra.mxu0 0.0
        %1862 = vmatprep.subr.mxu0 0.0
        %1863 = vmatpush2.msra.mxu0 0.0
        %1864 = vmatprep.subr.mxu0 0.0
        %1865 = vmatpush2.msra.mxu0 0.0
        %1866 = vmatprep.subr.mxu0 0.0
        %1867 = vmatpush2.msra.mxu0 0.0
        %1868 = vmatprep.subr.mxu0 0.0
        %1869 = vmatpush2.msra.mxu0 0.0
        %1870 = vmatprep.subr.mxu0 0.0
        %1871 = vmatpush2.msra.mxu0 0.0
        %1872 = vmatprep.subr.mxu0 0.0
        %1873 = vmatpush2.msra.mxu0 0.0
        %1874 = vmatprep.subr.mxu0 0.0
        %1875 = vmatpush2.msra.mxu0 0.0
        %1876 = vmatprep.subr.mxu0 0.0
        %1877 = vmatpush2.msra.mxu0 0.0
        %1878 = vmatprep.subr.mxu0 0.0
        %1879 = vmatpush2.msra.mxu0 0.0
        %1880 = vmatprep.subr.mxu0 0.0
        %1881 = vmatpush2.msra.mxu0 0.0
        %1882 = vmatprep.subr.mxu0 0.0
        %1883 = vmatpush2.msra.mxu0 0.0
        %1884 = vmatprep.subr.mxu0 0.0
        %1885 = vmatpush2.msra.mxu0 0.0
        %1886 = vmatprep.subr.mxu0 0.0
        %1887 = vmatpush2.msra.mxu0 0.0
        %1888 = vmatprep.subr.mxu0 0.0
        %1889 = vmatpush2.msra.mxu0 0.0
        %1890 = vmatprep.subr.mxu0 0.0
        %1891 = vmatpush2.msra.mxu0 0.0
        %1892 = vmatprep.mubr.f32.mxu0 0.0
        %1893 = vmatmul.mubr.f32.gmra.mxu0 %v1826
        %v1894 = vpop.f32.mrf.mxu0
        %v1895 = vadd.f32 %v1823, %v1894
        %v1896 = vpop.f32.mrf.mxu0
        %1897 = vdwg.mxu0
        %vm1898 = vcmp.ge.f32.partialorder %v1895, 0.0
        %v1899 = vstv %s1248
        %v1900 = vmul.f32 %v1899, %v1895
        %v1901 = vsel %vm1898, %v1895, %v1900
        %v1902 = vadd.f32 %v1231, %v1901
        %v1903 = vld [vmem:[%s21] sm:$0xff]
        %1905 = vset.pattern.permute.xlu0 0
        %1906 = vperm.xlu0 %1905, %v1903
        %v1907 = vpop.permute.xlu0 %1906
        %v1909 = vlaneseq
        %v1910 = vshrl.u32 %v1909, 7
        %v1911 = vsub.s32 0, %v1910
        %v1912 = vrot.slane %v1902, %v1911
        %v1913 = vmul.f32 %v1907, %v1912
        %s1914 = scalar_lea.vmem %s21, 8
        %v1915 = vld [vmem:[%s1914] sm:$0xff]
        %1917 = vset.pattern.permute.xlu0 0
        %1918 = vperm.xlu0 %1917, %v1915
        %v1919 = vpop.permute.xlu0 %1918
        %v1921 = vlaneseq
        %v1922 = vshrl.u32 %v1921, 7
        %v1923 = vsub.s32 1, %v1922
        %v1924 = vrot.slane %v1902, %v1923
        %v1925 = vmul.f32 %v1919, %v1924
        %v1926 = vadd.f32 %v1913, %v1925
        %s1927 = scalar_lea.vmem %s21, 16
        %v1928 = vld [vmem:[%s1927] sm:$0xff]
        %1930 = vset.pattern.permute.xlu0 0
        %1931 = vperm.xlu0 %1930, %v1928
        %v1932 = vpop.permute.xlu0 %1931
        %v1934 = vlaneseq
        %v1935 = vshrl.u32 %v1934, 7
        %v1936 = vsub.s32 2, %v1935
        %v1937 = vrot.slane %v1902, %v1936
        %v1938 = vmul.f32 %v1932, %v1937
        %v1939 = vadd.f32 %v1926, %v1938
        %s1940 = scalar_lea.vmem %s21, 24
        %v1941 = vld [vmem:[%s1940] sm:$0xff]
        %1943 = vset.pattern.permute.xlu0 0
        %1944 = vperm.xlu0 %1943, %v1941
        %v1945 = vpop.permute.xlu0 %1944
        %v1947 = vlaneseq
        %v1948 = vshrl.u32 %v1947, 7
        %v1949 = vsub.s32 3, %v1948
        %v1950 = vrot.slane %v1902, %v1949
        %v1951 = vmul.f32 %v1945, %v1950
        %v1952 = vadd.f32 %v1939, %v1951
        %s1953 = scalar_lea.vmem %s21, 32
        %v1954 = vld [vmem:[%s1953] sm:$0xff]
        %1956 = vset.pattern.permute.xlu0 0
        %1957 = vperm.xlu0 %1956, %v1954
        %v1958 = vpop.permute.xlu0 %1957
        %v1960 = vlaneseq
        %v1961 = vshrl.u32 %v1960, 7
        %v1962 = vsub.s32 4, %v1961
        %v1963 = vrot.slane %v1902, %v1962
        %v1964 = vmul.f32 %v1958, %v1963
        %v1965 = vadd.f32 %v1952, %v1964
        %s1966 = scalar_lea.vmem %s21, 40
        %v1967 = vld [vmem:[%s1966] sm:$0xff]
        %1969 = vset.pattern.permute.xlu0 0
        %1970 = vperm.xlu0 %1969, %v1967
        %v1971 = vpop.permute.xlu0 %1970
        %v1973 = vlaneseq
        %v1974 = vshrl.u32 %v1973, 7
        %v1975 = vsub.s32 5, %v1974
        %v1976 = vrot.slane %v1902, %v1975
        %v1977 = vmul.f32 %v1971, %v1976
        %v1978 = vadd.f32 %v1965, %v1977
        %s1979 = scalar_lea.vmem %s21, 48
        %v1980 = vld [vmem:[%s1979] sm:$0xff]
        %1982 = vset.pattern.permute.xlu0 0
        %1983 = vperm.xlu0 %1982, %v1980
        %v1984 = vpop.permute.xlu0 %1983
        %v1986 = vlaneseq
        %v1987 = vshrl.u32 %v1986, 7
        %v1988 = vsub.s32 6, %v1987
        %v1989 = vrot.slane %v1902, %v1988
        %v1990 = vmul.f32 %v1984, %v1989
        %v1991 = vadd.f32 %v1978, %v1990
        %s1992 = scalar_lea.vmem %s21, 56
        %v1993 = vld [vmem:[%s1992] sm:$0xff]
        %1995 = vset.pattern.permute.xlu0 0
        %1996 = vperm.xlu0 %1995, %v1993
        %v1997 = vpop.permute.xlu0 %1996
        %v1999 = vlaneseq
        %v2000 = vshrl.u32 %v1999, 7
        %v2001 = vsub.s32 7, %v2000
        %v2002 = vrot.slane %v1902, %v2001
        %v2003 = vmul.f32 %v1997, %v2002
        %v2004 = vadd.f32 %v1991, %v2003
        %v2005 = vld [vmem:[%s23] sm:$0xff]
        %2007 = vset.pattern.permute.xlu0 0
        %2008 = vperm.xlu0 %2007, %v2005
        %v2009 = vpop.permute.xlu0 %2008
        %v2011 = vadd.f32 %v2004, %v2009
        %vm2012 = vcmp.ge.f32.partialorder %v2011, 0.0
        %v2013 = vstv %s1249
        %v2014 = vmul.f32 %v2013, %v2011
        %v2015 = vsel %vm2012, %v2011, %v2014
        %v2016 = vld [vmem:[%s25] sm:$0xff]
        %v2017 = vld [vmem:[%s27] sm:$0xff]
        %v2018 = vsel %vm1230, %v2015, 0.0
        %2019 = vadd.xlane.f32.xlu0 %v2018
        %v2020 = vpop.xlane.xlu0 %2019
        %v2021 = vrot.slane %v2020, 4
        %v2022 = vadd.f32 %v2020, %v2021
        %v2023 = vrot.slane %v2022, 2
        %v2024 = vadd.f32 %v2022, %v2023
        %v2025 = vrot.slane %v2024, 1
        %v2026 = vadd.f32 %v2024, %v2025
        %s2027 = vtos %v2026
        %v2028 = vmul.f32 %v2015, %v2015
        %v2029 = vsel %vm1230, %v2028, 0.0
        %2030 = vadd.xlane.f32.xlu0 %v2029
        %v2031 = vpop.xlane.xlu0 %2030
        %v2032 = vrot.slane %v2031, 4
        %v2033 = vadd.f32 %v2031, %v2032
        %v2034 = vrot.slane %v2033, 2
        %v2035 = vadd.f32 %v2033, %v2034
        %v2036 = vrot.slane %v2035, 1
        %v2037 = vadd.f32 %v2035, %v2036
        %s2038 = vtos %v2037
        %s2039 = smul.f32 %s2027, 0.0078125
        %s2040 = smul.f32 %s2038, 0.0078125
        %s2041 = smul.f32 %s2039, %s2039
        %s2042 = ssub.f32 %s2040, %s2041
        %s2043 = smax.f32 %s2042, 0.0
        %v2044 = vstv %s2039
        %v2045 = vsub.f32 %v2015, %v2044
        %s2046 = sadd.f32 %s2043, 1e-08
        %v2047 = vstv %s2046
        %v2048 = vrsqrt.pop %v2047
        %s2049 = vtos %v2048
        %v2050 = vstv %s2049
        %v2051 = vmul.f32 %v2045, %v2050
        %2053 = vrot.lane.b32.xlu0 %v2015, 112
        %v2054 = vpop.permute.xlu0 %2053
        %v2056 = vsel %vm1230, %v2054, 0.0
        %2057 = vadd.xlane.f32.xlu0 %v2056
        %v2058 = vpop.xlane.xlu0 %2057
        %v2059 = vrot.slane %v2058, 4
        %v2060 = vadd.f32 %v2058, %v2059
        %v2061 = vrot.slane %v2060, 2
        %v2062 = vadd.f32 %v2060, %v2061
        %v2063 = vrot.slane %v2062, 1
        %v2064 = vadd.f32 %v2062, %v2063
        %s2065 = vtos %v2064
        %2067 = vrot.lane.b32.xlu0 %v2028, 112
        %v2068 = vpop.permute.xlu0 %2067
        %v2070 = vsel %vm1230, %v2068, 0.0
        %2071 = vadd.xlane.f32.xlu0 %v2070
        %v2072 = vpop.xlane.xlu0 %2071
        %v2073 = vrot.slane %v2072, 4
        %v2074 = vadd.f32 %v2072, %v2073
        %v2075 = vrot.slane %v2074, 2
        %v2076 = vadd.f32 %v2074, %v2075
        %v2077 = vrot.slane %v2076, 1
        %v2078 = vadd.f32 %v2076, %v2077
        %s2079 = vtos %v2078
        %s2080 = smul.f32 %s2065, 0.0078125
        %s2081 = smul.f32 %s2079, 0.0078125
        %s2082 = smul.f32 %s2080, %s2080
        %s2083 = ssub.f32 %s2081, %s2082
        %s2084 = smax.f32 %s2083, 0.0
        %v2085 = vstv %s2080
        %v2086 = vsub.f32 %v2015, %v2085
        %s2087 = sadd.f32 %s2084, 1e-08
        %v2088 = vstv %s2087
        %v2089 = vrsqrt.pop %v2088
        %s2090 = vtos %v2089
        %v2091 = vstv %s2090
        %v2092 = vmul.f32 %v2086, %v2091
        %v2093 = vsel %vm1230, %v2051, %v2092
        %2095 = vset.pattern.permute.xlu0 0
        %2096 = vperm.xlu0 %2095, %v2016
        %v2097 = vpop.permute.xlu0 %2096
        %v2099 = vmul.f32 %v2093, %v2097
        %2101 = vset.pattern.permute.xlu0 0
        %2102 = vperm.xlu0 %2101, %v2017
        %v2103 = vpop.permute.xlu0 %2102
        %v2105 = vadd.f32 %v2099, %v2103
        %v2106 = vld [vmem:[%s29] sm:$0xff]
        %v2107 = vadd.s32 %v1245, 4294967295
        %vm2108 = vcmp.ge.s32.totalorder %v2107, 0
        %vm2109 = vcmp.lt.s32.totalorder %v2107, 16
        %vm2110 = vmand %vm2108, %vm2109
        %vm2111 = vcmask 1047808
        %2112 = vrot.lane.b32.xlu0 %v2105, 32
        %v2113 = vpop.permute.xlu0 %2112
        %v2114 = vsel %vm2111, %v2113, %v2105
        %2115 = vrot.lane.b32.xlu0 %v2114, 32
        %v2116 = vpop.permute.xlu0 %2115
        %v2117 = vsel %vm2111, %v2116, %v2105
        %2119 = vrot.lane.b32.xlu0 %v2117, 97
        %v2120 = vpop.permute.xlu0 %2119
        %v2122 = vsel %vm2110, %v2120, 0.0
        %2124 = vset.pattern.permute.xlu0 0
        %2125 = vperm.xlu0 %2124, %v2106
        %v2126 = vpop.permute.xlu0 %2125
        %v2128 = vmul.f32 %v2126, %v2122
        %s2129 = scalar_lea.vmem %s29, 8
        %v2130 = vld [vmem:[%s2129] sm:$0xff]
        %2132 = vset.pattern.permute.xlu0 0
        %2133 = vperm.xlu0 %2132, %v2130
        %v2134 = vpop.permute.xlu0 %2133
        %v2136 = vmul.f32 %v2134, %v2105
        %v2137 = vadd.f32 %v2128, %v2136
        %s2138 = scalar_lea.vmem %s29, 16
        %v2139 = vld [vmem:[%s2138] sm:$0xff]
        %v2140 = vadd.s32 %v1245, 1
        %vm2141 = vcmp.ge.s32.totalorder %v2140, 0
        %vm2142 = vcmp.lt.s32.totalorder %v2140, 16
        %vm2143 = vmand %vm2141, %vm2142
        %2144 = vrot.lane.b32.xlu0 %v2117, 127
        %v2145 = vpop.permute.xlu0 %2144
        %v2147 = vsel %vm2143, %v2145, 0.0
        %2149 = vset.pattern.permute.xlu0 0
        %2150 = vperm.xlu0 %2149, %v2139
        %v2151 = vpop.permute.xlu0 %2150
        %v2153 = vmul.f32 %v2151, %v2147
        %v2154 = vadd.f32 %v2137, %v2153
        %v2155 = vld [vmem:[%s31] sm:$0xff]
        %2157 = vset.pattern.permute.xlu0 0
        %2158 = vperm.xlu0 %2157, %v2155
        %v2159 = vpop.permute.xlu0 %2158
        %v2161 = vadd.f32 %v2154, %v2159
        %vm2162 = vcmp.ge.f32.partialorder %v2161, 0.0
        %v2163 = vstv %s1250
        %v2164 = vmul.f32 %v2163, %v2161
        %v2165 = vsel %vm2162, %v2161, %v2164
        %v2166 = vld [vmem:[%s33] sm:$0xff]
        %v2167 = vld [vmem:[%s35] sm:$0xff]
        %v2168 = vsel %vm1230, %v2165, 0.0
        %2169 = vadd.xlane.f32.xlu0 %v2168
        %v2170 = vpop.xlane.xlu0 %2169
        %v2171 = vrot.slane %v2170, 4
        %v2172 = vadd.f32 %v2170, %v2171
        %v2173 = vrot.slane %v2172, 2
        %v2174 = vadd.f32 %v2172, %v2173
        %v2175 = vrot.slane %v2174, 1
        %v2176 = vadd.f32 %v2174, %v2175
        %s2177 = vtos %v2176
        %v2178 = vmul.f32 %v2165, %v2165
        %v2179 = vsel %vm1230, %v2178, 0.0
        %2180 = vadd.xlane.f32.xlu0 %v2179
        %v2181 = vpop.xlane.xlu0 %2180
        %v2182 = vrot.slane %v2181, 4
        %v2183 = vadd.f32 %v2181, %v2182
        %v2184 = vrot.slane %v2183, 2
        %v2185 = vadd.f32 %v2183, %v2184
        %v2186 = vrot.slane %v2185, 1
        %v2187 = vadd.f32 %v2185, %v2186
        %s2188 = vtos %v2187
        %s2189 = smul.f32 %s2177, 0.0078125
        %s2190 = smul.f32 %s2188, 0.0078125
        %s2191 = smul.f32 %s2189, %s2189
        %s2192 = ssub.f32 %s2190, %s2191
        %s2193 = smax.f32 %s2192, 0.0
        %v2194 = vstv %s2189
        %v2195 = vsub.f32 %v2165, %v2194
        %s2196 = sadd.f32 %s2193, 1e-08
        %v2197 = vstv %s2196
        %v2198 = vrsqrt.pop %v2197
        %s2199 = vtos %v2198
        %v2200 = vstv %s2199
        %v2201 = vmul.f32 %v2195, %v2200
        %2203 = vrot.lane.b32.xlu0 %v2165, 112
        %v2204 = vpop.permute.xlu0 %2203
        %v2206 = vsel %vm1230, %v2204, 0.0
        %2207 = vadd.xlane.f32.xlu0 %v2206
        %v2208 = vpop.xlane.xlu0 %2207
        %v2209 = vrot.slane %v2208, 4
        %v2210 = vadd.f32 %v2208, %v2209
        %v2211 = vrot.slane %v2210, 2
        %v2212 = vadd.f32 %v2210, %v2211
        %v2213 = vrot.slane %v2212, 1
        %v2214 = vadd.f32 %v2212, %v2213
        %s2215 = vtos %v2214
        %2217 = vrot.lane.b32.xlu0 %v2178, 112
        %v2218 = vpop.permute.xlu0 %2217
        %v2220 = vsel %vm1230, %v2218, 0.0
        %2221 = vadd.xlane.f32.xlu0 %v2220
        %v2222 = vpop.xlane.xlu0 %2221
        %v2223 = vrot.slane %v2222, 4
        %v2224 = vadd.f32 %v2222, %v2223
        %v2225 = vrot.slane %v2224, 2
        %v2226 = vadd.f32 %v2224, %v2225
        %v2227 = vrot.slane %v2226, 1
        %v2228 = vadd.f32 %v2226, %v2227
        %s2229 = vtos %v2228
        %s2230 = smul.f32 %s2215, 0.0078125
        %s2231 = smul.f32 %s2229, 0.0078125
        %s2232 = smul.f32 %s2230, %s2230
        %s2233 = ssub.f32 %s2231, %s2232
        %s2234 = smax.f32 %s2233, 0.0
        %v2235 = vstv %s2230
        %v2236 = vsub.f32 %v2165, %v2235
        %s2237 = sadd.f32 %s2234, 1e-08
        %v2238 = vstv %s2237
        %v2239 = vrsqrt.pop %v2238
        %s2240 = vtos %v2239
        %v2241 = vstv %s2240
        %v2242 = vmul.f32 %v2236, %v2241
        %v2243 = vsel %vm1230, %v2201, %v2242
        %2245 = vset.pattern.permute.xlu0 0
        %2246 = vperm.xlu0 %2245, %v2166
        %v2247 = vpop.permute.xlu0 %2246
        %v2249 = vmul.f32 %v2243, %v2247
        %2251 = vset.pattern.permute.xlu0 0
        %2252 = vperm.xlu0 %2251, %v2167
        %v2253 = vpop.permute.xlu0 %2252
        %v2255 = vadd.f32 %v2249, %v2253
        %v2256 = vld [vmem:[%s37] sm:$0xff]
        %2258 = vset.pattern.permute.xlu0 0
        %2259 = vperm.xlu0 %2258, %v2256
        %v2260 = vpop.permute.xlu0 %2259
        %v2262 = vlaneseq
        %v2263 = vshrl.u32 %v2262, 7
        %v2264 = vsub.s32 0, %v2263
        %v2265 = vrot.slane %v2255, %v2264
        %v2266 = vmul.f32 %v2260, %v2265
        %s2267 = scalar_lea.vmem %s37, 8
        %v2268 = vld [vmem:[%s2267] sm:$0xff]
        %2270 = vset.pattern.permute.xlu0 0
        %2271 = vperm.xlu0 %2270, %v2268
        %v2272 = vpop.permute.xlu0 %2271
        %v2274 = vlaneseq
        %v2275 = vshrl.u32 %v2274, 7
        %v2276 = vsub.s32 1, %v2275
        %v2277 = vrot.slane %v2255, %v2276
        %v2278 = vmul.f32 %v2272, %v2277
        %v2279 = vadd.f32 %v2266, %v2278
        %s2280 = scalar_lea.vmem %s37, 16
        %v2281 = vld [vmem:[%s2280] sm:$0xff]
        %2283 = vset.pattern.permute.xlu0 0
        %2284 = vperm.xlu0 %2283, %v2281
        %v2285 = vpop.permute.xlu0 %2284
        %v2287 = vlaneseq
        %v2288 = vshrl.u32 %v2287, 7
        %v2289 = vsub.s32 2, %v2288
        %v2290 = vrot.slane %v2255, %v2289
        %v2291 = vmul.f32 %v2285, %v2290
        %v2292 = vadd.f32 %v2279, %v2291
        %s2293 = scalar_lea.vmem %s37, 24
        %v2294 = vld [vmem:[%s2293] sm:$0xff]
        %2296 = vset.pattern.permute.xlu0 0
        %2297 = vperm.xlu0 %2296, %v2294
        %v2298 = vpop.permute.xlu0 %2297
        %v2300 = vlaneseq
        %v2301 = vshrl.u32 %v2300, 7
        %v2302 = vsub.s32 3, %v2301
        %v2303 = vrot.slane %v2255, %v2302
        %v2304 = vmul.f32 %v2298, %v2303
        %v2305 = vadd.f32 %v2292, %v2304
        %s2306 = scalar_lea.vmem %s37, 32
        %v2307 = vld [vmem:[%s2306] sm:$0xff]
        %2309 = vset.pattern.permute.xlu0 0
        %2310 = vperm.xlu0 %2309, %v2307
        %v2311 = vpop.permute.xlu0 %2310
        %v2313 = vlaneseq
        %v2314 = vshrl.u32 %v2313, 7
        %v2315 = vsub.s32 4, %v2314
        %v2316 = vrot.slane %v2255, %v2315
        %v2317 = vmul.f32 %v2311, %v2316
        %v2318 = vadd.f32 %v2305, %v2317
        %s2319 = scalar_lea.vmem %s37, 40
        %v2320 = vld [vmem:[%s2319] sm:$0xff]
        %2322 = vset.pattern.permute.xlu0 0
        %2323 = vperm.xlu0 %2322, %v2320
        %v2324 = vpop.permute.xlu0 %2323
        %v2326 = vlaneseq
        %v2327 = vshrl.u32 %v2326, 7
        %v2328 = vsub.s32 5, %v2327
        %v2329 = vrot.slane %v2255, %v2328
        %v2330 = vmul.f32 %v2324, %v2329
        %v2331 = vadd.f32 %v2318, %v2330
        %s2332 = scalar_lea.vmem %s37, 48
        %v2333 = vld [vmem:[%s2332] sm:$0xff]
        %2335 = vset.pattern.permute.xlu0 0
        %2336 = vperm.xlu0 %2335, %v2333
        %v2337 = vpop.permute.xlu0 %2336
        %v2339 = vlaneseq
        %v2340 = vshrl.u32 %v2339, 7
        %v2341 = vsub.s32 6, %v2340
        %v2342 = vrot.slane %v2255, %v2341
        %v2343 = vmul.f32 %v2337, %v2342
        %v2344 = vadd.f32 %v2331, %v2343
        %s2345 = scalar_lea.vmem %s37, 56
        %v2346 = vld [vmem:[%s2345] sm:$0xff]
        %2348 = vset.pattern.permute.xlu0 0
        %2349 = vperm.xlu0 %2348, %v2346
        %v2350 = vpop.permute.xlu0 %2349
        %v2352 = vlaneseq
        %v2353 = vshrl.u32 %v2352, 7
        %v2354 = vsub.s32 7, %v2353
        %v2355 = vrot.slane %v2255, %v2354
        %v2356 = vmul.f32 %v2350, %v2355
        %v2357 = vadd.f32 %v2344, %v2356
        %v2358 = vld [vmem:[%s39] sm:$0xff]
        %2360 = vset.pattern.permute.xlu0 0
        %2361 = vperm.xlu0 %2360, %v2358
        %v2362 = vpop.permute.xlu0 %2361
        %v2364 = vadd.f32 %v2357, %v2362
        %v2365 = vadd.f32 %v1902, %v2364
        %s2366 = sld [smem:[#allocation2 + $0x5]]
        %s2367 = sld [smem:[#allocation2 + $0x6]]
        %s2368 = sld [smem:[#allocation2 + $0x7]]
        %s2369 = sld [smem:[#allocation2 + $0x8]]
        %s2370 = sld [smem:[#allocation2 + $0x9]]
        %v2371 = vld [vmem:[%s41] sm:$0xff]
        %v2372 = vld [vmem:[%s43] sm:$0xff]
        %v2373 = vsel %vm1230, %v2365, 0.0
        %2374 = vadd.xlane.f32.xlu0 %v2373
        %v2375 = vpop.xlane.xlu0 %2374
        %v2376 = vrot.slane %v2375, 4
        %v2377 = vadd.f32 %v2375, %v2376
        %v2378 = vrot.slane %v2377, 2
        %v2379 = vadd.f32 %v2377, %v2378
        %v2380 = vrot.slane %v2379, 1
        %v2381 = vadd.f32 %v2379, %v2380
        %s2382 = vtos %v2381
        %v2383 = vmul.f32 %v2365, %v2365
        %v2384 = vsel %vm1230, %v2383, 0.0
        %2385 = vadd.xlane.f32.xlu0 %v2384
        %v2386 = vpop.xlane.xlu0 %2385
        %v2387 = vrot.slane %v2386, 4
        %v2388 = vadd.f32 %v2386, %v2387
        %v2389 = vrot.slane %v2388, 2
        %v2390 = vadd.f32 %v2388, %v2389
        %v2391 = vrot.slane %v2390, 1
        %v2392 = vadd.f32 %v2390, %v2391
        %s2393 = vtos %v2392
        %s2394 = smul.f32 %s2382, 0.0078125
        %s2395 = smul.f32 %s2393, 0.0078125
        %s2396 = smul.f32 %s2394, %s2394
        %s2397 = ssub.f32 %s2395, %s2396
        %s2398 = smax.f32 %s2397, 0.0
        %v2399 = vstv %s2394
        %v2400 = vsub.f32 %v2365, %v2399
        %s2401 = sadd.f32 %s2398, 1e-08
        %v2402 = vstv %s2401
        %v2403 = vrsqrt.pop %v2402
        %s2404 = vtos %v2403
        %v2405 = vstv %s2404
        %v2406 = vmul.f32 %v2400, %v2405
        %2408 = vrot.lane.b32.xlu0 %v2365, 112
        %v2409 = vpop.permute.xlu0 %2408
        %v2411 = vsel %vm1230, %v2409, 0.0
        %2412 = vadd.xlane.f32.xlu0 %v2411
        %v2413 = vpop.xlane.xlu0 %2412
        %v2414 = vrot.slane %v2413, 4
        %v2415 = vadd.f32 %v2413, %v2414
        %v2416 = vrot.slane %v2415, 2
        %v2417 = vadd.f32 %v2415, %v2416
        %v2418 = vrot.slane %v2417, 1
        %v2419 = vadd.f32 %v2417, %v2418
        %s2420 = vtos %v2419
        %2422 = vrot.lane.b32.xlu0 %v2383, 112
        %v2423 = vpop.permute.xlu0 %2422
        %v2425 = vsel %vm1230, %v2423, 0.0
        %2426 = vadd.xlane.f32.xlu0 %v2425
        %v2427 = vpop.xlane.xlu0 %2426
        %v2428 = vrot.slane %v2427, 4
        %v2429 = vadd.f32 %v2427, %v2428
        %v2430 = vrot.slane %v2429, 2
        %v2431 = vadd.f32 %v2429, %v2430
        %v2432 = vrot.slane %v2431, 1
        %v2433 = vadd.f32 %v2431, %v2432
        %s2434 = vtos %v2433
        %s2435 = smul.f32 %s2420, 0.0078125
        %s2436 = smul.f32 %s2434, 0.0078125
        %s2437 = smul.f32 %s2435, %s2435
        %s2438 = ssub.f32 %s2436, %s2437
        %s2439 = smax.f32 %s2438, 0.0
        %v2440 = vstv %s2435
        %v2441 = vsub.f32 %v2365, %v2440
        %s2442 = sadd.f32 %s2439, 1e-08
        %v2443 = vstv %s2442
        %v2444 = vrsqrt.pop %v2443
        %s2445 = vtos %v2444
        %v2446 = vstv %s2445
        %v2447 = vmul.f32 %v2441, %v2446
        %v2448 = vsel %vm1230, %v2406, %v2447
        %2450 = vset.pattern.permute.xlu0 0
        %2451 = vperm.xlu0 %2450, %v2371
        %v2452 = vpop.permute.xlu0 %2451
        %v2454 = vmul.f32 %v2448, %v2452
        %2456 = vset.pattern.permute.xlu0 0
        %2457 = vperm.xlu0 %2456, %v2372
        %v2458 = vpop.permute.xlu0 %2457
        %v2460 = vadd.f32 %v2454, %v2458
        %v2461 = vld [vmem:[%s45] sm:$0xff]
        %v2462 = vld [vmem:[%s45 + $0x8] sm:$0xff]
        %v2463 = vld [vmem:[%s45 + $0x10] sm:$0xff]
        %2465 = vset.pattern.permute.xlu0 0
        %2466 = vperm.xlu0 %2465, %v2461
        %v2467 = vpop.permute.xlu0 %2466
        %2470 = vset.pattern.permute.xlu0 0
        %2471 = vperm.xlu0 %2470, %v2462
        %v2472 = vpop.permute.xlu0 %2471
        %2475 = vset.pattern.permute.xlu0 0
        %2476 = vperm.xlu0 %2475, %v2463
        %v2477 = vpop.permute.xlu0 %2476
        %v2479 = vlaneseq
        %v2480 = vshrl.u32 %v2479, 7
        %v2481 = vsub.s32 0, %v2480
        %v2482 = vrot.slane %v2460, %v2481
        %v2483 = vmul.f32 %v2467, %v2482
        %v2484 = vmul.f32 %v2472, %v2482
        %v2485 = vmul.f32 %v2477, %v2482
        %s2486 = scalar_lea.vmem %s45, 24
        %v2487 = vld [vmem:[%s2486] sm:$0xff]
        %v2488 = vld [vmem:[%s2486 + $0x8] sm:$0xff]
        %v2489 = vld [vmem:[%s2486 + $0x10] sm:$0xff]
        %2491 = vset.pattern.permute.xlu0 0
        %2492 = vperm.xlu0 %2491, %v2487
        %v2493 = vpop.permute.xlu0 %2492
        %2496 = vset.pattern.permute.xlu0 0
        %2497 = vperm.xlu0 %2496, %v2488
        %v2498 = vpop.permute.xlu0 %2497
        %2501 = vset.pattern.permute.xlu0 0
        %2502 = vperm.xlu0 %2501, %v2489
        %v2503 = vpop.permute.xlu0 %2502
        %v2505 = vlaneseq
        %v2506 = vshrl.u32 %v2505, 7
        %v2507 = vsub.s32 1, %v2506
        %v2508 = vrot.slane %v2460, %v2507
        %v2509 = vmul.f32 %v2493, %v2508
        %v2510 = vmul.f32 %v2498, %v2508
        %v2511 = vmul.f32 %v2503, %v2508
        %v2512 = vadd.f32 %v2483, %v2509
        %v2513 = vadd.f32 %v2484, %v2510
        %v2514 = vadd.f32 %v2485, %v2511
        %s2515 = scalar_lea.vmem %s45, 48
        %v2516 = vld [vmem:[%s2515] sm:$0xff]
        %v2517 = vld [vmem:[%s2515 + $0x8] sm:$0xff]
        %v2518 = vld [vmem:[%s2515 + $0x10] sm:$0xff]
        %2520 = vset.pattern.permute.xlu0 0
        %2521 = vperm.xlu0 %2520, %v2516
        %v2522 = vpop.permute.xlu0 %2521
        %2525 = vset.pattern.permute.xlu0 0
        %2526 = vperm.xlu0 %2525, %v2517
        %v2527 = vpop.permute.xlu0 %2526
        %2530 = vset.pattern.permute.xlu0 0
        %2531 = vperm.xlu0 %2530, %v2518
        %v2532 = vpop.permute.xlu0 %2531
        %v2534 = vlaneseq
        %v2535 = vshrl.u32 %v2534, 7
        %v2536 = vsub.s32 2, %v2535
        %v2537 = vrot.slane %v2460, %v2536
        %v2538 = vmul.f32 %v2522, %v2537
        %v2539 = vmul.f32 %v2527, %v2537
        %v2540 = vmul.f32 %v2532, %v2537
        %v2541 = vadd.f32 %v2512, %v2538
        %v2542 = vadd.f32 %v2513, %v2539
        %v2543 = vadd.f32 %v2514, %v2540
        %s2544 = scalar_lea.vmem %s45, 72
        %v2545 = vld [vmem:[%s2544] sm:$0xff]
        %v2546 = vld [vmem:[%s2544 + $0x8] sm:$0xff]
        %v2547 = vld [vmem:[%s2544 + $0x10] sm:$0xff]
        %2549 = vset.pattern.permute.xlu0 0
        %2550 = vperm.xlu0 %2549, %v2545
        %v2551 = vpop.permute.xlu0 %2550
        %2554 = vset.pattern.permute.xlu0 0
        %2555 = vperm.xlu0 %2554, %v2546
        %v2556 = vpop.permute.xlu0 %2555
        %2559 = vset.pattern.permute.xlu0 0
        %2560 = vperm.xlu0 %2559, %v2547
        %v2561 = vpop.permute.xlu0 %2560
        %v2563 = vlaneseq
        %v2564 = vshrl.u32 %v2563, 7
        %v2565 = vsub.s32 3, %v2564
        %v2566 = vrot.slane %v2460, %v2565
        %v2567 = vmul.f32 %v2551, %v2566
        %v2568 = vmul.f32 %v2556, %v2566
        %v2569 = vmul.f32 %v2561, %v2566
        %v2570 = vadd.f32 %v2541, %v2567
        %v2571 = vadd.f32 %v2542, %v2568
        %v2572 = vadd.f32 %v2543, %v2569
        %s2573 = scalar_lea.vmem %s45, 96
        %v2574 = vld [vmem:[%s2573] sm:$0xff]
        %v2575 = vld [vmem:[%s2573 + $0x8] sm:$0xff]
        %v2576 = vld [vmem:[%s2573 + $0x10] sm:$0xff]
        %2578 = vset.pattern.permute.xlu0 0
        %2579 = vperm.xlu0 %2578, %v2574
        %v2580 = vpop.permute.xlu0 %2579
        %2583 = vset.pattern.permute.xlu0 0
        %2584 = vperm.xlu0 %2583, %v2575
        %v2585 = vpop.permute.xlu0 %2584
        %2588 = vset.pattern.permute.xlu0 0
        %2589 = vperm.xlu0 %2588, %v2576
        %v2590 = vpop.permute.xlu0 %2589
        %v2592 = vlaneseq
        %v2593 = vshrl.u32 %v2592, 7
        %v2594 = vsub.s32 4, %v2593
        %v2595 = vrot.slane %v2460, %v2594
        %v2596 = vmul.f32 %v2580, %v2595
        %v2597 = vmul.f32 %v2585, %v2595
        %v2598 = vmul.f32 %v2590, %v2595
        %v2599 = vadd.f32 %v2570, %v2596
        %v2600 = vadd.f32 %v2571, %v2597
        %v2601 = vadd.f32 %v2572, %v2598
        %s2602 = scalar_lea.vmem %s45, 120
        %v2603 = vld [vmem:[%s2602] sm:$0xff]
        %v2604 = vld [vmem:[%s2602 + $0x8] sm:$0xff]
        %v2605 = vld [vmem:[%s2602 + $0x10] sm:$0xff]
        %2607 = vset.pattern.permute.xlu0 0
        %2608 = vperm.xlu0 %2607, %v2603
        %v2609 = vpop.permute.xlu0 %2608
        %2612 = vset.pattern.permute.xlu0 0
        %2613 = vperm.xlu0 %2612, %v2604
        %v2614 = vpop.permute.xlu0 %2613
        %2617 = vset.pattern.permute.xlu0 0
        %2618 = vperm.xlu0 %2617, %v2605
        %v2619 = vpop.permute.xlu0 %2618
        %v2621 = vlaneseq
        %v2622 = vshrl.u32 %v2621, 7
        %v2623 = vsub.s32 5, %v2622
        %v2624 = vrot.slane %v2460, %v2623
        %v2625 = vmul.f32 %v2609, %v2624
        %v2626 = vmul.f32 %v2614, %v2624
        %v2627 = vmul.f32 %v2619, %v2624
        %v2628 = vadd.f32 %v2599, %v2625
        %v2629 = vadd.f32 %v2600, %v2626
        %v2630 = vadd.f32 %v2601, %v2627
        %s2631 = scalar_lea.vmem %s45, 144
        %v2632 = vld [vmem:[%s2631] sm:$0xff]
        %v2633 = vld [vmem:[%s2631 + $0x8] sm:$0xff]
        %v2634 = vld [vmem:[%s2631 + $0x10] sm:$0xff]
        %2636 = vset.pattern.permute.xlu0 0
        %2637 = vperm.xlu0 %2636, %v2632
        %v2638 = vpop.permute.xlu0 %2637
        %2641 = vset.pattern.permute.xlu0 0
        %2642 = vperm.xlu0 %2641, %v2633
        %v2643 = vpop.permute.xlu0 %2642
        %2646 = vset.pattern.permute.xlu0 0
        %2647 = vperm.xlu0 %2646, %v2634
        %v2648 = vpop.permute.xlu0 %2647
        %v2650 = vlaneseq
        %v2651 = vshrl.u32 %v2650, 7
        %v2652 = vsub.s32 6, %v2651
        %v2653 = vrot.slane %v2460, %v2652
        %v2654 = vmul.f32 %v2638, %v2653
        %v2655 = vmul.f32 %v2643, %v2653
        %v2656 = vmul.f32 %v2648, %v2653
        %v2657 = vadd.f32 %v2628, %v2654
        %v2658 = vadd.f32 %v2629, %v2655
        %v2659 = vadd.f32 %v2630, %v2656
        %s2660 = scalar_lea.vmem %s45, 168
        %v2661 = vld [vmem:[%s2660] sm:$0xff]
        %v2662 = vld [vmem:[%s2660 + $0x8] sm:$0xff]
        %v2663 = vld [vmem:[%s2660 + $0x10] sm:$0xff]
        %2665 = vset.pattern.permute.xlu0 0
        %2666 = vperm.xlu0 %2665, %v2661
        %v2667 = vpop.permute.xlu0 %2666
        %2670 = vset.pattern.permute.xlu0 0
        %2671 = vperm.xlu0 %2670, %v2662
        %v2672 = vpop.permute.xlu0 %2671
        %2675 = vset.pattern.permute.xlu0 0
        %2676 = vperm.xlu0 %2675, %v2663
        %v2677 = vpop.permute.xlu0 %2676
        %v2679 = vlaneseq
        %v2680 = vshrl.u32 %v2679, 7
        %v2681 = vsub.s32 7, %v2680
        %v2682 = vrot.slane %v2460, %v2681
        %v2683 = vmul.f32 %v2667, %v2682
        %v2684 = vmul.f32 %v2672, %v2682
        %v2685 = vmul.f32 %v2677, %v2682
        %v2686 = vadd.f32 %v2657, %v2683
        %v2687 = vadd.f32 %v2658, %v2684
        %v2688 = vadd.f32 %v2659, %v2685
        %v2689 = vld [vmem:[%s47] sm:$0xff]
        %v2690 = vld [vmem:[%s47 + $0x8] sm:$0xff]
        %v2691 = vld [vmem:[%s47 + $0x10] sm:$0xff]
        %2693 = vset.pattern.permute.xlu0 0
        %2694 = vperm.xlu0 %2693, %v2689
        %v2695 = vpop.permute.xlu0 %2694
        %2698 = vset.pattern.permute.xlu0 0
        %2699 = vperm.xlu0 %2698, %v2690
        %v2700 = vpop.permute.xlu0 %2699
        %2703 = vset.pattern.permute.xlu0 0
        %2704 = vperm.xlu0 %2703, %v2691
        %v2705 = vpop.permute.xlu0 %2704
        %v2707 = vadd.f32 %v2686, %v2695
        %v2708 = vadd.f32 %v2687, %v2700
        %v2709 = vadd.f32 %v2688, %v2705
        %vm2710 = vcmp.ge.f32.partialorder %v2707, 0.0
        %vm2711 = vcmp.ge.f32.partialorder %v2708, 0.0
        %vm2712 = vcmp.ge.f32.partialorder %v2709, 0.0
        %v2713 = vstv %s2366
        %v2714 = vmul.f32 %v2713, %v2707
        %v2715 = vmul.f32 %v2713, %v2708
        %v2716 = vmul.f32 %v2713, %v2709
        %v2717 = vsel %vm2710, %v2707, %v2714
        %v2718 = vsel %vm2711, %v2708, %v2715
        %v2719 = vsel %vm2712, %v2709, %v2716
        %2723 = vrot.lane.b32.xlu0 %v2717, 112
        %v2724 = vpop.permute.xlu0 %2723
        %2725 = vrot.lane.b32.xlu0 %v2718, 112
        %v2726 = vpop.permute.xlu0 %2725
        %2727 = vrot.lane.b32.xlu0 %v2719, 112
        %v2728 = vpop.permute.xlu0 %2727
        %v2732 = vadd.f32 %v2717, %v2724
        %v2733 = vadd.f32 %v2718, %v2726
        %v2734 = vadd.f32 %v2719, %v2728
        %v2735 = vmul.f32 %v2732, 0.5
        %v2736 = vmul.f32 %v2733, 0.5
        %v2737 = vmul.f32 %v2734, 0.5
        %v2738 = vld [vmem:[%s49] sm:$0xff]
        %v2739 = vld [vmem:[%s49 + $0x8] sm:$0xff]
        %v2740 = vld [vmem:[%s49 + $0x10] sm:$0xff]
        %v2741 = vld [vmem:[%s51] sm:$0xff]
        %v2742 = vld [vmem:[%s51 + $0x8] sm:$0xff]
        %v2743 = vld [vmem:[%s51 + $0x10] sm:$0xff]
        %2745 = vset.pattern.permute.xlu0 0
        %2746 = vperm.xlu0 %2745, %v2741
        %v2747 = vpop.permute.xlu0 %2746
        %2750 = vset.pattern.permute.xlu0 0
        %2751 = vperm.xlu0 %2750, %v2742
        %v2752 = vpop.permute.xlu0 %2751
        %2755 = vset.pattern.permute.xlu0 0
        %2756 = vperm.xlu0 %2755, %v2743
        %v2757 = vpop.permute.xlu0 %2756
        %v2760 = vsel %vm1639, %v2738, 0
        %v2763 = vsel %vm1639, %v2739, 0
        %v2766 = vsel %vm1639, %v2740, 0
        %2768 = vmatprep.subr.mxu0 0.0
        %2769 = vmatpush1.msra.mxu0 0.0
        %2770 = vmatprep.subr.mxu0 0.0
        %2771 = vmatpush1.msra.mxu0 0.0
        %2772 = vmatprep.subr.mxu0 0.0
        %2773 = vmatpush1.msra.mxu0 0.0
        %2774 = vmatprep.subr.mxu0 0.0
        %2775 = vmatpush1.msra.mxu0 0.0
        %2776 = vmatprep.subr.mxu0 0.0
        %2777 = vmatpush1.msra.mxu0 0.0
        %2778 = vmatprep.subr.mxu0 0.0
        %2779 = vmatpush1.msra.mxu0 0.0
        %2780 = vmatprep.subr.mxu0 0.0
        %2781 = vmatpush1.msra.mxu0 0.0
        %2782 = vmatprep.subr.mxu0 0.0
        %2783 = vmatpush1.msra.mxu0 0.0
        %2784 = vmatprep.subr.mxu0 0.0
        %2785 = vmatpush1.msra.mxu0 0.0
        %2786 = vmatprep.subr.mxu0 0.0
        %2787 = vmatpush1.msra.mxu0 0.0
        %2788 = vmatprep.subr.mxu0 0.0
        %2789 = vmatpush1.msra.mxu0 0.0
        %2790 = vmatprep.subr.mxu0 0.0
        %2791 = vmatpush1.msra.mxu0 0.0
        %2792 = vmatprep.subr.mxu0 0.0
        %2793 = vmatpush1.msra.mxu0 0.0
        %2794 = vmatprep.subr.mxu0 0.0
        %2795 = vmatpush1.msra.mxu0 %v2737
        %2796 = vmatprep.subr.mxu0 0.0
        %2797 = vmatpush1.msra.mxu0 %v2736
        %2798 = vmatprep.subr.mxu0 0.0
        %2799 = vmatpush1.msra.mxu0 %v2735
        %2800 = vmatprep.subr.mxu0 0.0
        %2801 = vmatpush2.msra.mxu0 0.0
        %2802 = vmatprep.subr.mxu0 0.0
        %2803 = vmatpush2.msra.mxu0 0.0
        %2804 = vmatprep.subr.mxu0 0.0
        %2805 = vmatpush2.msra.mxu0 0.0
        %2806 = vmatprep.subr.mxu0 0.0
        %2807 = vmatpush2.msra.mxu0 0.0
        %2808 = vmatprep.subr.mxu0 0.0
        %2809 = vmatpush2.msra.mxu0 0.0
        %2810 = vmatprep.subr.mxu0 0.0
        %2811 = vmatpush2.msra.mxu0 0.0
        %2812 = vmatprep.subr.mxu0 0.0
        %2813 = vmatpush2.msra.mxu0 0.0
        %2814 = vmatprep.subr.mxu0 0.0
        %2815 = vmatpush2.msra.mxu0 0.0
        %2816 = vmatprep.subr.mxu0 0.0
        %2817 = vmatpush2.msra.mxu0 0.0
        %2818 = vmatprep.subr.mxu0 0.0
        %2819 = vmatpush2.msra.mxu0 0.0
        %2820 = vmatprep.subr.mxu0 0.0
        %2821 = vmatpush2.msra.mxu0 0.0
        %2822 = vmatprep.subr.mxu0 0.0
        %2823 = vmatpush2.msra.mxu0 0.0
        %2824 = vmatprep.subr.mxu0 0.0
        %2825 = vmatpush2.msra.mxu0 0.0
        %2826 = vmatprep.subr.mxu0 0.0
        %2827 = vmatpush2.msra.mxu0 0.0
        %2828 = vmatprep.subr.mxu0 0.0
        %2829 = vmatpush2.msra.mxu0 0.0
        %2830 = vmatprep.subr.mxu0 0.0
        %2831 = vmatpush2.msra.mxu0 0.0
        %2832 = vmatprep.mubr.f32.mxu0 0.0
        %2833 = vmatmul.mubr.f32.gmra.mxu0 %v2760
        %v2834 = vpop.f32.mrf.mxu0
        %v2835 = vadd.f32 %v2747, %v2834
        %v2836 = vpop.f32.mrf.mxu0
        %2837 = vmatprep.mubr.f32.mxu0 0.0
        %2838 = vmatmul.mubr.f32.gmra.mxu0 %v2763
        %v2839 = vpop.f32.mrf.mxu0
        %v2840 = vadd.f32 %v2752, %v2839
        %v2841 = vpop.f32.mrf.mxu0
        %2842 = vmatprep.mubr.f32.mxu0 0.0
        %2843 = vmatmul.mubr.f32.gmra.mxu0 %v2766
        %v2844 = vpop.f32.mrf.mxu0
        %v2845 = vadd.f32 %v2757, %v2844
        %v2846 = vpop.f32.mrf.mxu0
        %2847 = vdwg.mxu0
        %vm2848 = vcmp.ge.f32.partialorder %v2835, 0.0
        %vm2849 = vcmp.ge.f32.partialorder %v2840, 0.0
        %vm2850 = vcmp.ge.f32.partialorder %v2845, 0.0
        %v2851 = vstv %s2367
        %v2852 = vmul.f32 %v2851, %v2835
        %v2853 = vmul.f32 %v2851, %v2840
        %v2854 = vmul.f32 %v2851, %v2845
        %v2855 = vsel %vm2848, %v2835, %v2852
        %v2856 = vsel %vm2849, %v2840, %v2853
        %v2857 = vsel %vm2850, %v2845, %v2854
        %v2858 = vld [vmem:[%s55] sm:$0xff]
        %v2859 = vld [vmem:[%s57] sm:$0xff]
        %2861 = vset.pattern.permute.xlu0 0
        %2862 = vperm.xlu0 %2861, %v2859
        %v2863 = vpop.permute.xlu0 %2862
        %v2866 = vsel %vm1639, %v2858, 0
        %2868 = vmatprep.subr.mxu0 0.0
        %2869 = vmatpush1.msra.mxu0 0.0
        %2870 = vmatprep.subr.mxu0 0.0
        %2871 = vmatpush1.msra.mxu0 0.0
        %2872 = vmatprep.subr.mxu0 0.0
        %2873 = vmatpush1.msra.mxu0 0.0
        %2874 = vmatprep.subr.mxu0 0.0
        %2875 = vmatpush1.msra.mxu0 0.0
        %2876 = vmatprep.subr.mxu0 0.0
        %2877 = vmatpush1.msra.mxu0 0.0
        %2878 = vmatprep.subr.mxu0 0.0
        %2879 = vmatpush1.msra.mxu0 0.0
        %2880 = vmatprep.subr.mxu0 0.0
        %2881 = vmatpush1.msra.mxu0 0.0
        %2882 = vmatprep.subr.mxu0 0.0
        %2883 = vmatpush1.msra.mxu0 0.0
        %2884 = vmatprep.subr.mxu0 0.0
        %2885 = vmatpush1.msra.mxu0 0.0
        %2886 = vmatprep.subr.mxu0 0.0
        %2887 = vmatpush1.msra.mxu0 0.0
        %2888 = vmatprep.subr.mxu0 0.0
        %2889 = vmatpush1.msra.mxu0 0.0
        %2890 = vmatprep.subr.mxu0 0.0
        %2891 = vmatpush1.msra.mxu0 0.0
        %2892 = vmatprep.subr.mxu0 0.0
        %2893 = vmatpush1.msra.mxu0 0.0
        %2894 = vmatprep.subr.mxu0 0.0
        %2895 = vmatpush1.msra.mxu0 %v2857
        %2896 = vmatprep.subr.mxu0 0.0
        %2897 = vmatpush1.msra.mxu0 %v2856
        %2898 = vmatprep.subr.mxu0 0.0
        %2899 = vmatpush1.msra.mxu0 %v2855
        %2900 = vmatprep.subr.mxu0 0.0
        %2901 = vmatpush2.msra.mxu0 0.0
        %2902 = vmatprep.subr.mxu0 0.0
        %2903 = vmatpush2.msra.mxu0 0.0
        %2904 = vmatprep.subr.mxu0 0.0
        %2905 = vmatpush2.msra.mxu0 0.0
        %2906 = vmatprep.subr.mxu0 0.0
        %2907 = vmatpush2.msra.mxu0 0.0
        %2908 = vmatprep.subr.mxu0 0.0
        %2909 = vmatpush2.msra.mxu0 0.0
        %2910 = vmatprep.subr.mxu0 0.0
        %2911 = vmatpush2.msra.mxu0 0.0
        %2912 = vmatprep.subr.mxu0 0.0
        %2913 = vmatpush2.msra.mxu0 0.0
        %2914 = vmatprep.subr.mxu0 0.0
        %2915 = vmatpush2.msra.mxu0 0.0
        %2916 = vmatprep.subr.mxu0 0.0
        %2917 = vmatpush2.msra.mxu0 0.0
        %2918 = vmatprep.subr.mxu0 0.0
        %2919 = vmatpush2.msra.mxu0 0.0
        %2920 = vmatprep.subr.mxu0 0.0
        %2921 = vmatpush2.msra.mxu0 0.0
        %2922 = vmatprep.subr.mxu0 0.0
        %2923 = vmatpush2.msra.mxu0 0.0
        %2924 = vmatprep.subr.mxu0 0.0
        %2925 = vmatpush2.msra.mxu0 0.0
        %2926 = vmatprep.subr.mxu0 0.0
        %2927 = vmatpush2.msra.mxu0 0.0
        %2928 = vmatprep.subr.mxu0 0.0
        %2929 = vmatpush2.msra.mxu0 0.0
        %2930 = vmatprep.subr.mxu0 0.0
        %2931 = vmatpush2.msra.mxu0 0.0
        %2932 = vmatprep.mubr.f32.mxu0 0.0
        %2933 = vmatmul.mubr.f32.gmra.mxu0 %v2866
        %v2934 = vpop.f32.mrf.mxu0
        %v2935 = vadd.f32 %v2863, %v2934
        %v2936 = vpop.f32.mrf.mxu0
        %2937 = vdwg.mxu0
        %2939 = vrot.lane.b32.xlu0 %v2935, 16
        %v2940 = vpop.permute.xlu0 %2939
        %v2942 = vsel %vm1230, %v2935, %v2940
        %v2943 = vld [vmem:[%s53] sm:$0xff]
        %v2945 = vsel %vm1639, %v2943, 0
        %2947 = vmatprep.subr.mxu0 0.0
        %2948 = vmatpush1.msra.mxu0 0.0
        %2949 = vmatprep.subr.mxu0 0.0
        %2950 = vmatpush1.msra.mxu0 0.0
        %2951 = vmatprep.subr.mxu0 0.0
        %2952 = vmatpush1.msra.mxu0 0.0
        %2953 = vmatprep.subr.mxu0 0.0
        %2954 = vmatpush1.msra.mxu0 0.0
        %2955 = vmatprep.subr.mxu0 0.0
        %2956 = vmatpush1.msra.mxu0 0.0
        %2957 = vmatprep.subr.mxu0 0.0
        %2958 = vmatpush1.msra.mxu0 0.0
        %2959 = vmatprep.subr.mxu0 0.0
        %2960 = vmatpush1.msra.mxu0 0.0
        %2961 = vmatprep.subr.mxu0 0.0
        %2962 = vmatpush1.msra.mxu0 0.0
        %2963 = vmatprep.subr.mxu0 0.0
        %2964 = vmatpush1.msra.mxu0 0.0
        %2965 = vmatprep.subr.mxu0 0.0
        %2966 = vmatpush1.msra.mxu0 0.0
        %2967 = vmatprep.subr.mxu0 0.0
        %2968 = vmatpush1.msra.mxu0 0.0
        %2969 = vmatprep.subr.mxu0 0.0
        %2970 = vmatpush1.msra.mxu0 0.0
        %2971 = vmatprep.subr.mxu0 0.0
        %2972 = vmatpush1.msra.mxu0 0.0
        %2973 = vmatprep.subr.mxu0 0.0
        %2974 = vmatpush1.msra.mxu0 %v2719
        %2975 = vmatprep.subr.mxu0 0.0
        %2976 = vmatpush1.msra.mxu0 %v2718
        %2977 = vmatprep.subr.mxu0 0.0
        %2978 = vmatpush1.msra.mxu0 %v2717
        %2979 = vmatprep.subr.mxu0 0.0
        %2980 = vmatpush2.msra.mxu0 0.0
        %2981 = vmatprep.subr.mxu0 0.0
        %2982 = vmatpush2.msra.mxu0 0.0
        %2983 = vmatprep.subr.mxu0 0.0
        %2984 = vmatpush2.msra.mxu0 0.0
        %2985 = vmatprep.subr.mxu0 0.0
        %2986 = vmatpush2.msra.mxu0 0.0
        %2987 = vmatprep.subr.mxu0 0.0
        %2988 = vmatpush2.msra.mxu0 0.0
        %2989 = vmatprep.subr.mxu0 0.0
        %2990 = vmatpush2.msra.mxu0 0.0
        %2991 = vmatprep.subr.mxu0 0.0
        %2992 = vmatpush2.msra.mxu0 0.0
        %2993 = vmatprep.subr.mxu0 0.0
        %2994 = vmatpush2.msra.mxu0 0.0
        %2995 = vmatprep.subr.mxu0 0.0
        %2996 = vmatpush2.msra.mxu0 0.0
        %2997 = vmatprep.subr.mxu0 0.0
        %2998 = vmatpush2.msra.mxu0 0.0
        %2999 = vmatprep.subr.mxu0 0.0
        %3000 = vmatpush2.msra.mxu0 0.0
        %3001 = vmatprep.subr.mxu0 0.0
        %3002 = vmatpush2.msra.mxu0 0.0
        %3003 = vmatprep.subr.mxu0 0.0
        %3004 = vmatpush2.msra.mxu0 0.0
        %3005 = vmatprep.subr.mxu0 0.0
        %3006 = vmatpush2.msra.mxu0 0.0
        %3007 = vmatprep.subr.mxu0 0.0
        %3008 = vmatpush2.msra.mxu0 0.0
        %3009 = vmatprep.subr.mxu0 0.0
        %3010 = vmatpush2.msra.mxu0 0.0
        %3011 = vmatprep.mubr.f32.mxu0 0.0
        %3012 = vmatmul.mubr.f32.gmra.mxu0 %v2945
        %v3013 = vpop.f32.mrf.mxu0
        %v3014 = vadd.f32 %v2942, %v3013
        %v3015 = vpop.f32.mrf.mxu0
        %3016 = vdwg.mxu0
        %vm3017 = vcmp.ge.f32.partialorder %v3014, 0.0
        %v3018 = vstv %s2368
        %v3019 = vmul.f32 %v3018, %v3014
        %v3020 = vsel %vm3017, %v3014, %v3019
        %v3021 = vadd.f32 %v2365, %v3020
        %v3022 = vld [vmem:[%s59] sm:$0xff]
        %3024 = vset.pattern.permute.xlu0 0
        %3025 = vperm.xlu0 %3024, %v3022
        %v3026 = vpop.permute.xlu0 %3025
        %v3028 = vlaneseq
        %v3029 = vshrl.u32 %v3028, 7
        %v3030 = vsub.s32 0, %v3029
        %v3031 = vrot.slane %v3021, %v3030
        %v3032 = vmul.f32 %v3026, %v3031
        %s3033 = scalar_lea.vmem %s59, 8
        %v3034 = vld [vmem:[%s3033] sm:$0xff]
        %3036 = vset.pattern.permute.xlu0 0
        %3037 = vperm.xlu0 %3036, %v3034
        %v3038 = vpop.permute.xlu0 %3037
        %v3040 = vlaneseq
        %v3041 = vshrl.u32 %v3040, 7
        %v3042 = vsub.s32 1, %v3041
        %v3043 = vrot.slane %v3021, %v3042
        %v3044 = vmul.f32 %v3038, %v3043
        %v3045 = vadd.f32 %v3032, %v3044
        %s3046 = scalar_lea.vmem %s59, 16
        %v3047 = vld [vmem:[%s3046] sm:$0xff]
        %3049 = vset.pattern.permute.xlu0 0
        %3050 = vperm.xlu0 %3049, %v3047
        %v3051 = vpop.permute.xlu0 %3050
        %v3053 = vlaneseq
        %v3054 = vshrl.u32 %v3053, 7
        %v3055 = vsub.s32 2, %v3054
        %v3056 = vrot.slane %v3021, %v3055
        %v3057 = vmul.f32 %v3051, %v3056
        %v3058 = vadd.f32 %v3045, %v3057
        %s3059 = scalar_lea.vmem %s59, 24
        %v3060 = vld [vmem:[%s3059] sm:$0xff]
        %3062 = vset.pattern.permute.xlu0 0
        %3063 = vperm.xlu0 %3062, %v3060
        %v3064 = vpop.permute.xlu0 %3063
        %v3066 = vlaneseq
        %v3067 = vshrl.u32 %v3066, 7
        %v3068 = vsub.s32 3, %v3067
        %v3069 = vrot.slane %v3021, %v3068
        %v3070 = vmul.f32 %v3064, %v3069
        %v3071 = vadd.f32 %v3058, %v3070
        %s3072 = scalar_lea.vmem %s59, 32
        %v3073 = vld [vmem:[%s3072] sm:$0xff]
        %3075 = vset.pattern.permute.xlu0 0
        %3076 = vperm.xlu0 %3075, %v3073
        %v3077 = vpop.permute.xlu0 %3076
        %v3079 = vlaneseq
        %v3080 = vshrl.u32 %v3079, 7
        %v3081 = vsub.s32 4, %v3080
        %v3082 = vrot.slane %v3021, %v3081
        %v3083 = vmul.f32 %v3077, %v3082
        %v3084 = vadd.f32 %v3071, %v3083
        %s3085 = scalar_lea.vmem %s59, 40
        %v3086 = vld [vmem:[%s3085] sm:$0xff]
        %3088 = vset.pattern.permute.xlu0 0
        %3089 = vperm.xlu0 %3088, %v3086
        %v3090 = vpop.permute.xlu0 %3089
        %v3092 = vlaneseq
        %v3093 = vshrl.u32 %v3092, 7
        %v3094 = vsub.s32 5, %v3093
        %v3095 = vrot.slane %v3021, %v3094
        %v3096 = vmul.f32 %v3090, %v3095
        %v3097 = vadd.f32 %v3084, %v3096
        %s3098 = scalar_lea.vmem %s59, 48
        %v3099 = vld [vmem:[%s3098] sm:$0xff]
        %3101 = vset.pattern.permute.xlu0 0
        %3102 = vperm.xlu0 %3101, %v3099
        %v3103 = vpop.permute.xlu0 %3102
        %v3105 = vlaneseq
        %v3106 = vshrl.u32 %v3105, 7
        %v3107 = vsub.s32 6, %v3106
        %v3108 = vrot.slane %v3021, %v3107
        %v3109 = vmul.f32 %v3103, %v3108
        %v3110 = vadd.f32 %v3097, %v3109
        %s3111 = scalar_lea.vmem %s59, 56
        %v3112 = vld [vmem:[%s3111] sm:$0xff]
        %3114 = vset.pattern.permute.xlu0 0
        %3115 = vperm.xlu0 %3114, %v3112
        %v3116 = vpop.permute.xlu0 %3115
        %v3118 = vlaneseq
        %v3119 = vshrl.u32 %v3118, 7
        %v3120 = vsub.s32 7, %v3119
        %v3121 = vrot.slane %v3021, %v3120
        %v3122 = vmul.f32 %v3116, %v3121
        %v3123 = vadd.f32 %v3110, %v3122
        %v3124 = vld [vmem:[%s61] sm:$0xff]
        %3126 = vset.pattern.permute.xlu0 0
        %3127 = vperm.xlu0 %3126, %v3124
        %v3128 = vpop.permute.xlu0 %3127
        %v3130 = vadd.f32 %v3123, %v3128
        %vm3131 = vcmp.ge.f32.partialorder %v3130, 0.0
        %v3132 = vstv %s2369
        %v3133 = vmul.f32 %v3132, %v3130
        %v3134 = vsel %vm3131, %v3130, %v3133
        %v3135 = vld [vmem:[%s63] sm:$0xff]
        %v3136 = vld [vmem:[%s65] sm:$0xff]
        %v3137 = vsel %vm1230, %v3134, 0.0
        %3138 = vadd.xlane.f32.xlu0 %v3137
        %v3139 = vpop.xlane.xlu0 %3138
        %v3140 = vrot.slane %v3139, 4
        %v3141 = vadd.f32 %v3139, %v3140
        %v3142 = vrot.slane %v3141, 2
        %v3143 = vadd.f32 %v3141, %v3142
        %v3144 = vrot.slane %v3143, 1
        %v3145 = vadd.f32 %v3143, %v3144
        %s3146 = vtos %v3145
        %v3147 = vmul.f32 %v3134, %v3134
        %v3148 = vsel %vm1230, %v3147, 0.0
        %3149 = vadd.xlane.f32.xlu0 %v3148
        %v3150 = vpop.xlane.xlu0 %3149
        %v3151 = vrot.slane %v3150, 4
        %v3152 = vadd.f32 %v3150, %v3151
        %v3153 = vrot.slane %v3152, 2
        %v3154 = vadd.f32 %v3152, %v3153
        %v3155 = vrot.slane %v3154, 1
        %v3156 = vadd.f32 %v3154, %v3155
        %s3157 = vtos %v3156
        %s3158 = smul.f32 %s3146, 0.0078125
        %s3159 = smul.f32 %s3157, 0.0078125
        %s3160 = smul.f32 %s3158, %s3158
        %s3161 = ssub.f32 %s3159, %s3160
        %s3162 = smax.f32 %s3161, 0.0
        %v3163 = vstv %s3158
        %v3164 = vsub.f32 %v3134, %v3163
        %s3165 = sadd.f32 %s3162, 1e-08
        %v3166 = vstv %s3165
        %v3167 = vrsqrt.pop %v3166
        %s3168 = vtos %v3167
        %v3169 = vstv %s3168
        %v3170 = vmul.f32 %v3164, %v3169
        %3172 = vrot.lane.b32.xlu0 %v3134, 112
        %v3173 = vpop.permute.xlu0 %3172
        %v3175 = vsel %vm1230, %v3173, 0.0
        %3176 = vadd.xlane.f32.xlu0 %v3175
        %v3177 = vpop.xlane.xlu0 %3176
        %v3178 = vrot.slane %v3177, 4
        %v3179 = vadd.f32 %v3177, %v3178
        %v3180 = vrot.slane %v3179, 2
        %v3181 = vadd.f32 %v3179, %v3180
        %v3182 = vrot.slane %v3181, 1
        %v3183 = vadd.f32 %v3181, %v3182
        %s3184 = vtos %v3183
        %3186 = vrot.lane.b32.xlu0 %v3147, 112
        %v3187 = vpop.permute.xlu0 %3186
        %v3189 = vsel %vm1230, %v3187, 0.0
        %3190 = vadd.xlane.f32.xlu0 %v3189
        %v3191 = vpop.xlane.xlu0 %3190
        %v3192 = vrot.slane %v3191, 4
        %v3193 = vadd.f32 %v3191, %v3192
        %v3194 = vrot.slane %v3193, 2
        %v3195 = vadd.f32 %v3193, %v3194
        %v3196 = vrot.slane %v3195, 1
        %v3197 = vadd.f32 %v3195, %v3196
        %s3198 = vtos %v3197
        %s3199 = smul.f32 %s3184, 0.0078125
        %s3200 = smul.f32 %s3198, 0.0078125
        %s3201 = smul.f32 %s3199, %s3199
        %s3202 = ssub.f32 %s3200, %s3201
        %s3203 = smax.f32 %s3202, 0.0
        %v3204 = vstv %s3199
        %v3205 = vsub.f32 %v3134, %v3204
        %s3206 = sadd.f32 %s3203, 1e-08
        %v3207 = vstv %s3206
        %v3208 = vrsqrt.pop %v3207
        %s3209 = vtos %v3208
        %v3210 = vstv %s3209
        %v3211 = vmul.f32 %v3205, %v3210
        %v3212 = vsel %vm1230, %v3170, %v3211
        %3214 = vset.pattern.permute.xlu0 0
        %3215 = vperm.xlu0 %3214, %v3135
        %v3216 = vpop.permute.xlu0 %3215
        %v3218 = vmul.f32 %v3212, %v3216
        %3220 = vset.pattern.permute.xlu0 0
        %3221 = vperm.xlu0 %3220, %v3136
        %v3222 = vpop.permute.xlu0 %3221
        %v3224 = vadd.f32 %v3218, %v3222
        %v3225 = vld [vmem:[%s67] sm:$0xff]
        %v3226 = vadd.s32 %v1245, 4294967294
        %vm3227 = vcmp.ge.s32.totalorder %v3226, 0
        %vm3228 = vcmp.lt.s32.totalorder %v3226, 16
        %vm3229 = vmand %vm3227, %vm3228
        %3230 = vrot.lane.b32.xlu0 %v3224, 32
        %v3231 = vpop.permute.xlu0 %3230
        %v3232 = vsel %vm2111, %v3231, %v3224
        %3233 = vrot.lane.b32.xlu0 %v3232, 32
        %v3234 = vpop.permute.xlu0 %3233
        %v3235 = vsel %vm2111, %v3234, %v3224
        %3237 = vrot.lane.b32.xlu0 %v3235, 98
        %v3238 = vpop.permute.xlu0 %3237
        %v3240 = vsel %vm3229, %v3238, 0.0
        %3242 = vset.pattern.permute.xlu0 0
        %3243 = vperm.xlu0 %3242, %v3225
        %v3244 = vpop.permute.xlu0 %3243
        %v3246 = vmul.f32 %v3244, %v3240
        %s3247 = scalar_lea.vmem %s67, 8
        %v3248 = vld [vmem:[%s3247] sm:$0xff]
        %3250 = vset.pattern.permute.xlu0 0
        %3251 = vperm.xlu0 %3250, %v3248
        %v3252 = vpop.permute.xlu0 %3251
        %v3254 = vmul.f32 %v3252, %v3224
        %v3255 = vadd.f32 %v3246, %v3254
        %s3256 = scalar_lea.vmem %s67, 16
        %v3257 = vld [vmem:[%s3256] sm:$0xff]
        %v3258 = vadd.s32 %v1245, 2
        %vm3259 = vcmp.ge.s32.totalorder %v3258, 0
        %vm3260 = vcmp.lt.s32.totalorder %v3258, 16
        %vm3261 = vmand %vm3259, %vm3260
        %3262 = vrot.lane.b32.xlu0 %v3235, 126
        %v3263 = vpop.permute.xlu0 %3262
        %v3265 = vsel %vm3261, %v3263, 0.0
        %3267 = vset.pattern.permute.xlu0 0
        %3268 = vperm.xlu0 %3267, %v3257
        %v3269 = vpop.permute.xlu0 %3268
        %v3271 = vmul.f32 %v3269, %v3265
        %v3272 = vadd.f32 %v3255, %v3271
        %v3273 = vld [vmem:[%s69] sm:$0xff]
        %3275 = vset.pattern.permute.xlu0 0
        %3276 = vperm.xlu0 %3275, %v3273
        %v3277 = vpop.permute.xlu0 %3276
        %v3279 = vadd.f32 %v3272, %v3277
        %vm3280 = vcmp.ge.f32.partialorder %v3279, 0.0
        %v3281 = vstv %s2370
        %v3282 = vmul.f32 %v3281, %v3279
        %v3283 = vsel %vm3280, %v3279, %v3282
        %v3284 = vld [vmem:[%s71] sm:$0xff]
        %v3285 = vld [vmem:[%s73] sm:$0xff]
        %v3286 = vsel %vm1230, %v3283, 0.0
        %3287 = vadd.xlane.f32.xlu0 %v3286
        %v3288 = vpop.xlane.xlu0 %3287
        %v3289 = vrot.slane %v3288, 4
        %v3290 = vadd.f32 %v3288, %v3289
        %v3291 = vrot.slane %v3290, 2
        %v3292 = vadd.f32 %v3290, %v3291
        %v3293 = vrot.slane %v3292, 1
        %v3294 = vadd.f32 %v3292, %v3293
        %s3295 = vtos %v3294
        %v3296 = vmul.f32 %v3283, %v3283
        %v3297 = vsel %vm1230, %v3296, 0.0
        %3298 = vadd.xlane.f32.xlu0 %v3297
        %v3299 = vpop.xlane.xlu0 %3298
        %v3300 = vrot.slane %v3299, 4
        %v3301 = vadd.f32 %v3299, %v3300
        %v3302 = vrot.slane %v3301, 2
        %v3303 = vadd.f32 %v3301, %v3302
        %v3304 = vrot.slane %v3303, 1
        %v3305 = vadd.f32 %v3303, %v3304
        %s3306 = vtos %v3305
        %s3307 = smul.f32 %s3295, 0.0078125
        %s3308 = smul.f32 %s3306, 0.0078125
        %s3309 = smul.f32 %s3307, %s3307
        %s3310 = ssub.f32 %s3308, %s3309
        %s3311 = smax.f32 %s3310, 0.0
        %v3312 = vstv %s3307
        %v3313 = vsub.f32 %v3283, %v3312
        %s3314 = sadd.f32 %s3311, 1e-08
        %v3315 = vstv %s3314
        %v3316 = vrsqrt.pop %v3315
        %s3317 = vtos %v3316
        %v3318 = vstv %s3317
        %v3319 = vmul.f32 %v3313, %v3318
        %3321 = vrot.lane.b32.xlu0 %v3283, 112
        %v3322 = vpop.permute.xlu0 %3321
        %v3324 = vsel %vm1230, %v3322, 0.0
        %3325 = vadd.xlane.f32.xlu0 %v3324
        %v3326 = vpop.xlane.xlu0 %3325
        %v3327 = vrot.slane %v3326, 4
        %v3328 = vadd.f32 %v3326, %v3327
        %v3329 = vrot.slane %v3328, 2
        %v3330 = vadd.f32 %v3328, %v3329
        %v3331 = vrot.slane %v3330, 1
        %v3332 = vadd.f32 %v3330, %v3331
        %s3333 = vtos %v3332
        %3335 = vrot.lane.b32.xlu0 %v3296, 112
        %v3336 = vpop.permute.xlu0 %3335
        %v3338 = vsel %vm1230, %v3336, 0.0
        %3339 = vadd.xlane.f32.xlu0 %v3338
        %v3340 = vpop.xlane.xlu0 %3339
        %v3341 = vrot.slane %v3340, 4
        %v3342 = vadd.f32 %v3340, %v3341
        %v3343 = vrot.slane %v3342, 2
        %v3344 = vadd.f32 %v3342, %v3343
        %v3345 = vrot.slane %v3344, 1
        %v3346 = vadd.f32 %v3344, %v3345
        %s3347 = vtos %v3346
        %s3348 = smul.f32 %s3333, 0.0078125
        %s3349 = smul.f32 %s3347, 0.0078125
        %s3350 = smul.f32 %s3348, %s3348
        %s3351 = ssub.f32 %s3349, %s3350
        %s3352 = smax.f32 %s3351, 0.0
        %v3353 = vstv %s3348
        %v3354 = vsub.f32 %v3283, %v3353
        %s3355 = sadd.f32 %s3352, 1e-08
        %v3356 = vstv %s3355
        %v3357 = vrsqrt.pop %v3356
        %s3358 = vtos %v3357
        %v3359 = vstv %s3358
        %v3360 = vmul.f32 %v3354, %v3359
        %v3361 = vsel %vm1230, %v3319, %v3360
        %3363 = vset.pattern.permute.xlu0 0
        %3364 = vperm.xlu0 %3363, %v3284
        %v3365 = vpop.permute.xlu0 %3364
        %v3367 = vmul.f32 %v3361, %v3365
        %3369 = vset.pattern.permute.xlu0 0
        %3370 = vperm.xlu0 %3369, %v3285
        %v3371 = vpop.permute.xlu0 %3370
        %v3373 = vadd.f32 %v3367, %v3371
        %v3374 = vld [vmem:[%s75] sm:$0xff]
        %3376 = vset.pattern.permute.xlu0 0
        %3377 = vperm.xlu0 %3376, %v3374
        %v3378 = vpop.permute.xlu0 %3377
        %v3380 = vlaneseq
        %v3381 = vshrl.u32 %v3380, 7
        %v3382 = vsub.s32 0, %v3381
        %v3383 = vrot.slane %v3373, %v3382
        %v3384 = vmul.f32 %v3378, %v3383
        %s3385 = scalar_lea.vmem %s75, 8
        %v3386 = vld [vmem:[%s3385] sm:$0xff]
        %3388 = vset.pattern.permute.xlu0 0
        %3389 = vperm.xlu0 %3388, %v3386
        %v3390 = vpop.permute.xlu0 %3389
        %v3392 = vlaneseq
        %v3393 = vshrl.u32 %v3392, 7
        %v3394 = vsub.s32 1, %v3393
        %v3395 = vrot.slane %v3373, %v3394
        %v3396 = vmul.f32 %v3390, %v3395
        %v3397 = vadd.f32 %v3384, %v3396
        %s3398 = scalar_lea.vmem %s75, 16
        %v3399 = vld [vmem:[%s3398] sm:$0xff]
        %3401 = vset.pattern.permute.xlu0 0
        %3402 = vperm.xlu0 %3401, %v3399
        %v3403 = vpop.permute.xlu0 %3402
        %v3405 = vlaneseq
        %v3406 = vshrl.u32 %v3405, 7
        %v3407 = vsub.s32 2, %v3406
        %v3408 = vrot.slane %v3373, %v3407
        %v3409 = vmul.f32 %v3403, %v3408
        %v3410 = vadd.f32 %v3397, %v3409
        %s3411 = scalar_lea.vmem %s75, 24
        %v3412 = vld [vmem:[%s3411] sm:$0xff]
        %3414 = vset.pattern.permute.xlu0 0
        %3415 = vperm.xlu0 %3414, %v3412
        %v3416 = vpop.permute.xlu0 %3415
        %v3418 = vlaneseq
        %v3419 = vshrl.u32 %v3418, 7
        %v3420 = vsub.s32 3, %v3419
        %v3421 = vrot.slane %v3373, %v3420
        %v3422 = vmul.f32 %v3416, %v3421
        %v3423 = vadd.f32 %v3410, %v3422
        %s3424 = scalar_lea.vmem %s75, 32
        %v3425 = vld [vmem:[%s3424] sm:$0xff]
        %3427 = vset.pattern.permute.xlu0 0
        %3428 = vperm.xlu0 %3427, %v3425
        %v3429 = vpop.permute.xlu0 %3428
        %v3431 = vlaneseq
        %v3432 = vshrl.u32 %v3431, 7
        %v3433 = vsub.s32 4, %v3432
        %v3434 = vrot.slane %v3373, %v3433
        %v3435 = vmul.f32 %v3429, %v3434
        %v3436 = vadd.f32 %v3423, %v3435
        %s3437 = scalar_lea.vmem %s75, 40
        %v3438 = vld [vmem:[%s3437] sm:$0xff]
        %3440 = vset.pattern.permute.xlu0 0
        %3441 = vperm.xlu0 %3440, %v3438
        %v3442 = vpop.permute.xlu0 %3441
        %v3444 = vlaneseq
        %v3445 = vshrl.u32 %v3444, 7
        %v3446 = vsub.s32 5, %v3445
        %v3447 = vrot.slane %v3373, %v3446
        %v3448 = vmul.f32 %v3442, %v3447
        %v3449 = vadd.f32 %v3436, %v3448
        %s3450 = scalar_lea.vmem %s75, 48
        %v3451 = vld [vmem:[%s3450] sm:$0xff]
        %3453 = vset.pattern.permute.xlu0 0
        %3454 = vperm.xlu0 %3453, %v3451
        %v3455 = vpop.permute.xlu0 %3454
        %v3457 = vlaneseq
        %v3458 = vshrl.u32 %v3457, 7
        %v3459 = vsub.s32 6, %v3458
        %v3460 = vrot.slane %v3373, %v3459
        %v3461 = vmul.f32 %v3455, %v3460
        %v3462 = vadd.f32 %v3449, %v3461
        %s3463 = scalar_lea.vmem %s75, 56
        %v3464 = vld [vmem:[%s3463] sm:$0xff]
        %3466 = vset.pattern.permute.xlu0 0
        %3467 = vperm.xlu0 %3466, %v3464
        %v3468 = vpop.permute.xlu0 %3467
        %v3470 = vlaneseq
        %v3471 = vshrl.u32 %v3470, 7
        %v3472 = vsub.s32 7, %v3471
        %v3473 = vrot.slane %v3373, %v3472
        %v3474 = vmul.f32 %v3468, %v3473
        %v3475 = vadd.f32 %v3462, %v3474
        %v3476 = vld [vmem:[%s77] sm:$0xff]
        %3478 = vset.pattern.permute.xlu0 0
        %3479 = vperm.xlu0 %3478, %v3476
        %v3480 = vpop.permute.xlu0 %3479
        %v3482 = vadd.f32 %v3475, %v3480
        %v3483 = vadd.f32 %v3021, %v3482
        %3484 = vst.msk [vmem:[%s1217] sm:$0xff] %vm1230, %v3483
        %3486 = vrot.lane.b32.xlu0 %v3483, 112
        %v3487 = vpop.permute.xlu0 %3486
        %s3489 = scalar_lea.vmem %s1217, 8 [#allocation5]
        %3490 = vst.msk [vmem:[%s3489] sm:$0xff] %vm1230, %v3487
        %s3491 = sand.u32 %s949, 1
        %s3492 = scalar_lea.sflag [#allocation3], %s3491
        %s3493 = sand.u32 %s949, 1
        %s3494 = smul.addr %s3493, 16
        %s3495 = scalar_lea.vmem [#allocation5], %s3494
        // Predicated region
        $region185: #{tpu_custom_call.1} parent=179 // pred_check
          %p3496 = pneg %p959
        $region186: #{tpu_custom_call.1} parent=179 // pred_check_branch
          %3498 = sbr.rel (%p3496) target = $region188
        $region187: #{tpu_custom_call.1} parent=179 // pred_region
          %s3500 = ssub.s32 256, 256
          %3501 = vsyncadd %s3492, %s3500
          %s3502 = smul.addr %s96, 2
          %s3503 = smul.addr %s3502, 128
          %s3504 = scalar_lea.hbm %s81, %s3503
          %s3505 = sshll.u32 %s3495, 4
          %s3506 = int_to_ptr.vmem [resolvable:$true] %s3505
          %3511 = dma.vmem_to_hbm [thread:$0]  %s3506, 256, %s3504, %s3492, 128, 128, 8
        $region188: #{tpu_custom_call.1} parent=179 // pred_fallthru
          _
      $region180: #{tpu_custom_call.1} parent=5 // pred_fallthru
        _
      %p3512 = scmp.le.s32.totalorder 2, %s91
      // Predicated region
      $region189: #{tpu_custom_call.1} parent=5 // pred_check
        %p3513 = pneg %p3512
      $region190: #{tpu_custom_call.1} parent=5 // pred_check_branch
        %3515 = sbr.rel (%p3513) target = $region192
      $region191: #{tpu_custom_call.1} parent=5 // pred_region
        %s3516 = ssub.s32 %s91, 2
        // Predicated region
        $region193: #{tpu_custom_call.1} parent=191 // pred_check
          %p3517 = pneg %p965
        $region194: #{tpu_custom_call.1} parent=191 // pred_check_branch
          %3519 = sbr.rel (%p3517) target = $region196
        $region195: #{tpu_custom_call.1} parent=191 // pred_region
          %s3520 = sand.u32 %s950, 1
          %s3521 = scalar_lea.sflag [#allocation3], %s3520
          %s3522 = sand.u32 %s950, 1
          %s3523 = smul.addr %s3522, 16
          %s3524 = scalar_lea.vmem [#allocation5], %s3523
          %3525 = dma.done %s3521, 256
        $region196: #{tpu_custom_call.1} parent=191 // pred_fallthru
          _
      $region192: #{tpu_custom_call.1} parent=5 // pred_fallthru
        _
    $region6: #{tpu_custom_call.1} parent=1 // loop_footer
      %s95 = sadd.s32 1, %s91
    $region7: #{tpu_custom_call.1} parent=1 // loop_footer_branch
      %90 = sbr.rel target = $region3
    $region8: #{tpu_custom_call.1} parent=1 // loop_exit
      _
    %3526 = vsyncpa [#allocation3], 1
    %s3527 = scalar_lea.sflag [#allocation3], 1
    %3528 = vsyncpa %s3527, 1
    %3529 = vsyncpa [#allocation4], 1
    %s3530 = scalar_lea.sflag [#allocation4], 1
    %3531 = vsyncpa %s3530, 1

</llo_original>
